<compile_context>
chip_gen: v5e
topology: v5e:2x2
jax: 0.10.0
libtpu: 0.0.40
codegen_flags: <defaults>
</compile_context>

<pallas_src>
import functools

import jax
import jax.numpy as jnp
from jax.experimental import pallas as pl
from jax.experimental.pallas import tpu as pltpu


def _round_up(x, m):
    return ((x + m - 1) // m) * m


# -----------------------------------------------------------------------------
# Capability / sizing helpers
# -----------------------------------------------------------------------------
@functools.lru_cache(maxsize=None)
def _vmem_limit_bytes():
    """Scoped-VMEM limit per generation: ~48 MiB on v7x (64 MiB physical),
    ~96 MiB on v5e/v6e (128 MiB physical).  Defaults (16/32 MiB) are too small
    for the bigger, HBM-amortizing tiles used below."""
    cap = 64 << 20
    try:
        info = pltpu.get_tpu_info()
        cap = int(getattr(info, "vmem_capacity_bytes", 0) or cap)
    except Exception:
        pass
    return int(min(cap * 3 // 4, 100 << 20))


_BUFFERED_OK = None


def _buffered_supported():
    """Probe whether this Pallas build honours BlockSpec(pipeline_mode=pl.Buffered(n))."""
    global _BUFFERED_OK
    if _BUFFERED_OK is None:
        try:
            def _probe(x_ref, o_ref):
                o_ref[...] = x_ref[...]

            spec = pl.BlockSpec((8, 128), lambda i: (0, 0),
                                pipeline_mode=pl.Buffered(1))
            out = pl.pallas_call(
                _probe,
                out_shape=jax.ShapeDtypeStruct((8, 128), jnp.float32),
                grid=(2,),
                in_specs=[spec],
                out_specs=pl.BlockSpec((8, 128), lambda i: (0, 0)),
            )(jnp.zeros((8, 128), jnp.float32))
            jax.block_until_ready(out)
            _BUFFERED_OK = True
        except Exception:
            _BUFFERED_OK = False
    return _BUFFERED_OK


def _spec(block_shape, index_map, *, single_buffered=False):
    """BlockSpec; single_buffered drops the second pipeline buffer for operands
    whose index map ignores the innermost grid axis (halves their VMEM)."""
    if single_buffered and _buffered_supported():
        return pl.BlockSpec(block_shape, index_map, pipeline_mode=pl.Buffered(1))
    return pl.BlockSpec(block_shape, index_map)


def _pick_row_tiling(M, tm_max):
    """Row tile: multiple of 16 (bf16 sublane pack); ensure >=2 tiles when
    possible so a 'parallel' grid axis can shard over v7x's two TensorCores."""
    tm = min(tm_max, _round_up(M, 16))
    if _round_up(M, tm) // tm < 2 and tm >= 32:
        tm = _round_up(tm // 2, 16)
    Mp = _round_up(M, tm)
    return tm, Mp


# -----------------------------------------------------------------------------
# Kernel 1: K-tiled matmul (vision patch embedding).
#   * grid = (N tiles, K tiles); K is the reduction axis (f32 VMEM accumulator)
#   * the small patch matrix A is kept whole per K-tile, so the larger
#     projection weight B is streamed from HBM exactly once
#   * A is passed f32 and cast to bf16 inside the kernel (VPU filler under MXU)
# -----------------------------------------------------------------------------
def _matmul_kernel(a_ref, b_ref, o_ref, acc_ref):
    k = pl.program_id(1)

    @pl.when(k == 0)
    def _():
        acc_ref[...] = jnp.zeros_like(acc_ref)

    acc_ref[...] += jnp.dot(a_ref[...].astype(jnp.bfloat16), b_ref[...],
                            preferred_element_type=jnp.float32)

    @pl.when(k == pl.num_programs(1) - 1)
    def _():
        o_ref[...] = acc_ref[...].astype(o_ref.dtype)


def pallas_matmul(a, b, *, tn=512, tk=512, out_dtype=jnp.bfloat16):
    """a: [M, K] (f32 ok), b: [K, N] -> [M, N] out_dtype."""
    M, K = a.shape
    K2, N = b.shape
    assert K == K2
    tn = min(tn, _round_up(N, 128))
    tk = min(tk, _round_up(K, 128))
    Mp, Kp, Np = _round_up(M, 16), _round_up(K, tk), _round_up(N, tn)
    if (Mp, Kp) != (M, K):                  # trace-time only; no-op when aligned
        a = jnp.pad(a, ((0, Mp - M), (0, Kp - K)))
    if (Kp, Np) != (K, N):
        b = jnp.pad(b, ((0, Kp - K), (0, Np - N)))

    out = pl.pallas_call(
        _matmul_kernel,
        out_shape=jax.ShapeDtypeStruct((Mp, Np), out_dtype),
        grid_spec=pltpu.PrefetchScalarGridSpec(
            num_scalar_prefetch=0,
            grid=(Np // tn, Kp // tk),               # reduction (K) axis last
            in_specs=[
                pl.BlockSpec((Mp, tk), lambda j, k: (0, k)),
                pl.BlockSpec((tk, tn), lambda j, k: (k, j)),
            ],
            out_specs=pl.BlockSpec((Mp, tn), lambda j, k: (0, j)),
            scratch_shapes=[pltpu.VMEM((Mp, tn), jnp.float32)],
        ),
        compiler_params=pltpu.CompilerParams(
            dimension_semantics=("parallel", "arbitrary"),
            vmem_limit_bytes=_vmem_limit_bytes()),
    )(a, b.astype(jnp.bfloat16))
    if (Mp, Np) != (M, N):
        out = out[:M, :N]
    return out


# -----------------------------------------------------------------------------
# Kernel 2: fused LM-trunk MLP block:  out = x + W2 @ gelu(W1 @ x)
# The intermediate dim F = 4H is a reduction grid axis: W1 blocked (H, tf),
# W2 blocked (tf, H), GELU applied per F-tile, and the second matmul is
# accumulated into a (tm, H) f32 VMEM scratch (pl.when init/finalize).  No
# fully-resident (H,4H) weights and no (tm, F) f32 intermediate => fits v7x's
# 64 MiB VMEM at production H; x is single-buffered (index ignores the F axis).
# -----------------------------------------------------------------------------
def _mlp_kernel(x_ref, w1_ref, w2_ref, o_ref, acc_ref):
    f = pl.program_id(1)

    @pl.when(f == 0)
    def _():
        acc_ref[...] = x_ref[...].astype(jnp.float32)        # residual seed, f32

    h1 = jnp.dot(x_ref[...], w1_ref[...], preferred_element_type=jnp.float32)
    h1 = jax.nn.gelu(h1, approximate=True)                    # tanh -> EUP filler
    acc_ref[...] += jnp.dot(h1.astype(jnp.bfloat16), w2_ref[...],
                            preferred_element_type=jnp.float32)

    @pl.when(f == pl.num_programs(1) - 1)
    def _():
        o_ref[...] = acc_ref[...].astype(o_ref.dtype)


def pallas_mlp_residual(x, w1, w2, *, tm=256, tf=512):
    M, H = x.shape
    H2, F = w1.shape
    assert H == H2 and w2.shape == (F, H)
    assert H % 128 == 0 and F % 128 == 0
    tf = min(tf, F)
    if F % tf:
        tf = 128
    tm, Mp = _pick_row_tiling(M, tm)
    if Mp != M:
        x = jnp.pad(x, ((0, Mp - M), (0, 0)))

    out = pl.pallas_call(
        _mlp_kernel,
        out_shape=jax.ShapeDtypeStruct((Mp, H), jnp.bfloat16),
        grid_spec=pltpu.PrefetchScalarGridSpec(
            num_scalar_prefetch=0,
            grid=(Mp // tm, F // tf),                 # F (reduction) axis last
            in_specs=[
                _spec((tm, H), lambda i, f: (i, 0), single_buffered=True),
                pl.BlockSpec((H, tf), lambda i, f: (0, f)),
                pl.BlockSpec((tf, H), lambda i, f: (f, 0)),
            ],
            out_specs=pl.BlockSpec((tm, H), lambda i, f: (i, 0)),
            scratch_shapes=[pltpu.VMEM((tm, H), jnp.float32)],
        ),
        compiler_params=pltpu.CompilerParams(
            dimension_semantics=("parallel", "arbitrary"),
            vmem_limit_bytes=_vmem_limit_bytes()),
    )(x.astype(jnp.bfloat16), w1.astype(jnp.bfloat16), w2.astype(jnp.bfloat16))
    return out[:M] if Mp != M else out


# -----------------------------------------------------------------------------
# Kernel 3: fused LM-head + masked NLL + per-candidate 'sum' reduction.
# Grid = (candidate, token tiles, vocab tiles); vocab is the online-logsumexp
# reduction axis.  Per-row running max / sum-exp / target-logit live in VMEM
# scratch; the per-candidate summed NLL is accumulated into a resident,
# lane-dense (8,128) output block (one unmasked vreg store per candidate), so
# neither the [C,T,V] logits nor the per-token NLL ever touch HBM.
# -----------------------------------------------------------------------------
def _lmhead_nll_kernel(h_ref, w_ref, lab_ref, o_ref, m_sc, l_sc, t_sc):
    t = pl.program_id(1)
    v = pl.program_id(2)

    @pl.when(jnp.logical_and(t == 0, v == 0))
    def _():
        o_ref[...] = jnp.zeros_like(o_ref)          # per-candidate accumulator

    @pl.when(v == 0)
    def _():
        m_sc[...] = jnp.full_like(m_sc, -jnp.inf)
        l_sc[...] = jnp.zeros_like(l_sc)
        t_sc[...] = jnp.zeros_like(t_sc)

    logits = jnp.dot(h_ref[...], w_ref[...],
                     preferred_element_type=jnp.float32)            # (tt, tv) f32
    labels = lab_ref[...]                                           # (tt, 1) int32
    tv = logits.shape[1]

    vocab_idx = v * tv + jax.lax.broadcasted_iota(jnp.int32, logits.shape, 1)
    t_sc[...] += jnp.sum(jnp.where(vocab_idx == labels, logits, 0.0),
                         axis=-1, keepdims=True)

    m_prev = m_sc[...]
    m_new = jnp.maximum(m_prev, jnp.max(logits, axis=-1, keepdims=True))
    l_sc[...] = l_sc[...] * jnp.exp(m_prev - m_new) + jnp.sum(
        jnp.exp(logits - m_new), axis=-1, keepdims=True)
    m_sc[...] = m_new

    @pl.when(v == pl.num_programs(2) - 1)
    def _():
        mask = (lab_ref[...] != -100).astype(jnp.float32)
        nll = (m_sc[...] + jnp.log(l_sc[...]) - t_sc[...]) * mask    # (tt, 1)
        tile_sum = jnp.sum(nll, axis=0, keepdims=True)               # (1, 1)
        o_ref[...] += jnp.broadcast_to(tile_sum, o_ref.shape)


def pallas_lmhead_nll_sum(h, w_lm, labels, *, tt=256, tv=512):
    """h: [C, T, H], w_lm: [H, V], labels: [C, T] (-100 = ignore)
    -> per-candidate summed NLL [C] f32 ('sum' likelihood_reduction)."""
    C, T, H = h.shape
    H2, V = w_lm.shape
    assert H == H2 and labels.shape == (C, T)
    assert V % 128 == 0, "vocab width must be 128-aligned"
    tv = min(tv, V)
    if V % tv:
        tv = 128
    tt = min(tt, _round_up(T, 16))
    Tp = _round_up(T, tt)
    if Tp != T:
        h = jnp.pad(h, ((0, 0), (0, Tp - T), (0, 0)))
        labels = jnp.pad(labels, ((0, 0), (0, Tp - T)), constant_values=-100)
    lab3 = labels.reshape(C, Tp, 1).astype(jnp.int32)

    # TODO(synk): on v5e with modest H the per-vocab-tile weight DMA can be
    # exposed; deepen its pipeline there with pipeline_mode=pl.Buffered(3).
    out = pl.pallas_call(
        _lmhead_nll_kernel,
        out_shape=jax.ShapeDtypeStruct((C, 8, 128), jnp.float32),
        grid_spec=pltpu.PrefetchScalarGridSpec(
            num_scalar_prefetch=0,
            grid=(C, Tp // tt, V // tv),            # vocab (reduction) axis last
            in_specs=[
                _spec((None, tt, H), lambda c, t, v: (c, t, 0),
                      single_buffered=True),
                pl.BlockSpec((H, tv), lambda c, t, v: (0, v)),
                _spec((None, tt, 1), lambda c, t, v: (c, t, 0),
                      single_buffered=True),
            ],
            out_specs=pl.BlockSpec((None, 8, 128), lambda c, t, v: (c, 0, 0)),
            scratch_shapes=[pltpu.VMEM((tt, 1), jnp.float32),
                            pltpu.VMEM((tt, 1), jnp.float32),
                            pltpu.VMEM((tt, 1), jnp.float32)],
        ),
        compiler_params=pltpu.CompilerParams(
            dimension_semantics=("parallel", "arbitrary", "arbitrary"),
            vmem_limit_bytes=_vmem_limit_bytes()),
    )(h.astype(jnp.bfloat16), w_lm.astype(jnp.bfloat16), lab3)
    return out[:, 0, 0]


# -----------------------------------------------------------------------------
# Synthetic LLaVA-likelihood forward (mirrors raw_predict glue)
# -----------------------------------------------------------------------------
def make_params(key, *, vocab, hidden, patch_feat):
    k = jax.random.split(key, 5)
    s = 0.02

    def w(kk, shape):
        return (s * jax.random.normal(kk, shape, jnp.float32)).astype(jnp.bfloat16)

    return {
        "w_patch": w(k[0], (patch_feat, hidden)),
        "w_embed": w(k[1], (vocab, hidden)),
        "w_mlp1": w(k[2], (hidden, 4 * hidden)),
        "w_mlp2": w(k[3], (4 * hidden, hidden)),
        "w_lm": w(k[4], (hidden, vocab)),
    }


def llava_likelihood_forward(params, image, prompt_ids, cand_ids, pad_token_id,
                             patch=8):
    """Returns (neg_likelihood [C], predicted class rank) -- raw_predict() semantics."""
    C = cand_ids.shape[0]
    H = params["w_patch"].shape[1]

    # --- vision tower: patchify the single image ONCE (NCHW), project on MXU,
    #     then broadcast features over candidates (identical rows => no repeat).
    B, Ci, Hh, Ww = image.shape
    gh, gw = Hh // patch, Ww // patch
    n_img = gh * gw
    patches = image.reshape(B, Ci, gh, patch, gw, patch)
    patches = patches.transpose(0, 2, 4, 1, 3, 5).reshape(B * n_img,
                                                          Ci * patch * patch)
    img_feats = pallas_matmul(patches, params["w_patch"])            # [n_img, H]
    img_feats = jnp.broadcast_to(img_feats[None], (C, n_img, H))

    # --- text path (glue identical to raw_predict) ---
    inp = jnp.broadcast_to(prompt_ids, (C, prompt_ids.shape[1]))     # repeat prompt
    full_ids = jnp.concatenate([inp, cand_ids], axis=1)              # [C, Lt]
    cand_targets = jnp.where(cand_ids == pad_token_id, -100, cand_ids)
    targets = jnp.concatenate(
        [jnp.full((C, n_img + inp.shape[1]), -100, jnp.int32), cand_targets],
        axis=1)                                                      # [C, T]

    # TODO(synk): token-embedding gather is left to XLA (no Pallas gather here).
    tok_emb = jnp.take(params["w_embed"], full_ids, axis=0)          # [C, Lt, H]
    hidden = jnp.concatenate([img_feats, tok_emb], axis=1)           # [C, T, H]
    T = hidden.shape[1]

    # --- LM trunk: fused matmul->gelu->matmul->residual kernel (F-tiled) ---
    h2d = pallas_mlp_residual(hidden.reshape(C * T, H),
                              params["w_mlp1"], params["w_mlp2"])    # [C*T, H]

    # --- causal shift folded into the labels (last position masked with -100) ---
    shift_labels = jnp.concatenate(
        [targets[:, 1:], jnp.full((C, 1), -100, jnp.int32)], axis=1)  # [C, T]

    # --- fused LM-head + masked NLL + per-candidate sum ('sum' reduction) ---
    neg_likelihood = pallas_lmhead_nll_sum(h2d.reshape(C, T, H),
                                           params["w_lm"], shift_labels)  # [C]

    # torch.argsort(neg_likelihood, dim=-1)[0].item()
    output_class_rank = jnp.argsort(neg_likelihood)[0]
    return neg_likelihood, output_class_rank


# -----------------------------------------------------------------------------
if __name__ == "__main__":
    key = jax.random.PRNGKey(0)
    k_img, k_prompt, k_cand, k_par = jax.random.split(key, 4)

    VOCAB = 2048      # 128-aligned so the vocab-tiled NLL needs no padding
    HIDDEN = 256      # 256-aligned contraction dims (fills v6e/v7x 256-wide MXU)
    PATCH = 8
    PAD_ID = VOCAB - 1
    N_CAND = 4
    LP = 12           # prompt tokens
    LC = 4            # candidate tokens -> T = 16 img + 12 + 4 = 32, C*T = 128

    # image: NCHW like the PyTorch preprocess output
    image = jax.random.normal(k_img, (1, 3, 32, 32), jnp.float32)
    prompt_ids = jax.random.randint(k_prompt, (1, LP), 0, VOCAB - 1, jnp.int32)
    cand_ids = jax.random.randint(k_cand, (N_CAND, LC), 0, VOCAB - 1, jnp.int32)
    # emulate right-padding of a shorter candidate
    cand_ids = cand_ids.at[1, -1].set(PAD_ID)

    params = make_params(k_par, vocab=VOCAB, hidden=HIDDEN,
                         patch_feat=3 * PATCH * PATCH)

    fwd = jax.jit(functools.partial(llava_likelihood_forward, patch=PATCH))
    nll, pred = fwd(params, image, prompt_ids, cand_ids, PAD_ID)
    jax.block_until_ready((nll, pred))

    assert nll.shape == (N_CAND,)
    assert bool(jnp.all(jnp.isfinite(nll)))
    print("KERNEL_OK")
</pallas_src>

<mosaic_0001>
module attributes {stable_mosaic.version = 11 : i64} {
  func.func @_matmul_kernel(%arg0: i32, %arg1: i32, %arg2: memref<16x256xf32, #tpu.memory_space<vmem>>, %arg3: memref<256x256xbf16, #tpu.memory_space<vmem>>, %arg4: memref<16x256xbf16, #tpu.memory_space<vmem>>, %arg5: memref<16x256xf32, #tpu.memory_space<vmem>>) attributes {dimension_semantics = [#tpu.dimension_semantics<parallel>, #tpu.dimension_semantics<arbitrary>], iteration_bounds = array<i64: 1, 1>, scalar_prefetch = 0 : i64, scratch_operands = 1 : i64, tpu.core_type = #tpu.core_type<tc>, window_params = [{transform_indices = @transform_0, window_bounds = array<i64: 16, 256>}, {transform_indices = @transform_1, window_bounds = array<i64: 256, 256>}, {transform_indices = @transform_2, window_bounds = array<i64: 16, 256>}]} {
    %c0_i32 = arith.constant 0 : i32
    %0 = arith.cmpi eq, %arg1, %c0_i32 : i32
    %1 = arith.extui %0 : i1 to i32
    %c0_i32_0 = arith.constant 0 : i32
    %2 = arith.cmpi ne, %1, %c0_i32_0 : i32
    scf.if %2 {
      %cst_10 = arith.constant 0.000000e+00 : f32
      %13 = vector.broadcast %cst_10 : f32 to vector<16x256xf32>
      %c0_11 = arith.constant 0 : index
      %c0_12 = arith.constant 0 : index
      %14 = vector.load %arg5[%c0_11, %c0_12] : memref<16x256xf32, #tpu.memory_space<vmem>>, vector<16x256xf32>
      tpu.vector_store %arg5[%c0_11, %c0_12], %13 {strides = array<i32>} : memref<16x256xf32, #tpu.memory_space<vmem>>, vector<16x256xf32>,
    } else {
    }
    %c0 = arith.constant 0 : index
    %c0_1 = arith.constant 0 : index
    %3 = vector.load %arg5[%c0, %c0_1] : memref<16x256xf32, #tpu.memory_space<vmem>>, vector<16x256xf32>
    %c0_2 = arith.constant 0 : index
    %c0_3 = arith.constant 0 : index
    %4 = vector.load %arg2[%c0_2, %c0_3] : memref<16x256xf32, #tpu.memory_space<vmem>>, vector<16x256xf32>
    %5 = arith.truncf %4 : vector<16x256xf32> to vector<16x256xbf16>
    %c0_4 = arith.constant 0 : index
    %c0_5 = arith.constant 0 : index
    %6 = vector.load %arg3[%c0_4, %c0_5] : memref<256x256xbf16, #tpu.memory_space<vmem>>, vector<256x256xbf16>
    %cst = arith.constant dense<0.000000e+00> : vector<16x256xf32>
    %7 = tpu.matmul %5, %6, %cst {dimension_numbers = #tpu.dot_dimension_numbers<[1], [0], [0], [1], [0, 0, 1, 1], [], []>} : vector<16x256xbf16>, vector<256x256xbf16>, vector<16x256xf32> -> vector<16x256xf32>
    %8 = arith.addf %3, %7 : vector<16x256xf32>
    %c0_6 = arith.constant 0 : index
    %c0_7 = arith.constant 0 : index
    %9 = vector.load %arg5[%c0_6, %c0_7] : memref<16x256xf32, #tpu.memory_space<vmem>>, vector<16x256xf32>
    tpu.vector_store %arg5[%c0_6, %c0_7], %8 {strides = array<i32>} : memref<16x256xf32, #tpu.memory_space<vmem>>, vector<16x256xf32>,
    %c0_i32_8 = arith.constant 0 : i32
    %10 = arith.cmpi eq, %arg1, %c0_i32_8 : i32
    %11 = arith.extui %10 : i1 to i32
    %c0_i32_9 = arith.constant 0 : i32
    %12 = arith.cmpi ne, %11, %c0_i32_9 : i32
    scf.if %12 {
      %c0_10 = arith.constant 0 : index
      %c0_11 = arith.constant 0 : index
      %13 = vector.load %arg5[%c0_10, %c0_11] : memref<16x256xf32, #tpu.memory_space<vmem>>, vector<16x256xf32>
      %14 = arith.truncf %13 : vector<16x256xf32> to vector<16x256xbf16>
      %c0_12 = arith.constant 0 : index
      %c0_13 = arith.constant 0 : index
      %15 = vector.load %arg4[%c0_12, %c0_13] : memref<16x256xbf16, #tpu.memory_space<vmem>>, vector<16x256xbf16>
      tpu.vector_store %arg4[%c0_12, %c0_13], %14 {strides = array<i32>} : memref<16x256xbf16, #tpu.memory_space<vmem>>, vector<16x256xbf16>,
    } else {
    }
    return
  }
  func.func @transform_0(%arg0: i32, %arg1: i32) -> (i32, i32) {
    %c0_i32 = arith.constant 0 : i32
    %c0_i32_0 = arith.constant 0 : i32
    return %c0_i32, %arg1 : i32, i32
  }
  func.func @transform_1(%arg0: i32, %arg1: i32) -> (i32, i32) {
    %c0_i32 = arith.constant 0 : i32
    return %arg1, %arg0 : i32, i32
  }
  func.func @transform_2(%arg0: i32, %arg1: i32) -> (i32, i32) {
    %c0_i32 = arith.constant 0 : i32
    %c0_i32_0 = arith.constant 0 : i32
    return %c0_i32, %arg0 : i32, i32
  }
}

module attributes {stable_mosaic.version = 11 : i64} {
  func.func @_mlp_kernel(%arg0: i32, %arg1: i32, %arg2: memref<64x256xbf16, #tpu.memory_space<vmem>>, %arg3: memref<256x512xbf16, #tpu.memory_space<vmem>>, %arg4: memref<512x256xbf16, #tpu.memory_space<vmem>>, %arg5: memref<64x256xbf16, #tpu.memory_space<vmem>>, %arg6: memref<64x256xf32, #tpu.memory_space<vmem>>) attributes {dimension_semantics = [#tpu.dimension_semantics<parallel>, #tpu.dimension_semantics<arbitrary>], iteration_bounds = array<i64: 2, 2>, scalar_prefetch = 0 : i64, scratch_operands = 1 : i64, tpu.core_type = #tpu.core_type<tc>, window_params = [{pipeline_mode = #tpu.pipeline_mode<synchronous>, transform_indices = @transform_0, window_bounds = array<i64: 64, 256>}, {transform_indices = @transform_1, window_bounds = array<i64: 256, 512>}, {transform_indices = @transform_2, window_bounds = array<i64: 512, 256>}, {transform_indices = @transform_3, window_bounds = array<i64: 64, 256>}]} {
    %c0_i32 = arith.constant 0 : i32
    %0 = arith.cmpi eq, %arg1, %c0_i32 : i32
    %1 = arith.extui %0 : i1 to i32
    %c0_i32_0 = arith.constant 0 : i32
    %2 = arith.cmpi ne, %1, %c0_i32_0 : i32
    scf.if %2 {
      %c0_16 = arith.constant 0 : index
      %c0_17 = arith.constant 0 : index
      %28 = vector.load %arg2[%c0_16, %c0_17] : memref<64x256xbf16, #tpu.memory_space<vmem>>, vector<64x256xbf16>
      %29 = arith.extf %28 : vector<64x256xbf16> to vector<64x256xf32>
      %c0_18 = arith.constant 0 : index
      %c0_19 = arith.constant 0 : index
      %30 = vector.load %arg6[%c0_18, %c0_19] : memref<64x256xf32, #tpu.memory_space<vmem>>, vector<64x256xf32>
      tpu.vector_store %arg6[%c0_18, %c0_19], %29 {strides = array<i32>} : memref<64x256xf32, #tpu.memory_space<vmem>>, vector<64x256xf32>,
    } else {
    }
    %c0 = arith.constant 0 : index
    %c0_1 = arith.constant 0 : index
    %3 = vector.load %arg2[%c0, %c0_1] : memref<64x256xbf16, #tpu.memory_space<vmem>>, vector<64x256xbf16>
    %c0_2 = arith.constant 0 : index
    %c0_3 = arith.constant 0 : index
    %4 = vector.load %arg3[%c0_2, %c0_3] : memref<256x512xbf16, #tpu.memory_space<vmem>>, vector<256x512xbf16>
    %cst = arith.constant dense<0.000000e+00> : vector<64x512xf32>
    %5 = tpu.matmul %3, %4, %cst {dimension_numbers = #tpu.dot_dimension_numbers<[1], [0], [0], [1], [0, 0, 1, 1], [], []>} : vector<64x256xbf16>, vector<256x512xbf16>, vector<64x512xf32> -> vector<64x512xf32>
    %6 = arith.mulf %5, %5 : vector<64x512xf32>
    %7 = arith.mulf %5, %6 : vector<64x512xf32>
    %cst_4 = arith.constant 4.471500e-02 : f32
    %8 = vector.broadcast %cst_4 : f32 to vector<64x512xf32>
    %9 = arith.mulf %8, %7 : vector<64x512xf32>
    %10 = arith.addf %5, %9 : vector<64x512xf32>
    %cst_5 = arith.constant 0.797884583 : f32
    %11 = vector.broadcast %cst_5 : f32 to vector<64x512xf32>
    %12 = arith.mulf %11, %10 : vector<64x512xf32>
    %13 = math.tanh %12 : vector<64x512xf32>
    %cst_6 = arith.constant 1.000000e+00 : f32
    %14 = vector.broadcast %cst_6 : f32 to vector<64x512xf32>
    %15 = arith.addf %14, %13 : vector<64x512xf32>
    %cst_7 = arith.constant 5.000000e-01 : f32
    %16 = vector.broadcast %cst_7 : f32 to vector<64x512xf32>
    %17 = arith.mulf %16, %15 : vector<64x512xf32>
    %18 = arith.mulf %5, %17 : vector<64x512xf32>
    %c0_8 = arith.constant 0 : index
    %c0_9 = arith.constant 0 : index
    %19 = vector.load %arg6[%c0_8, %c0_9] : memref<64x256xf32, #tpu.memory_space<vmem>>, vector<64x256xf32>
    %20 = arith.truncf %18 : vector<64x512xf32> to vector<64x512xbf16>
    %c0_10 = arith.constant 0 : index
    %c0_11 = arith.constant 0 : index
    %21 = vector.load %arg4[%c0_10, %c0_11] : memref<512x256xbf16, #tpu.memory_space<vmem>>, vector<512x256xbf16>
    %cst_12 = arith.constant dense<0.000000e+00> : vector<64x256xf32>
    %22 = tpu.matmul %20, %21, %cst_12 {dimension_numbers = #tpu.dot_dimension_numbers<[1], [0], [0], [1], [0, 0, 1, 1], [], []>} : vector<64x512xbf16>, vector<512x256xbf16>, vector<64x256xf32> -> vector<64x256xf32>
    %23 = arith.addf %19, %22 : vector<64x256xf32>
    %c0_13 = arith.constant 0 : index
    %c0_14 = arith.constant 0 : index
    %24 = vector.load %arg6[%c0_13, %c0_14] : memref<64x256xf32, #tpu.memory_space<vmem>>, vector<64x256xf32>
    tpu.vector_store %arg6[%c0_13, %c0_14], %23 {strides = array<i32>} : memref<64x256xf32, #tpu.memory_space<vmem>>, vector<64x256xf32>,
    %c1_i32 = arith.constant 1 : i32
    %25 = arith.cmpi eq, %arg1, %c1_i32 : i32
    %26 = arith.extui %25 : i1 to i32
    %c0_i32_15 = arith.constant 0 : i32
    %27 = arith.cmpi ne, %26, %c0_i32_15 : i32
    scf.if %27 {
      %c0_16 = arith.constant 0 : index
      %c0_17 = arith.constant 0 : index
      %28 = vector.load %arg6[%c0_16, %c0_17] : memref<64x256xf32, #tpu.memory_space<vmem>>, vector<64x256xf32>
      %29 = arith.truncf %28 : vector<64x256xf32> to vector<64x256xbf16>
      %c0_18 = arith.constant 0 : index
      %c0_19 = arith.constant 0 : index
      %30 = vector.load %arg5[%c0_18, %c0_19] : memref<64x256xbf16, #tpu.memory_space<vmem>>, vector<64x256xbf16>
      tpu.vector_store %arg5[%c0_18, %c0_19], %29 {strides = array<i32>} : memref<64x256xbf16, #tpu.memory_space<vmem>>, vector<64x256xbf16>,
    } else {
    }
    return
  }
  func.func @transform_0(%arg0: i32, %arg1: i32) -> (i32, i32) {
    %c0_i32 = arith.constant 0 : i32
    %c0_i32_0 = arith.constant 0 : i32
    return %arg0, %c0_i32 : i32, i32
  }
  func.func @transform_1(%arg0: i32, %arg1: i32) -> (i32, i32) {
    %c0_i32 = arith.constant 0 : i32
    %c0_i32_0 = arith.constant 0 : i32
    return %c0_i32, %arg1 : i32, i32
  }
  func.func @transform_2(%arg0: i32, %arg1: i32) -> (i32, i32) {
    %c0_i32 = arith.constant 0 : i32
    %c0_i32_0 = arith.constant 0 : i32
    return %arg1, %c0_i32 : i32, i32
  }
  func.func @transform_3(%arg0: i32, %arg1: i32) -> (i32, i32) {
    %c0_i32 = arith.constant 0 : i32
    %c0_i32_0 = arith.constant 0 : i32
    return %arg0, %c0_i32 : i32, i32
  }
}

module attributes {stable_mosaic.version = 11 : i64} {
  func.func @_lmhead_nll_kernel(%arg0: i32, %arg1: i32, %arg2: i32, %arg3: memref<1x32x256xbf16, #tpu.memory_space<vmem>>, %arg4: memref<256x512xbf16, #tpu.memory_space<vmem>>, %arg5: memref<1x32x1xi32, #tpu.memory_space<vmem>>, %arg6: memref<1x8x128xf32, #tpu.memory_space<vmem>>, %arg7: memref<32x1xf32, #tpu.memory_space<vmem>>, %arg8: memref<32x1xf32, #tpu.memory_space<vmem>>, %arg9: memref<32x1xf32, #tpu.memory_space<vmem>>) attributes {dimension_semantics = [#tpu.dimension_semantics<parallel>, #tpu.dimension_semantics<arbitrary>, #tpu.dimension_semantics<arbitrary>], iteration_bounds = array<i64: 4, 1, 4>, scalar_prefetch = 0 : i64, scratch_operands = 3 : i64, tpu.core_type = #tpu.core_type<tc>, window_params = [{pipeline_mode = #tpu.pipeline_mode<synchronous>, transform_indices = @transform_0, window_bounds = array<i64: 1, 32, 256>}, {transform_indices = @transform_1, window_bounds = array<i64: 256, 512>}, {pipeline_mode = #tpu.pipeline_mode<synchronous>, transform_indices = @transform_2, window_bounds = array<i64: 1, 32, 1>}, {transform_indices = @transform_3, window_bounds = array<i64: 1, 8, 128>}]} {
    %c0_i32 = arith.constant 0 : i32
    %0 = arith.cmpi eq, %arg1, %c0_i32 : i32
    %c0_i32_0 = arith.constant 0 : i32
    %1 = arith.cmpi eq, %arg2, %c0_i32_0 : i32
    %2 = arith.andi %0, %1 : i1
    %3 = arith.extui %2 : i1 to i32
    %c0_i32_1 = arith.constant 0 : i32
    %4 = arith.cmpi ne, %3, %c0_i32_1 : i32
    scf.if %4 {
      %cst_28 = arith.constant 0.000000e+00 : f32
      %46 = vector.broadcast %cst_28 : f32 to vector<8x128xf32>
      %c0_29 = arith.constant 0 : index
      %c0_30 = arith.constant 0 : index
      %c0_31 = arith.constant 0 : index
      %47 = vector.load %arg6[%c0_29, %c0_30, %c0_31] : memref<1x8x128xf32, #tpu.memory_space<vmem>>, vector<1x8x128xf32>
      %48 = vector.shape_cast %47 : vector<1x8x128xf32> to vector<8x128xf32>
      %49 = vector.shape_cast %46 : vector<8x128xf32> to vector<1x8x128xf32>
      tpu.vector_store %arg6[%c0_29, %c0_30, %c0_31], %49 {strides = array<i32>} : memref<1x8x128xf32, #tpu.memory_space<vmem>>, vector<1x8x128xf32>,
    } else {
    }
    %c0_i32_2 = arith.constant 0 : i32
    %5 = arith.cmpi eq, %arg2, %c0_i32_2 : i32
    %6 = arith.extui %5 : i1 to i32
    %c0_i32_3 = arith.constant 0 : i32
    %7 = arith.cmpi ne, %6, %c0_i32_3 : i32
    scf.if %7 {
      %cst_28 = arith.constant 0xFF800000 : f32
      %46 = vector.broadcast %cst_28 : f32 to vector<32x1xf32>
      %c0_29 = arith.constant 0 : index
      %c0_30 = arith.constant 0 : index
      %47 = vector.load %arg7[%c0_29, %c0_30] : memref<32x1xf32, #tpu.memory_space<vmem>>, vector<32x1xf32>
      tpu.vector_store %arg7[%c0_29, %c0_30], %46 {strides = array<i32>} : memref<32x1xf32, #tpu.memory_space<vmem>>, vector<32x1xf32>,
      %cst_31 = arith.constant 0.000000e+00 : f32
      %48 = vector.broadcast %cst_31 : f32 to vector<32x1xf32>
      %c0_32 = arith.constant 0 : index
      %c0_33 = arith.constant 0 : index
      %49 = vector.load %arg8[%c0_32, %c0_33] : memref<32x1xf32, #tpu.memory_space<vmem>>, vector<32x1xf32>
      tpu.vector_store %arg8[%c0_32, %c0_33], %48 {strides = array<i32>} : memref<32x1xf32, #tpu.memory_space<vmem>>, vector<32x1xf32>,
      %cst_34 = arith.constant 0.000000e+00 : f32
      %50 = vector.broadcast %cst_34 : f32 to vector<32x1xf32>
      %c0_35 = arith.constant 0 : index
      %c0_36 = arith.constant 0 : index
      %51 = vector.load %arg9[%c0_35, %c0_36] : memref<32x1xf32, #tpu.memory_space<vmem>>, vector<32x1xf32>
      tpu.vector_store %arg9[%c0_35, %c0_36], %50 {strides = array<i32>} : memref<32x1xf32, #tpu.memory_space<vmem>>, vector<32x1xf32>,
    } else {
    }
    %c0 = arith.constant 0 : index
    %c0_4 = arith.constant 0 : index
    %c0_5 = arith.constant 0 : index
    %8 = vector.load %arg3[%c0, %c0_4, %c0_5] : memref<1x32x256xbf16, #tpu.memory_space<vmem>>, vector<1x32x256xbf16>
    %9 = vector.shape_cast %8 : vector<1x32x256xbf16> to vector<32x256xbf16>
    %c0_6 = arith.constant 0 : index
    %c0_7 = arith.constant 0 : index
    %10 = vector.load %arg4[%c0_6, %c0_7] : memref<256x512xbf16, #tpu.memory_space<vmem>>, vector<256x512xbf16>
    %cst = arith.constant dense<0.000000e+00> : vector<32x512xf32>
    %11 = tpu.matmul %9, %10, %cst {dimension_numbers = #tpu.dot_dimension_numbers<[1], [0], [0], [1], [0, 0, 1, 1], [], []>} : vector<32x256xbf16>, vector<256x512xbf16>, vector<32x512xf32> -> vector<32x512xf32>
    %c0_8 = arith.constant 0 : index
    %c0_9 = arith.constant 0 : index
    %c0_10 = arith.constant 0 : index
    %12 = vector.load %arg5[%c0_8, %c0_9, %c0_10] : memref<1x32x1xi32, #tpu.memory_space<vmem>>, vector<1x32x1xi32>
    %13 = vector.shape_cast %12 : vector<1x32x1xi32> to vector<32x1xi32>
    %c512_i32 = arith.constant 512 : i32
    %14 = arith.muli %arg2, %c512_i32 : i32
    %15 = tpu.iota {dimensions = array<i32: 1>} : vector<32x512xi32>
    %16 = vector.broadcast %14 : i32 to vector<32x512xi32>
    %17 = arith.addi %16, %15 : vector<32x512xi32>
    %c0_11 = arith.constant 0 : index
    %c0_12 = arith.constant 0 : index
    %18 = vector.load %arg9[%c0_11, %c0_12] : memref<32x1xf32, #tpu.memory_space<vmem>>, vector<32x1xf32>
    %19 = vector.broadcast %13 : vector<32x1xi32> to vector<32x512xi32>
    %20 = arith.cmpi eq, %17, %19 : vector<32x512xi32>
    %cst_13 = arith.constant 0.000000e+00 : f32
    %21 = vector.broadcast %cst_13 : f32 to vector<32x512xf32>
    %22 = arith.select %20, %11, %21 : vector<32x512xi1>, vector<32x512xf32>
    %cst_14 = arith.constant dense<0.000000e+00> : vector<32xf32>
    %23 = vector.multi_reduction <add>, %22, %cst_14 [1] : vector<32x512xf32> to vector<32xf32>
    %24 = vector.shape_cast %23 : vector<32xf32> to vector<32x1xf32>
    %25 = arith.addf %18, %24 : vector<32x1xf32>
    %c0_15 = arith.constant 0 : index
    %c0_16 = arith.constant 0 : index
    %26 = vector.load %arg9[%c0_15, %c0_16] : memref<32x1xf32, #tpu.memory_space<vmem>>, vector<32x1xf32>
    tpu.vector_store %arg9[%c0_15, %c0_16], %25 {strides = array<i32>} : memref<32x1xf32, #tpu.memory_space<vmem>>, vector<32x1xf32>,
    %c0_17 = arith.constant 0 : index
    %c0_18 = arith.constant 0 : index
    %27 = vector.load %arg7[%c0_17, %c0_18] : memref<32x1xf32, #tpu.memory_space<vmem>>, vector<32x1xf32>
    %cst_19 = arith.constant dense<0xFF800000> : vector<32xf32>
    %28 = vector.multi_reduction <maximumf>, %11, %cst_19 [1] : vector<32x512xf32> to vector<32xf32>
    %29 = vector.shape_cast %28 : vector<32xf32> to vector<32x1xf32>
    %30 = arith.maximumf %27, %29 : vector<32x1xf32>
    %c0_20 = arith.constant 0 : index
    %c0_21 = arith.constant 0 : index
    %31 = vector.load %arg8[%c0_20, %c0_21] : memref<32x1xf32, #tpu.memory_space<vmem>>, vector<32x1xf32>
    %32 = arith.subf %27, %30 : vector<32x1xf32>
    %33 = math.exp %32 : vector<32x1xf32>
    %34 = arith.mulf %31, %33 : vector<32x1xf32>
    %35 = vector.broadcast %30 : vector<32x1xf32> to vector<32x512xf32>
    %36 = arith.subf %11, %35 : vector<32x512xf32>
    %37 = math.exp %36 : vector<32x512xf32>
    %cst_22 = arith.constant dense<0.000000e+00> : vector<32xf32>
    %38 = vector.multi_reduction <add>, %37, %cst_22 [1] : vector<32x512xf32> to vector<32xf32>
    %39 = vector.shape_cast %38 : vector<32xf32> to vector<32x1xf32>
    %40 = arith.addf %34, %39 : vector<32x1xf32>
    %c0_23 = arith.constant 0 : index
    %c0_24 = arith.constant 0 : index
    %41 = vector.load %arg8[%c0_23, %c0_24] : memref<32x1xf32, #tpu.memory_space<vmem>>, vector<32x1xf32>
    tpu.vector_store %arg8[%c0_23, %c0_24], %40 {strides = array<i32>} : memref<32x1xf32, #tpu.memory_space<vmem>>, vector<32x1xf32>,
    %c0_25 = arith.constant 0 : index
    %c0_26 = arith.constant 0 : index
    %42 = vector.load %arg7[%c0_25, %c0_26] : memref<32x1xf32, #tpu.memory_space<vmem>>, vector<32x1xf32>
    tpu.vector_store %arg7[%c0_25, %c0_26], %30 {strides = array<i32>} : memref<32x1xf32, #tpu.memory_space<vmem>>, vector<32x1xf32>,
    %c3_i32 = arith.constant 3 : i32
    %43 = arith.cmpi eq, %arg2, %c3_i32 : i32
    %44 = arith.extui %43 : i1 to i32
    %c0_i32_27 = arith.constant 0 : i32
    %45 = arith.cmpi ne, %44, %c0_i32_27 : i32
    scf.if %45 {
      %c0_28 = arith.constant 0 : index
      %c0_29 = arith.constant 0 : index
      %c0_30 = arith.constant 0 : index
      %46 = vector.load %arg5[%c0_28, %c0_29, %c0_30] : memref<1x32x1xi32, #tpu.memory_space<vmem>>, vector<1x32x1xi32>
      %47 = vector.shape_cast %46 : vector<1x32x1xi32> to vector<32x1xi32>
      %c-100_i32 = arith.constant -100 : i32
      %48 = vector.broadcast %c-100_i32 : i32 to vector<32x1xi32>
      %49 = arith.cmpi ne, %47, %48 : vector<32x1xi32>
      %50 = arith.extui %49 : vector<32x1xi1> to vector<32x1xi32>
      %51 = arith.sitofp %50 : vector<32x1xi32> to vector<32x1xf32>
      %c0_31 = arith.constant 0 : index
      %c0_32 = arith.constant 0 : index
      %52 = vector.load %arg7[%c0_31, %c0_32] : memref<32x1xf32, #tpu.memory_space<vmem>>, vector<32x1xf32>
      %c0_33 = arith.constant 0 : index
      %c0_34 = arith.constant 0 : index
      %53 = vector.load %arg8[%c0_33, %c0_34] : memref<32x1xf32, #tpu.memory_space<vmem>>, vector<32x1xf32>
      %54 = math.log %53 : vector<32x1xf32>
      %55 = arith.addf %52, %54 : vector<32x1xf32>
      %c0_35 = arith.constant 0 : index
      %c0_36 = arith.constant 0 : index
      %56 = vector.load %arg9[%c0_35, %c0_36] : memref<32x1xf32, #tpu.memory_space<vmem>>, vector<32x1xf32>
      %57 = arith.subf %55, %56 : vector<32x1xf32>
      %58 = arith.mulf %57, %51 : vector<32x1xf32>
      %cst_37 = arith.constant dense<0.000000e+00> : vector<1xf32>
      %59 = vector.multi_reduction <add>, %58, %cst_37 [0] : vector<32x1xf32> to vector<1xf32>
      %60 = vector.shape_cast %59 : vector<1xf32> to vector<1x1xf32>
      %c0_38 = arith.constant 0 : index
      %c0_39 = arith.constant 0 : index
      %c0_40 = arith.constant 0 : index
      %61 = vector.load %arg6[%c0_38, %c0_39, %c0_40] : memref<1x8x128xf32, #tpu.memory_space<vmem>>, vector<1x8x128xf32>
      %62 = vector.shape_cast %61 : vector<1x8x128xf32> to vector<8x128xf32>
      %63 = vector.shape_cast %60 : vector<1x1xf32> to vector<1x1xf32>
      %64 = vector.broadcast %63 : vector<1x1xf32> to vector<8x128xf32>
      %65 = arith.addf %62, %64 : vector<8x128xf32>
      %c0_41 = arith.constant 0 : index
      %c0_42 = arith.constant 0 : index
      %c0_43 = arith.constant 0 : index
      %66 = vector.load %arg6[%c0_41, %c0_42, %c0_43] : memref<1x8x128xf32, #tpu.memory_space<vmem>>, vector<1x8x128xf32>
      %67 = vector.shape_cast %66 : vector<1x8x128xf32> to vector<8x128xf32>
      %68 = vector.shape_cast %65 : vector<8x128xf32> to vector<1x8x128xf32>
      tpu.vector_store %arg6[%c0_41, %c0_42, %c0_43], %68 {strides = array<i32>} : memref<1x8x128xf32, #tpu.memory_space<vmem>>, vector<1x8x128xf32>,
    } else {
    }
    return
  }
  func.func @transform_0(%arg0: i32, %arg1: i32, %arg2: i32) -> (i32, i32, i32) {
    %c0_i32 = arith.constant 0 : i32
    %c0_i32_0 = arith.constant 0 : i32
    return %arg0, %arg1, %c0_i32 : i32, i32, i32
  }
  func.func @transform_1(%arg0: i32, %arg1: i32, %arg2: i32) -> (i32, i32) {
    %c0_i32 = arith.constant 0 : i32
    %c0_i32_0 = arith.constant 0 : i32
    return %c0_i32, %arg2 : i32, i32
  }
  func.func @transform_2(%arg0: i32, %arg1: i32, %arg2: i32) -> (i32, i32, i32) {
    %c0_i32 = arith.constant 0 : i32
    %c0_i32_0 = arith.constant 0 : i32
    return %arg0, %arg1, %c0_i32 : i32, i32, i32
  }
  func.func @transform_3(%arg0: i32, %arg1: i32, %arg2: i32) -> (i32, i32, i32) {
    %c0_i32 = arith.constant 0 : i32
    %c0_i32_0 = arith.constant 0 : i32
    %c0_i32_1 = arith.constant 0 : i32
    return %arg0, %c0_i32, %c0_i32_0 : i32, i32, i32
  }
}

</mosaic_0001>

<llo_original>
// kernel: llava_likelihood_forward.3
$region0: #{llava_likelihood_forward.3}
  #allocation0 [shape = 'u32[]', space=smem, size = 0x4, offset = 0x4, fixed_abs, tag = 'smem constant byte address 0x4 - core index']
  #allocation1 [shape = 'u32[72,128]{1,0:T(1,128)}', space=vmem, size = 0x9000, scoped, tag = 'internal scratch']
  #allocation2 [shape = 'f32[16,256]{1,0:T(8,128)}', space=vmem, size = 0x4000, scoped, tag = 'scratch operand']
  %s0 = inlined_call_operand.vmem [shape: f32[16,256], index: 0, kind: input, shape index: {}]
  %s1 = inlined_call_operand.vmem [shape: bf16[256,256], index: 1, kind: input, shape index: {}]
  %s2 = inlined_call_operand.vmem [shape: bf16[16,256], index: 2, kind: output, shape index: {}]
  %s3 = sld [smem:[#allocation0]]
  $region26: #{llava_likelihood_forward.3} parent=0
    _
  %s5 = ssub.s32 1, %s3
  %s6 = scalar_select 0, %s5, %s3
  // Predicated region
  $region2: #{llava_likelihood_forward.3} parent=0 // pred_check
    _
  $region3: #{llava_likelihood_forward.3} parent=0 // pred_check_branch
    %8 = sbr.rel (0) target = $region5
  $region4: #{llava_likelihood_forward.3} parent=0 // pred_region
    _
  $region5: #{llava_likelihood_forward.3} parent=0 // pred_fallthru
    _
  // Predicated region
  $region6: #{llava_likelihood_forward.3} parent=0 // pred_check
    _
  $region7: #{llava_likelihood_forward.3} parent=0 // pred_check_branch
    %10 = sbr.rel (0) target = $region9
  $region8: #{llava_likelihood_forward.3} parent=0 // pred_region
    _
  $region9: #{llava_likelihood_forward.3} parent=0 // pred_fallthru
    _
  %p11 = scmp.eq.s32.totalorder 0, 0
  // Predicated region
  $region10: #{llava_likelihood_forward.3} parent=0 // pred_check
    %p12 = pneg %p11
  $region11: #{llava_likelihood_forward.3} parent=0 // pred_check_branch
    %14 = sbr.rel (%p12) target = $region13
  $region12: #{llava_likelihood_forward.3} parent=0 // pred_region
    %15 = vst [vmem:[#allocation2] sm:$0xff] 0.0
    %16 = vst [vmem:[#allocation2 + $0x8] sm:$0xff] 0.0
    %17 = vst [vmem:[#allocation2 + $0x10] sm:$0xff] 0.0
    %18 = vst [vmem:[#allocation2 + $0x18] sm:$0xff] 0.0
  $region13: #{llava_likelihood_forward.3} parent=0 // pred_fallthru
    _
  %v19 = vld [vmem:[#allocation2] sm:$0xff]
  %v20 = vld [vmem:[#allocation2 + $0x8] sm:$0xff]
  %v21 = vld [vmem:[#allocation2 + $0x10] sm:$0xff]
  %v22 = vld [vmem:[#allocation2 + $0x18] sm:$0xff]
  %v23 = vld [vmem:[%s0] sm:$0xff]
  %v24 = vld [vmem:[%s0 + $0x8] sm:$0xff]
  %v25 = vld [vmem:[%s0 + $0x10] sm:$0xff]
  %v26 = vld [vmem:[%s0 + $0x18] sm:$0xff]
  %v27 = vpack.c.bf16 %v25, %v23
  %v28 = vpack.c.bf16 %v26, %v24
  %v29 = vld [vmem:[%s1] sm:$0xff]
  %v30 = vld [vmem:[%s1 + $0x8] sm:$0xff]
  %v31 = vld [vmem:[%s1 + $0x10] sm:$0xff]
  %v32 = vld [vmem:[%s1 + $0x18] sm:$0xff]
  %v33 = vld [vmem:[%s1 + $0x20] sm:$0xff]
  %v34 = vld [vmem:[%s1 + $0x28] sm:$0xff]
  %v35 = vld [vmem:[%s1 + $0x30] sm:$0xff]
  %v36 = vld [vmem:[%s1 + $0x38] sm:$0xff]
  %v37 = vld [vmem:[%s1 + $0x40] sm:$0xff]
  %v38 = vld [vmem:[%s1 + $0x48] sm:$0xff]
  %v39 = vld [vmem:[%s1 + $0x50] sm:$0xff]
  %v40 = vld [vmem:[%s1 + $0x58] sm:$0xff]
  %v41 = vld [vmem:[%s1 + $0x60] sm:$0xff]
  %v42 = vld [vmem:[%s1 + $0x68] sm:$0xff]
  %v43 = vld [vmem:[%s1 + $0x70] sm:$0xff]
  %v44 = vld [vmem:[%s1 + $0x78] sm:$0xff]
  %v45 = vld [vmem:[%s1 + $0x80] sm:$0xff]
  %v46 = vld [vmem:[%s1 + $0x88] sm:$0xff]
  %v47 = vld [vmem:[%s1 + $0x90] sm:$0xff]
  %v48 = vld [vmem:[%s1 + $0x98] sm:$0xff]
  %v49 = vld [vmem:[%s1 + $0xa0] sm:$0xff]
  %v50 = vld [vmem:[%s1 + $0xa8] sm:$0xff]
  %v51 = vld [vmem:[%s1 + $0xb0] sm:$0xff]
  %v52 = vld [vmem:[%s1 + $0xb8] sm:$0xff]
  %v53 = vld [vmem:[%s1 + $0xc0] sm:$0xff]
  %v54 = vld [vmem:[%s1 + $0xc8] sm:$0xff]
  %v55 = vld [vmem:[%s1 + $0xd0] sm:$0xff]
  %v56 = vld [vmem:[%s1 + $0xd8] sm:$0xff]
  %v57 = vld [vmem:[%s1 + $0xe0] sm:$0xff]
  %v58 = vld [vmem:[%s1 + $0xe8] sm:$0xff]
  %v59 = vld [vmem:[%s1 + $0xf0] sm:$0xff]
  %v60 = vld [vmem:[%s1 + $0xf8] sm:$0xff]
  %v93 = vunpack.c.l.b16 %v29
  %v94 = vunpack.c.h.b16 %v29
  %v95 = vunpack.c.l.b16 %v30
  %v96 = vunpack.c.h.b16 %v30
  %v97 = vunpack.c.l.b16 %v31
  %v98 = vunpack.c.h.b16 %v31
  %v99 = vunpack.c.l.b16 %v32
  %v100 = vunpack.c.h.b16 %v32
  %v101 = vunpack.c.l.b16 %v33
  %v102 = vunpack.c.h.b16 %v33
  %v103 = vunpack.c.l.b16 %v34
  %v104 = vunpack.c.h.b16 %v34
  %v105 = vunpack.c.l.b16 %v35
  %v106 = vunpack.c.h.b16 %v35
  %v107 = vunpack.c.l.b16 %v36
  %v108 = vunpack.c.h.b16 %v36
  %v109 = vunpack.c.l.b16 %v37
  %v110 = vunpack.c.h.b16 %v37
  %v111 = vunpack.c.l.b16 %v38
  %v112 = vunpack.c.h.b16 %v38
  %v113 = vunpack.c.l.b16 %v39
  %v114 = vunpack.c.h.b16 %v39
  %v115 = vunpack.c.l.b16 %v40
  %v116 = vunpack.c.h.b16 %v40
  %v117 = vunpack.c.l.b16 %v41
  %v118 = vunpack.c.h.b16 %v41
  %v119 = vunpack.c.l.b16 %v42
  %v120 = vunpack.c.h.b16 %v42
  %v121 = vunpack.c.l.b16 %v43
  %v122 = vunpack.c.h.b16 %v43
  %v123 = vunpack.c.l.b16 %v44
  %v124 = vunpack.c.h.b16 %v44
  %v125 = vunpack.c.l.b16 %v45
  %v126 = vunpack.c.h.b16 %v45
  %v127 = vunpack.c.l.b16 %v46
  %v128 = vunpack.c.h.b16 %v46
  %v129 = vunpack.c.l.b16 %v47
  %v130 = vunpack.c.h.b16 %v47
  %v131 = vunpack.c.l.b16 %v48
  %v132 = vunpack.c.h.b16 %v48
  %v133 = vunpack.c.l.b16 %v49
  %v134 = vunpack.c.h.b16 %v49
  %v135 = vunpack.c.l.b16 %v50
  %v136 = vunpack.c.h.b16 %v50
  %v137 = vunpack.c.l.b16 %v51
  %v138 = vunpack.c.h.b16 %v51
  %v139 = vunpack.c.l.b16 %v52
  %v140 = vunpack.c.h.b16 %v52
  %v141 = vunpack.c.l.b16 %v53
  %v142 = vunpack.c.h.b16 %v53
  %v143 = vunpack.c.l.b16 %v54
  %v144 = vunpack.c.h.b16 %v54
  %v145 = vunpack.c.l.b16 %v55
  %v146 = vunpack.c.h.b16 %v55
  %v147 = vunpack.c.l.b16 %v56
  %v148 = vunpack.c.h.b16 %v56
  %v149 = vunpack.c.l.b16 %v57
  %v150 = vunpack.c.h.b16 %v57
  %v151 = vunpack.c.l.b16 %v58
  %v152 = vunpack.c.h.b16 %v58
  %v153 = vunpack.c.l.b16 %v59
  %v154 = vunpack.c.h.b16 %v59
  %v155 = vunpack.c.l.b16 %v60
  %v156 = vunpack.c.h.b16 %v60
  %v157 = vpack.c.b16 %v95, %v93
  %v158 = vpack.c.b16 %v96, %v94
  %v159 = vpack.c.b16 %v99, %v97
  %v160 = vpack.c.b16 %v100, %v98
  %v161 = vpack.c.b16 %v103, %v101
  %v162 = vpack.c.b16 %v104, %v102
  %v163 = vpack.c.b16 %v107, %v105
  %v164 = vpack.c.b16 %v108, %v106
  %v165 = vpack.c.b16 %v111, %v109
  %v166 = vpack.c.b16 %v112, %v110
  %v167 = vpack.c.b16 %v115, %v113
  %v168 = vpack.c.b16 %v116, %v114
  %v169 = vpack.c.b16 %v119, %v117
  %v170 = vpack.c.b16 %v120, %v118
  %v171 = vpack.c.b16 %v123, %v121
  %v172 = vpack.c.b16 %v124, %v122
  %v173 = vpack.c.b16 %v127, %v125
  %v174 = vpack.c.b16 %v128, %v126
  %v175 = vpack.c.b16 %v131, %v129
  %v176 = vpack.c.b16 %v132, %v130
  %v177 = vpack.c.b16 %v135, %v133
  %v178 = vpack.c.b16 %v136, %v134
  %v179 = vpack.c.b16 %v139, %v137
  %v180 = vpack.c.b16 %v140, %v138
  %v181 = vpack.c.b16 %v143, %v141
  %v182 = vpack.c.b16 %v144, %v142
  %v183 = vpack.c.b16 %v147, %v145
  %v184 = vpack.c.b16 %v148, %v146
  %v185 = vpack.c.b16 %v151, %v149
  %v186 = vpack.c.b16 %v152, %v150
  %v187 = vpack.c.b16 %v155, %v153
  %v188 = vpack.c.b16 %v156, %v154
  %221 = vmatpush.bf16.msra.mxu0 %v171
  %222 = vmatpush.bf16.msra.mxu0 %v169
  %223 = vmatpush.bf16.msra.mxu0 %v167
  %224 = vmatpush.bf16.msra.mxu0 %v165
  %225 = vmatpush.bf16.msra.mxu0 %v163
  %226 = vmatpush.bf16.msra.mxu0 %v161
  %227 = vmatpush.bf16.msra.mxu0 %v159
  %228 = vmatpush.bf16.msra.mxu0 %v157
  %229 = vmatmul.bf16.gmra.mxu0 %v27
  %v230 = vpop.f32.mrf.mxu0
  %v231 = vadd.f32 0.0, %v230
  %v232 = vpop.f32.mrf.mxu0
  %v233 = vadd.f32 0.0, %v232
  %234 = vdwg.mxu0
  %235 = vmatpush.bf16.msra.mxu0 %v187
  %236 = vmatpush.bf16.msra.mxu0 %v185
  %237 = vmatpush.bf16.msra.mxu0 %v183
  %238 = vmatpush.bf16.msra.mxu0 %v181
  %239 = vmatpush.bf16.msra.mxu0 %v179
  %240 = vmatpush.bf16.msra.mxu0 %v177
  %241 = vmatpush.bf16.msra.mxu0 %v175
  %242 = vmatpush.bf16.msra.mxu0 %v173
  %243 = vmatmul.bf16.gmra.mxu0 %v28
  %v244 = vpop.f32.mrf.mxu0
  %v245 = vadd.f32 %v231, %v244
  %v246 = vpop.f32.mrf.mxu0
  %v247 = vadd.f32 %v233, %v246
  %248 = vdwg.mxu0
  %249 = vmatpush.bf16.msra.mxu0 %v172
  %250 = vmatpush.bf16.msra.mxu0 %v170
  %251 = vmatpush.bf16.msra.mxu0 %v168
  %252 = vmatpush.bf16.msra.mxu0 %v166
  %253 = vmatpush.bf16.msra.mxu0 %v164
  %254 = vmatpush.bf16.msra.mxu0 %v162
  %255 = vmatpush.bf16.msra.mxu0 %v160
  %256 = vmatpush.bf16.msra.mxu0 %v158
  %257 = vmatmul.bf16.gmra.mxu0 %v27
  %v258 = vpop.f32.mrf.mxu0
  %v259 = vadd.f32 0.0, %v258
  %v260 = vpop.f32.mrf.mxu0
  %v261 = vadd.f32 0.0, %v260
  %262 = vdwg.mxu0
  %263 = vmatpush.bf16.msra.mxu0 %v188
  %264 = vmatpush.bf16.msra.mxu0 %v186
  %265 = vmatpush.bf16.msra.mxu0 %v184
  %266 = vmatpush.bf16.msra.mxu0 %v182
  %267 = vmatpush.bf16.msra.mxu0 %v180
  %268 = vmatpush.bf16.msra.mxu0 %v178
  %269 = vmatpush.bf16.msra.mxu0 %v176
  %270 = vmatpush.bf16.msra.mxu0 %v174
  %271 = vmatmul.bf16.gmra.mxu0 %v28
  %v272 = vpop.f32.mrf.mxu0
  %v273 = vadd.f32 %v259, %v272
  %v274 = vpop.f32.mrf.mxu0
  %v275 = vadd.f32 %v261, %v274
  %276 = vdwg.mxu0
  %v277 = vadd.f32 %v19, %v245
  %v278 = vadd.f32 %v20, %v273
  %v279 = vadd.f32 %v21, %v247
  %v280 = vadd.f32 %v22, %v275
  %281 = vst [vmem:[#allocation2] sm:$0xff] %v277
  %282 = vst [vmem:[#allocation2 + $0x8] sm:$0xff] %v278
  %283 = vst [vmem:[#allocation2 + $0x10] sm:$0xff] %v279
  %284 = vst [vmem:[#allocation2 + $0x18] sm:$0xff] %v280
  // Predicated region
  $region14: #{llava_likelihood_forward.3} parent=0 // pred_check
    %p285 = pneg %p11
  $region15: #{llava_likelihood_forward.3} parent=0 // pred_check_branch
    %287 = sbr.rel (%p285) target = $region17
  $region16: #{llava_likelihood_forward.3} parent=0 // pred_region
    %v288 = vld [vmem:[#allocation2] sm:$0xff]
    %v289 = vld [vmem:[#allocation2 + $0x8] sm:$0xff]
    %v290 = vld [vmem:[#allocation2 + $0x10] sm:$0xff]
    %v291 = vld [vmem:[#allocation2 + $0x18] sm:$0xff]
    %v292 = vpack.c.bf16 %v289, %v288
    %v293 = vpack.c.bf16 %v291, %v290
    %294 = vst [vmem:[%s2] sm:$0xff] %v292
    %295 = vst [vmem:[%s2 + $0x8] sm:$0xff] %v293
  $region17: #{llava_likelihood_forward.3} parent=0 // pred_fallthru
    _
  // Predicated region
  $region18: #{llava_likelihood_forward.3} parent=0 // pred_check
    _
  $region19: #{llava_likelihood_forward.3} parent=0 // pred_check_branch
    %297 = sbr.rel (0) target = $region21
  $region20: #{llava_likelihood_forward.3} parent=0 // pred_region
    _
  $region21: #{llava_likelihood_forward.3} parent=0 // pred_fallthru
    _
  // Predicated region
  $region22: #{llava_likelihood_forward.3} parent=0 // pred_check
    _
  $region23: #{llava_likelihood_forward.3} parent=0 // pred_check_branch
    %299 = sbr.rel (0) target = $region25
  $region24: #{llava_likelihood_forward.3} parent=0 // pred_region
    _
  $region25: #{llava_likelihood_forward.3} parent=0 // pred_fallthru
    _

// kernel: llava_likelihood_forward.5
$region0: #{llava_likelihood_forward.5}
  #allocation0 [shape = 'u32[]', space=smem, size = 0x4, offset = 0x4, fixed_abs, tag = 'smem constant byte address 0x4 - core index']
  #allocation1 [shape = 'u32[72,128]{1,0:T(1,128)}', space=vmem, size = 0x9000, scoped, tag = 'internal scratch']
  #allocation2 [shape = 'f32[32,1]{1,0:T(8,128)}', space=vmem, size = 0x4000, scoped, tag = 'scratch operand']
  #allocation3 [shape = 'f32[32,1]{1,0:T(8,128)}', space=vmem, size = 0x4000, scoped, tag = 'scratch operand']
  #allocation4 [shape = 'f32[32,1]{1,0:T(8,128)}', space=vmem, size = 0x4000, scoped, tag = 'scratch operand']
  %s0 = inlined_call_operand.vmem [shape: bf16[4,32,256], index: 0, kind: input, shape index: {}]
  %s1 = inlined_call_operand.hbm [shape: bf16[256,2048], index: 1, kind: input, shape index: {}]
  %s2 = inlined_call_operand.vmem [shape: s32[4,32,1], index: 2, kind: input, shape index: {}]
  %s3 = inlined_call_operand.vmem [shape: f32[4,8,128], index: 3, kind: output, shape index: {}]
  %s4 = sld [smem:[#allocation0]]
  $region61: #{llava_likelihood_forward.5} parent=0
    _
  %s6 = ssub.s32 1, %s4
  %s7 = scalar_select 0, %s6, %s4
  $region1: #{llava_likelihood_forward.5} parent=0
    #allocation5 [shape = 'u8[524288]{0}', space=vmem, size = 0x80000, scoped, tag = 'input window, operand 1']
    #allocation6 [shape = 's32[2]{0}', space=sflag, size = 0x8, scoped, tag = 'scoped memory for llava_likelihood_forward.5']
    %8 = vsyncpa [#allocation6], 0
    %s9 = scalar_lea.sflag [#allocation6], 1
    %10 = vsyncpa %s9, 0
    loop: start=0, step=1, limit=18
    $region2: #{llava_likelihood_forward.5} parent=1 // loop_pre_header
      _
    $region3: #{llava_likelihood_forward.5} parent=1 // loop_header
      %s12 = sphi 0, %s16
      %p13 = scmp.ge.s32.totalorder %s12, 18
      %s19 = sphi 0, %s38
      %s20 = sphi 0, %s34
      %s21 = sphi 0, %s30
      %s22 = sphi 0, %s19
      %s23 = sphi 0, %s20
      %s24 = sphi 0, %s21
      %s25 = sphi 0, %s22
      %s26 = sphi 0, %s23
      %s27 = sphi 0, %s24
      %s43 = sphi 0, %s45
      %s46 = sphi 0, %s43
      %s47 = sphi 0, %s46
      %s63 = sphi 0, %s47
      %s69 = sphi 0, %s71
      %s72 = sphi 0, %s69
      %s73 = sphi 0, %s72
      %s89 = sphi 0, %s73
      %s97 = sphi 0, %s99
      %s100 = sphi 0, %s97
      %s101 = sphi 0, %s100
      %s117 = sphi 0, %s101
      %s123 = sphi 0, %s125
      %s126 = sphi 0, %s123
      %s127 = sphi 0, %s126
      %s143 = sphi 0, %s127
    $region4: #{llava_likelihood_forward.5} parent=1 // loop_header_branch
      %15 = sbr.rel (%p13) target = $region8
    $region5: #{llava_likelihood_forward.5} parent=1 // loop_body
      %s17 = ssub.s32 %s12, 1
      %s18 = ssub.s32 %s12, 2
      %s28 = sadd.s32 1, %s21
      %p29 = scmp.ge.s32.totalorder %s28, 4
      %s30 = scalar_select %p29, 0, %s28
      %s31 = sadd.s32 1, %s20
      %s32 = scalar_select %p29, %s31, %s20
      %p33 = scmp.ge.s32.totalorder %s32, 1
      %s34 = scalar_select %p33, 0, %s32
      %s35 = sadd.s32 1, %s19
      %s36 = scalar_select %p33, %s35, %s19
      %p37 = scmp.ge.s32.totalorder %s36, 4
      %s38 = scalar_select %p37, 0, %s36
      %s39 = ssub.s32 %s19, %s38
      %s40 = ssub.s32 %s20, %s34
      %s41 = sor.u32 %s39, %s40
      %p42 = scmp.eq.s32.totalorder %s41, 0
      %s44 = sadd.s32 %s43, 1
      %s45 = scalar_select %p42, %s43, %s44
      %p48 = pneg %p42
      %p49 = scmp.eq.s32.totalorder %s12, 15
      %p50 = por %p48, %p49
      %p51 = scmp.ne.s32.totalorder %s43, %s46
      %p52 = scmp.eq.s32.totalorder %s12, 0
      %p53 = por %p51, %p52
      %p54 = scmp.ne.s32.totalorder %s43, %s46
      %p55 = scmp.eq.s32.totalorder %s17, 15
      %p56 = por %p54, %p55
      %p57 = scmp.ne.s32.totalorder %s46, %s47
      %p58 = scmp.eq.s32.totalorder %s17, 0
      %p59 = por %p57, %p58
      %p60 = scmp.ne.s32.totalorder %s46, %s47
      %p61 = scmp.eq.s32.totalorder %s18, 15
      %p62 = por %p60, %p61
      %p64 = scmp.ne.s32.totalorder %s47, %s63
      %p65 = scmp.eq.s32.totalorder %s18, 0
      %p66 = por %p64, %p65
      %s67 = ssub.s32 %s21, %s30
      %p68 = scmp.eq.s32.totalorder %s67, 0
      %s70 = sadd.s32 %s69, 1
      %s71 = scalar_select %p68, %s69, %s70
      %p74 = pneg %p68
      %p75 = scmp.eq.s32.totalorder %s12, 15
      %p76 = por %p74, %p75
      %p77 = scmp.ne.s32.totalorder %s69, %s72
      %p78 = scmp.eq.s32.totalorder %s12, 0
      %p79 = por %p77, %p78
      %p80 = scmp.ne.s32.totalorder %s69, %s72
      %p81 = scmp.eq.s32.totalorder %s17, 15
      %p82 = por %p80, %p81
      %p83 = scmp.ne.s32.totalorder %s72, %s73
      %p84 = scmp.eq.s32.totalorder %s17, 0
      %p85 = por %p83, %p84
      %p86 = scmp.ne.s32.totalorder %s72, %s73
      %p87 = scmp.eq.s32.totalorder %s18, 15
      %p88 = por %p86, %p87
      %p90 = scmp.ne.s32.totalorder %s73, %s89
      %p91 = scmp.eq.s32.totalorder %s18, 0
      %p92 = por %p90, %p91
      %s93 = ssub.s32 %s19, %s38
      %s94 = ssub.s32 %s20, %s34
      %s95 = sor.u32 %s93, %s94
      %p96 = scmp.eq.s32.totalorder %s95, 0
      %s98 = sadd.s32 %s97, 1
      %s99 = scalar_select %p96, %s97, %s98
      %p102 = pneg %p96
      %p103 = scmp.eq.s32.totalorder %s12, 15
      %p104 = por %p102, %p103
      %p105 = scmp.ne.s32.totalorder %s97, %s100
      %p106 = scmp.eq.s32.totalorder %s12, 0
      %p107 = por %p105, %p106
      %p108 = scmp.ne.s32.totalorder %s97, %s100
      %p109 = scmp.eq.s32.totalorder %s17, 15
      %p110 = por %p108, %p109
      %p111 = scmp.ne.s32.totalorder %s100, %s101
      %p112 = scmp.eq.s32.totalorder %s17, 0
      %p113 = por %p111, %p112
      %p114 = scmp.ne.s32.totalorder %s100, %s101
      %p115 = scmp.eq.s32.totalorder %s18, 15
      %p116 = por %p114, %p115
      %p118 = scmp.ne.s32.totalorder %s101, %s117
      %p119 = scmp.eq.s32.totalorder %s18, 0
      %p120 = por %p118, %p119
      %s121 = ssub.s32 %s19, %s38
      %p122 = scmp.eq.s32.totalorder %s121, 0
      %s124 = sadd.s32 %s123, 1
      %s125 = scalar_select %p122, %s123, %s124
      %p128 = pneg %p122
      %p129 = scmp.eq.s32.totalorder %s12, 15
      %p130 = por %p128, %p129
      %p131 = scmp.ne.s32.totalorder %s123, %s126
      %p132 = scmp.eq.s32.totalorder %s12, 0
      %p133 = por %p131, %p132
      %p134 = scmp.ne.s32.totalorder %s123, %s126
      %p135 = scmp.eq.s32.totalorder %s17, 15
      %p136 = por %p134, %p135
      %p137 = scmp.ne.s32.totalorder %s126, %s127
      %p138 = scmp.eq.s32.totalorder %s17, 0
      %p139 = por %p137, %p138
      %p140 = scmp.ne.s32.totalorder %s126, %s127
      %p141 = scmp.eq.s32.totalorder %s18, 15
      %p142 = por %p140, %p141
      %p144 = scmp.ne.s32.totalorder %s127, %s143
      %p145 = scmp.eq.s32.totalorder %s18, 0
      %p146 = por %p144, %p145
      %p147 = scmp.le.s32.totalorder 1, %s12
      %p148 = scmp.lt.s32.totalorder %s12, 17
      %p149 = pnand %p147, %p148
      %p150 = pneg %p149
      // Predicated region
      $region9: #{llava_likelihood_forward.5} parent=5 // pred_check
        _
      $region10: #{llava_likelihood_forward.5} parent=5 // pred_check_branch
        %152 = sbr.rel (%p149) target = $region12
      $region11: #{llava_likelihood_forward.5} parent=5 // pred_region
        %s153 = ssub.s32 %s12, 1
        // Predicated region
        $region13: #{llava_likelihood_forward.5} parent=11 // pred_check
          %p154 = pneg %p59
        $region14: #{llava_likelihood_forward.5} parent=11 // pred_check_branch
          %156 = sbr.rel (%p154) target = $region16
        $region15: #{llava_likelihood_forward.5} parent=11 // pred_region
          %s157 = smul.u32 4, %s23
          %p158 = scmp.lt.s32.totalorder %s22, 3
          %s159 = scalar_select %p158, %s22, 3
          %p160 = scmp.lt.s32.totalorder %s157, 3
          %s161 = scalar_select %p160, %s157, 3
          %s162 = smul.addr %s161, 2
          %s163 = smul.addr %s159, 8
          %s164 = sadd.s32 %s162, %s163
          %s165 = smul.addr %s164, 4
          %s166 = scalar_lea.vmem %s0, %s165
          %s167 = smul.u32 4, %s23
        $region16: #{llava_likelihood_forward.5} parent=11 // pred_fallthru
          _
        // Predicated region
        $region17: #{llava_likelihood_forward.5} parent=11 // pred_check
          %p168 = pneg %p113
        $region18: #{llava_likelihood_forward.5} parent=11 // pred_check_branch
          %170 = sbr.rel (%p168) target = $region20
        $region19: #{llava_likelihood_forward.5} parent=11 // pred_region
          %s171 = smul.u32 4, %s23
          %p172 = scmp.lt.s32.totalorder %s22, 3
          %s173 = scalar_select %p172, %s22, 3
          %p174 = scmp.lt.s32.totalorder %s171, 3
          %s175 = scalar_select %p174, %s171, 3
          %s176 = smul.addr %s173, 4
          %s177 = sadd.s32 %s175, %s176
          %s178 = smul.addr %s177, 8
          %s179 = scalar_lea.vmem %s2, %s178
          %s180 = smul.u32 4, %s23
        $region20: #{llava_likelihood_forward.5} parent=11 // pred_fallthru
          _
      $region12: #{llava_likelihood_forward.5} parent=5 // pred_fallthru
        _
      %p181 = scmp.lt.s32.totalorder %s12, 16
      // Predicated region
      $region21: #{llava_likelihood_forward.5} parent=5 // pred_check
        %p182 = pneg %p181
      $region22: #{llava_likelihood_forward.5} parent=5 // pred_check_branch
        %184 = sbr.rel (%p182) target = $region24
      $region23: #{llava_likelihood_forward.5} parent=5 // pred_region
        // Predicated region
        $region25: #{llava_likelihood_forward.5} parent=23 // pred_check
          %p185 = pneg %p79
        $region26: #{llava_likelihood_forward.5} parent=23 // pred_check_branch
          %187 = sbr.rel (%p185) target = $region28
        $region27: #{llava_likelihood_forward.5} parent=23 // pred_region
          %s188 = sand.u32 %s69, 1
          %s189 = scalar_lea.sflag [#allocation6], %s188
          %s190 = sand.u32 %s69, 1
          %s191 = smul.addr %s190, 512
          %s192 = scalar_lea.vmem [#allocation5], %s191
          %s193 = smul.u32 4, %s21
          %195 = vsyncadd %s189, 0
          %s196 = smul.addr %s193, 4
          %s197 = scalar_lea.hbm %s1, %s196
          %s198 = sshll.u32 %s197, 4
          %s199 = int_to_ptr.hbm [resolvable:$true] %s198
          %s200 = sshll.u32 %s192, 4
          %s201 = int_to_ptr.vmem [resolvable:$true] %s200
          %206 = dma.hbm_to_vmem [thread:$0]  %s199, 8192, %s201, %s189, 1024, 256, 16
        $region28: #{llava_likelihood_forward.5} parent=23 // pred_fallthru
          _
      $region24: #{llava_likelihood_forward.5} parent=5 // pred_fallthru
        _
      %p207 = scmp.le.s32.totalorder 1, %s12
      %p208 = scmp.lt.s32.totalorder %s12, 17
      %p209 = pnand %p207, %p208
      %p210 = pneg %p209
      // Predicated region
      $region29: #{llava_likelihood_forward.5} parent=5 // pred_check
        _
      $region30: #{llava_likelihood_forward.5} parent=5 // pred_check_branch
        %212 = sbr.rel (%p209) target = $region32
      $region31: #{llava_likelihood_forward.5} parent=5 // pred_region
        %s213 = ssub.s32 %s12, 1
        %s214 = sand.u32 %s72, 1
        %s215 = scalar_lea.sflag [#allocation6], %s214
        %s216 = sand.u32 %s72, 1
        %s217 = smul.addr %s216, 512
        %s218 = scalar_lea.vmem [#allocation5], %s217
        // Predicated region
        $region33: #{llava_likelihood_forward.5} parent=31 // pred_check
          %p219 = pneg %p85
        $region34: #{llava_likelihood_forward.5} parent=31 // pred_check_branch
          %221 = sbr.rel (%p219) target = $region36
        $region35: #{llava_likelihood_forward.5} parent=31 // pred_region
          %223 = dma.done %s215, 8192
        $region36: #{llava_likelihood_forward.5} parent=31 // pred_fallthru
          _
        %s224 = smul.u32 4, %s23
        %p225 = scmp.lt.s32.totalorder %s22, 3
        %s226 = scalar_select %p225, %s22, 3
        %p227 = scmp.lt.s32.totalorder %s224, 3
        %s228 = scalar_select %p227, %s224, 3
        %s229 = smul.addr %s228, 2
        %s230 = smul.addr %s226, 8
        %s231 = sadd.s32 %s229, %s230
        %s232 = smul.addr %s231, 4
        %s233 = scalar_lea.vmem %s0, %s232
        %p234 = pneg %p59
        %p235 = pneg %p56
        %s236 = sand.u32 %s72, 1
        %s237 = scalar_lea.sflag [#allocation6], %s236
        %s238 = sand.u32 %s72, 1
        %s239 = smul.addr %s238, 512
        %s240 = scalar_lea.vmem [#allocation5], %s239
        %p241 = pneg %p85
        %p242 = pneg %p82
        %s243 = smul.u32 4, %s23
        %p244 = scmp.lt.s32.totalorder %s22, 3
        %s245 = scalar_select %p244, %s22, 3
        %p246 = scmp.lt.s32.totalorder %s243, 3
        %s247 = scalar_select %p246, %s243, 3
        %s248 = smul.addr %s245, 4
        %s249 = sadd.s32 %s247, %s248
        %s250 = smul.addr %s249, 8
        %s251 = scalar_lea.vmem %s2, %s250
        %p252 = pneg %p113
        %p253 = pneg %p110
        %p254 = pneg %p139
        %p255 = pneg %p136
        %p256 = scmp.lt.s32.totalorder %s22, 3
        %s257 = scalar_select %p256, %s22, 3
        %s258 = smul.addr %s257, 8
        %s259 = scalar_lea.vmem %s3, %s258
        %s260 = smul.u32 4, %s23
        %p261 = scmp.lt.s32.totalorder %s22, 3
        %s262 = scalar_select %p261, %s22, 3
        %p263 = scmp.lt.s32.totalorder %s260, 3
        %s264 = scalar_select %p263, %s260, 3
        %s265 = smul.addr %s264, 2
        %s266 = smul.addr %s262, 8
        %s267 = sadd.s32 %s265, %s266
        %s268 = smul.addr %s267, 4
        %s269 = scalar_lea.vmem %s0, %s268
        %s270 = smul.u32 4, %s23
        %s271 = smul.u32 4, %s24
        %s272 = smul.u32 4, %s23
        %p273 = scmp.lt.s32.totalorder %s22, 3
        %s274 = scalar_select %p273, %s22, 3
        %p275 = scmp.lt.s32.totalorder %s272, 3
        %s276 = scalar_select %p275, %s272, 3
        %s277 = smul.addr %s274, 4
        %s278 = sadd.s32 %s276, %s277
        %s279 = smul.addr %s278, 8
        %s280 = scalar_lea.vmem %s2, %s279
        %s281 = smul.u32 4, %s23
        %p282 = scmp.lt.s32.totalorder %s22, 3
        %s283 = scalar_select %p282, %s22, 3
        %s284 = smul.addr %s283, 8
        %s285 = scalar_lea.vmem %s3, %s284
        %p286 = scmp.eq.s32.totalorder %s23, 0
        %p287 = scmp.eq.s32.totalorder %s24, 0
        %p288 = pnand %p286, %p287
        %p289 = pneg %p288
        // Predicated region
        $region37: #{llava_likelihood_forward.5} parent=31 // pred_check
          _
        $region38: #{llava_likelihood_forward.5} parent=31 // pred_check_branch
          %291 = sbr.rel (%p288) target = $region40
        $region39: #{llava_likelihood_forward.5} parent=31 // pred_region
          %292 = vst [vmem:[%s285] sm:$0xff] 0.0
        $region40: #{llava_likelihood_forward.5} parent=31 // pred_fallthru
          _
        // Predicated region
        $region41: #{llava_likelihood_forward.5} parent=31 // pred_check
          %p293 = pneg %p287
        $region42: #{llava_likelihood_forward.5} parent=31 // pred_check_branch
          %295 = sbr.rel (%p293) target = $region44
        $region43: #{llava_likelihood_forward.5} parent=31 // pred_region
          %vm296 = vcmask 7168
          %297 = vst.msk [vmem:[#allocation2] sm:$0xff] %vm296, -inf
          %298 = vst.msk [vmem:[#allocation2 + $0x8] sm:$0xff] %vm296, -inf
          %299 = vst.msk [vmem:[#allocation2 + $0x10] sm:$0xff] %vm296, -inf
          %300 = vst.msk [vmem:[#allocation2 + $0x18] sm:$0xff] %vm296, -inf
          %301 = vst.msk [vmem:[#allocation3] sm:$0xff] %vm296, 0.0
          %302 = vst.msk [vmem:[#allocation3 + $0x8] sm:$0xff] %vm296, 0.0
          %303 = vst.msk [vmem:[#allocation3 + $0x10] sm:$0xff] %vm296, 0.0
          %304 = vst.msk [vmem:[#allocation3 + $0x18] sm:$0xff] %vm296, 0.0
          %305 = vst.msk [vmem:[#allocation4] sm:$0xff] %vm296, 0.0
          %306 = vst.msk [vmem:[#allocation4 + $0x8] sm:$0xff] %vm296, 0.0
          %307 = vst.msk [vmem:[#allocation4 + $0x10] sm:$0xff] %vm296, 0.0
          %308 = vst.msk [vmem:[#allocation4 + $0x18] sm:$0xff] %vm296, 0.0
        $region44: #{llava_likelihood_forward.5} parent=31 // pred_fallthru
          _
        %v309 = vld [vmem:[%s269] sm:$0xff]
        %v310 = vld [vmem:[%s269 + $0x8] sm:$0xff]
        %v311 = vld [vmem:[%s269 + $0x10] sm:$0xff]
        %v312 = vld [vmem:[%s269 + $0x18] sm:$0xff]
        %v313 = vld [vmem:[%s218] sm:$0xff]
        %v314 = vld [vmem:[%s218 + $0x8] sm:$0xff]
        %v315 = vld [vmem:[%s218 + $0x10] sm:$0xff]
        %v316 = vld [vmem:[%s218 + $0x18] sm:$0xff]
        %v317 = vld [vmem:[%s218 + $0x20] sm:$0xff]
        %v318 = vld [vmem:[%s218 + $0x28] sm:$0xff]
        %v319 = vld [vmem:[%s218 + $0x30] sm:$0xff]
        %v320 = vld [vmem:[%s218 + $0x38] sm:$0xff]
        %v321 = vld [vmem:[%s218 + $0x40] sm:$0xff]
        %v322 = vld [vmem:[%s218 + $0x48] sm:$0xff]
        %v323 = vld [vmem:[%s218 + $0x50] sm:$0xff]
        %v324 = vld [vmem:[%s218 + $0x58] sm:$0xff]
        %v325 = vld [vmem:[%s218 + $0x60] sm:$0xff]
        %v326 = vld [vmem:[%s218 + $0x68] sm:$0xff]
        %v327 = vld [vmem:[%s218 + $0x70] sm:$0xff]
        %v328 = vld [vmem:[%s218 + $0x78] sm:$0xff]
        %v329 = vld [vmem:[%s218 + $0x80] sm:$0xff]
        %v330 = vld [vmem:[%s218 + $0x88] sm:$0xff]
        %v331 = vld [vmem:[%s218 + $0x90] sm:$0xff]
        %v332 = vld [vmem:[%s218 + $0x98] sm:$0xff]
        %v333 = vld [vmem:[%s218 + $0xa0] sm:$0xff]
        %v334 = vld [vmem:[%s218 + $0xa8] sm:$0xff]
        %v335 = vld [vmem:[%s218 + $0xb0] sm:$0xff]
        %v336 = vld [vmem:[%s218 + $0xb8] sm:$0xff]
        %v337 = vld [vmem:[%s218 + $0xc0] sm:$0xff]
        %v338 = vld [vmem:[%s218 + $0xc8] sm:$0xff]
        %v339 = vld [vmem:[%s218 + $0xd0] sm:$0xff]
        %v340 = vld [vmem:[%s218 + $0xd8] sm:$0xff]
        %v341 = vld [vmem:[%s218 + $0xe0] sm:$0xff]
        %v342 = vld [vmem:[%s218 + $0xe8] sm:$0xff]
        %v343 = vld [vmem:[%s218 + $0xf0] sm:$0xff]
        %v344 = vld [vmem:[%s218 + $0xf8] sm:$0xff]
        %v345 = vld [vmem:[%s218 + $0x100] sm:$0xff]
        %v346 = vld [vmem:[%s218 + $0x108] sm:$0xff]
        %v347 = vld [vmem:[%s218 + $0x110] sm:$0xff]
        %v348 = vld [vmem:[%s218 + $0x118] sm:$0xff]
        %v349 = vld [vmem:[%s218 + $0x120] sm:$0xff]
        %v350 = vld [vmem:[%s218 + $0x128] sm:$0xff]
        %v351 = vld [vmem:[%s218 + $0x130] sm:$0xff]
        %v352 = vld [vmem:[%s218 + $0x138] sm:$0xff]
        %v353 = vld [vmem:[%s218 + $0x140] sm:$0xff]
        %v354 = vld [vmem:[%s218 + $0x148] sm:$0xff]
        %v355 = vld [vmem:[%s218 + $0x150] sm:$0xff]
        %v356 = vld [vmem:[%s218 + $0x158] sm:$0xff]
        %v357 = vld [vmem:[%s218 + $0x160] sm:$0xff]
        %v358 = vld [vmem:[%s218 + $0x168] sm:$0xff]
        %v359 = vld [vmem:[%s218 + $0x170] sm:$0xff]
        %v360 = vld [vmem:[%s218 + $0x178] sm:$0xff]
        %v361 = vld [vmem:[%s218 + $0x180] sm:$0xff]
        %v362 = vld [vmem:[%s218 + $0x188] sm:$0xff]
        %v363 = vld [vmem:[%s218 + $0x190] sm:$0xff]
        %v364 = vld [vmem:[%s218 + $0x198] sm:$0xff]
        %v365 = vld [vmem:[%s218 + $0x1a0] sm:$0xff]
        %v366 = vld [vmem:[%s218 + $0x1a8] sm:$0xff]
        %v367 = vld [vmem:[%s218 + $0x1b0] sm:$0xff]
        %v368 = vld [vmem:[%s218 + $0x1b8] sm:$0xff]
        %v369 = vld [vmem:[%s218 + $0x1c0] sm:$0xff]
        %v370 = vld [vmem:[%s218 + $0x1c8] sm:$0xff]
        %v371 = vld [vmem:[%s218 + $0x1d0] sm:$0xff]
        %v372 = vld [vmem:[%s218 + $0x1d8] sm:$0xff]
        %v373 = vld [vmem:[%s218 + $0x1e0] sm:$0xff]
        %v374 = vld [vmem:[%s218 + $0x1e8] sm:$0xff]
        %v375 = vld [vmem:[%s218 + $0x1f0] sm:$0xff]
        %v376 = vld [vmem:[%s218 + $0x1f8] sm:$0xff]
        %v381 = vunpack.c.l.b16 %v309
        %v382 = vunpack.c.h.b16 %v309
        %v383 = vunpack.c.l.b16 %v310
        %v384 = vunpack.c.h.b16 %v310
        %v385 = vunpack.c.l.b16 %v311
        %v386 = vunpack.c.h.b16 %v311
        %v387 = vunpack.c.l.b16 %v312
        %v388 = vunpack.c.h.b16 %v312
        %v389 = vpack.c.b16 %v383, %v381
        %v390 = vpack.c.b16 %v384, %v382
        %v391 = vpack.c.b16 %v387, %v385
        %v392 = vpack.c.b16 %v388, %v386
        %v461 = vunpack.c.l.b16 %v313
        %v462 = vunpack.c.h.b16 %v313
        %v463 = vunpack.c.l.b16 %v314
        %v464 = vunpack.c.h.b16 %v314
        %v465 = vunpack.c.l.b16 %v315
        %v466 = vunpack.c.h.b16 %v315
        %v467 = vunpack.c.l.b16 %v316
        %v468 = vunpack.c.h.b16 %v316
        %v469 = vunpack.c.l.b16 %v317
        %v470 = vunpack.c.h.b16 %v317
        %v471 = vunpack.c.l.b16 %v318
        %v472 = vunpack.c.h.b16 %v318
        %v473 = vunpack.c.l.b16 %v319
        %v474 = vunpack.c.h.b16 %v319
        %v475 = vunpack.c.l.b16 %v320
        %v476 = vunpack.c.h.b16 %v320
        %v477 = vunpack.c.l.b16 %v321
        %v478 = vunpack.c.h.b16 %v321
        %v479 = vunpack.c.l.b16 %v322
        %v480 = vunpack.c.h.b16 %v322
        %v481 = vunpack.c.l.b16 %v323
        %v482 = vunpack.c.h.b16 %v323
        %v483 = vunpack.c.l.b16 %v324
        %v484 = vunpack.c.h.b16 %v324
        %v485 = vunpack.c.l.b16 %v325
        %v486 = vunpack.c.h.b16 %v325
        %v487 = vunpack.c.l.b16 %v326
        %v488 = vunpack.c.h.b16 %v326
        %v489 = vunpack.c.l.b16 %v327
        %v490 = vunpack.c.h.b16 %v327
        %v491 = vunpack.c.l.b16 %v328
        %v492 = vunpack.c.h.b16 %v328
        %v493 = vunpack.c.l.b16 %v329
        %v494 = vunpack.c.h.b16 %v329
        %v495 = vunpack.c.l.b16 %v330
        %v496 = vunpack.c.h.b16 %v330
        %v497 = vunpack.c.l.b16 %v331
        %v498 = vunpack.c.h.b16 %v331
        %v499 = vunpack.c.l.b16 %v332
        %v500 = vunpack.c.h.b16 %v332
        %v501 = vunpack.c.l.b16 %v333
        %v502 = vunpack.c.h.b16 %v333
        %v503 = vunpack.c.l.b16 %v334
        %v504 = vunpack.c.h.b16 %v334
        %v505 = vunpack.c.l.b16 %v335
        %v506 = vunpack.c.h.b16 %v335
        %v507 = vunpack.c.l.b16 %v336
        %v508 = vunpack.c.h.b16 %v336
        %v509 = vunpack.c.l.b16 %v337
        %v510 = vunpack.c.h.b16 %v337
        %v511 = vunpack.c.l.b16 %v338
        %v512 = vunpack.c.h.b16 %v338
        %v513 = vunpack.c.l.b16 %v339
        %v514 = vunpack.c.h.b16 %v339
        %v515 = vunpack.c.l.b16 %v340
        %v516 = vunpack.c.h.b16 %v340
        %v517 = vunpack.c.l.b16 %v341
        %v518 = vunpack.c.h.b16 %v341
        %v519 = vunpack.c.l.b16 %v342
        %v520 = vunpack.c.h.b16 %v342
        %v521 = vunpack.c.l.b16 %v343
        %v522 = vunpack.c.h.b16 %v343
        %v523 = vunpack.c.l.b16 %v344
        %v524 = vunpack.c.h.b16 %v344
        %v525 = vunpack.c.l.b16 %v345
        %v526 = vunpack.c.h.b16 %v345
        %v527 = vunpack.c.l.b16 %v346
        %v528 = vunpack.c.h.b16 %v346
        %v529 = vunpack.c.l.b16 %v347
        %v530 = vunpack.c.h.b16 %v347
        %v531 = vunpack.c.l.b16 %v348
        %v532 = vunpack.c.h.b16 %v348
        %v533 = vunpack.c.l.b16 %v349
        %v534 = vunpack.c.h.b16 %v349
        %v535 = vunpack.c.l.b16 %v350
        %v536 = vunpack.c.h.b16 %v350
        %v537 = vunpack.c.l.b16 %v351
        %v538 = vunpack.c.h.b16 %v351
        %v539 = vunpack.c.l.b16 %v352
        %v540 = vunpack.c.h.b16 %v352
        %v541 = vunpack.c.l.b16 %v353
        %v542 = vunpack.c.h.b16 %v353
        %v543 = vunpack.c.l.b16 %v354
        %v544 = vunpack.c.h.b16 %v354
        %v545 = vunpack.c.l.b16 %v355
        %v546 = vunpack.c.h.b16 %v355
        %v547 = vunpack.c.l.b16 %v356
        %v548 = vunpack.c.h.b16 %v356
        %v549 = vunpack.c.l.b16 %v357
        %v550 = vunpack.c.h.b16 %v357
        %v551 = vunpack.c.l.b16 %v358
        %v552 = vunpack.c.h.b16 %v358
        %v553 = vunpack.c.l.b16 %v359
        %v554 = vunpack.c.h.b16 %v359
        %v555 = vunpack.c.l.b16 %v360
        %v556 = vunpack.c.h.b16 %v360
        %v557 = vunpack.c.l.b16 %v361
        %v558 = vunpack.c.h.b16 %v361
        %v559 = vunpack.c.l.b16 %v362
        %v560 = vunpack.c.h.b16 %v362
        %v561 = vunpack.c.l.b16 %v363
        %v562 = vunpack.c.h.b16 %v363
        %v563 = vunpack.c.l.b16 %v364
        %v564 = vunpack.c.h.b16 %v364
        %v565 = vunpack.c.l.b16 %v365
        %v566 = vunpack.c.h.b16 %v365
        %v567 = vunpack.c.l.b16 %v366
        %v568 = vunpack.c.h.b16 %v366
        %v569 = vunpack.c.l.b16 %v367
        %v570 = vunpack.c.h.b16 %v367
        %v571 = vunpack.c.l.b16 %v368
        %v572 = vunpack.c.h.b16 %v368
        %v573 = vunpack.c.l.b16 %v369
        %v574 = vunpack.c.h.b16 %v369
        %v575 = vunpack.c.l.b16 %v370
        %v576 = vunpack.c.h.b16 %v370
        %v577 = vunpack.c.l.b16 %v371
        %v578 = vunpack.c.h.b16 %v371
        %v579 = vunpack.c.l.b16 %v372
        %v580 = vunpack.c.h.b16 %v372
        %v581 = vunpack.c.l.b16 %v373
        %v582 = vunpack.c.h.b16 %v373
        %v583 = vunpack.c.l.b16 %v374
        %v584 = vunpack.c.h.b16 %v374
        %v585 = vunpack.c.l.b16 %v375
        %v586 = vunpack.c.h.b16 %v375
        %v587 = vunpack.c.l.b16 %v376
        %v588 = vunpack.c.h.b16 %v376
        %v589 = vpack.c.b16 %v465, %v461
        %v590 = vpack.c.b16 %v466, %v462
        %v591 = vpack.c.b16 %v467, %v463
        %v592 = vpack.c.b16 %v468, %v464
        %v593 = vpack.c.b16 %v473, %v469
        %v594 = vpack.c.b16 %v474, %v470
        %v595 = vpack.c.b16 %v475, %v471
        %v596 = vpack.c.b16 %v476, %v472
        %v597 = vpack.c.b16 %v481, %v477
        %v598 = vpack.c.b16 %v482, %v478
        %v599 = vpack.c.b16 %v483, %v479
        %v600 = vpack.c.b16 %v484, %v480
        %v601 = vpack.c.b16 %v489, %v485
        %v602 = vpack.c.b16 %v490, %v486
        %v603 = vpack.c.b16 %v491, %v487
        %v604 = vpack.c.b16 %v492, %v488
        %v605 = vpack.c.b16 %v497, %v493
        %v606 = vpack.c.b16 %v498, %v494
        %v607 = vpack.c.b16 %v499, %v495
        %v608 = vpack.c.b16 %v500, %v496
        %v609 = vpack.c.b16 %v505, %v501
        %v610 = vpack.c.b16 %v506, %v502
        %v611 = vpack.c.b16 %v507, %v503
        %v612 = vpack.c.b16 %v508, %v504
        %v613 = vpack.c.b16 %v513, %v509
        %v614 = vpack.c.b16 %v514, %v510
        %v615 = vpack.c.b16 %v515, %v511
        %v616 = vpack.c.b16 %v516, %v512
        %v617 = vpack.c.b16 %v521, %v517
        %v618 = vpack.c.b16 %v522, %v518
        %v619 = vpack.c.b16 %v523, %v519
        %v620 = vpack.c.b16 %v524, %v520
        %v621 = vpack.c.b16 %v529, %v525
        %v622 = vpack.c.b16 %v530, %v526
        %v623 = vpack.c.b16 %v531, %v527
        %v624 = vpack.c.b16 %v532, %v528
        %v625 = vpack.c.b16 %v537, %v533
        %v626 = vpack.c.b16 %v538, %v534
        %v627 = vpack.c.b16 %v539, %v535
        %v628 = vpack.c.b16 %v540, %v536
        %v629 = vpack.c.b16 %v545, %v541
        %v630 = vpack.c.b16 %v546, %v542
        %v631 = vpack.c.b16 %v547, %v543
        %v632 = vpack.c.b16 %v548, %v544
        %v633 = vpack.c.b16 %v553, %v549
        %v634 = vpack.c.b16 %v554, %v550
        %v635 = vpack.c.b16 %v555, %v551
        %v636 = vpack.c.b16 %v556, %v552
        %v637 = vpack.c.b16 %v561, %v557
        %v638 = vpack.c.b16 %v562, %v558
        %v639 = vpack.c.b16 %v563, %v559
        %v640 = vpack.c.b16 %v564, %v560
        %v641 = vpack.c.b16 %v569, %v565
        %v642 = vpack.c.b16 %v570, %v566
        %v643 = vpack.c.b16 %v571, %v567
        %v644 = vpack.c.b16 %v572, %v568
        %v645 = vpack.c.b16 %v577, %v573
        %v646 = vpack.c.b16 %v578, %v574
        %v647 = vpack.c.b16 %v579, %v575
        %v648 = vpack.c.b16 %v580, %v576
        %v649 = vpack.c.b16 %v585, %v581
        %v650 = vpack.c.b16 %v586, %v582
        %v651 = vpack.c.b16 %v587, %v583
        %v652 = vpack.c.b16 %v588, %v584
        %717 = vmatpush.bf16.msra.mxu0 %v617
        %718 = vmatpush.bf16.msra.mxu0 %v613
        %719 = vmatpush.bf16.msra.mxu0 %v609
        %720 = vmatpush.bf16.msra.mxu0 %v605
        %721 = vmatpush.bf16.msra.mxu0 %v601
        %722 = vmatpush.bf16.msra.mxu0 %v597
        %723 = vmatpush.bf16.msra.mxu0 %v593
        %724 = vmatpush.bf16.msra.mxu0 %v589
        %725 = vmatmul.bf16.gmra.mxu0 %v389
        %v726 = vpop.f32.mrf.mxu0
        %v727 = vadd.f32 0.0, %v726
        %v728 = vpop.f32.mrf.mxu0
        %v729 = vadd.f32 0.0, %v728
        %730 = vmatmul.bf16.gmra.mxu0 %v391
        %v731 = vpop.f32.mrf.mxu0
        %v732 = vadd.f32 0.0, %v731
        %v733 = vpop.f32.mrf.mxu0
        %v734 = vadd.f32 0.0, %v733
        %735 = vdwg.mxu0
        %736 = vmatpush.bf16.msra.mxu0 %v649
        %737 = vmatpush.bf16.msra.mxu0 %v645
        %738 = vmatpush.bf16.msra.mxu0 %v641
        %739 = vmatpush.bf16.msra.mxu0 %v637
        %740 = vmatpush.bf16.msra.mxu0 %v633
        %741 = vmatpush.bf16.msra.mxu0 %v629
        %742 = vmatpush.bf16.msra.mxu0 %v625
        %743 = vmatpush.bf16.msra.mxu0 %v621
        %744 = vmatmul.bf16.gmra.mxu0 %v390
        %v745 = vpop.f32.mrf.mxu0
        %v746 = vadd.f32 %v727, %v745
        %v747 = vpop.f32.mrf.mxu0
        %v748 = vadd.f32 %v729, %v747
        %749 = vmatmul.bf16.gmra.mxu0 %v392
        %v750 = vpop.f32.mrf.mxu0
        %v751 = vadd.f32 %v732, %v750
        %v752 = vpop.f32.mrf.mxu0
        %v753 = vadd.f32 %v734, %v752
        %754 = vdwg.mxu0
        %755 = vmatpush.bf16.msra.mxu0 %v618
        %756 = vmatpush.bf16.msra.mxu0 %v614
        %757 = vmatpush.bf16.msra.mxu0 %v610
        %758 = vmatpush.bf16.msra.mxu0 %v606
        %759 = vmatpush.bf16.msra.mxu0 %v602
        %760 = vmatpush.bf16.msra.mxu0 %v598
        %761 = vmatpush.bf16.msra.mxu0 %v594
        %762 = vmatpush.bf16.msra.mxu0 %v590
        %763 = vmatmul.bf16.gmra.mxu0 %v389
        %v764 = vpop.f32.mrf.mxu0
        %v765 = vadd.f32 0.0, %v764
        %v766 = vpop.f32.mrf.mxu0
        %v767 = vadd.f32 0.0, %v766
        %768 = vmatmul.bf16.gmra.mxu0 %v391
        %v769 = vpop.f32.mrf.mxu0
        %v770 = vadd.f32 0.0, %v769
        %v771 = vpop.f32.mrf.mxu0
        %v772 = vadd.f32 0.0, %v771
        %773 = vdwg.mxu0
        %774 = vmatpush.bf16.msra.mxu0 %v650
        %775 = vmatpush.bf16.msra.mxu0 %v646
        %776 = vmatpush.bf16.msra.mxu0 %v642
        %777 = vmatpush.bf16.msra.mxu0 %v638
        %778 = vmatpush.bf16.msra.mxu0 %v634
        %779 = vmatpush.bf16.msra.mxu0 %v630
        %780 = vmatpush.bf16.msra.mxu0 %v626
        %781 = vmatpush.bf16.msra.mxu0 %v622
        %782 = vmatmul.bf16.gmra.mxu0 %v390
        %v783 = vpop.f32.mrf.mxu0
        %v784 = vadd.f32 %v765, %v783
        %v785 = vpop.f32.mrf.mxu0
        %v786 = vadd.f32 %v767, %v785
        %787 = vmatmul.bf16.gmra.mxu0 %v392
        %v788 = vpop.f32.mrf.mxu0
        %v789 = vadd.f32 %v770, %v788
        %v790 = vpop.f32.mrf.mxu0
        %v791 = vadd.f32 %v772, %v790
        %792 = vdwg.mxu0
        %793 = vmatpush.bf16.msra.mxu0 %v619
        %794 = vmatpush.bf16.msra.mxu0 %v615
        %795 = vmatpush.bf16.msra.mxu0 %v611
        %796 = vmatpush.bf16.msra.mxu0 %v607
        %797 = vmatpush.bf16.msra.mxu0 %v603
        %798 = vmatpush.bf16.msra.mxu0 %v599
        %799 = vmatpush.bf16.msra.mxu0 %v595
        %800 = vmatpush.bf16.msra.mxu0 %v591
        %801 = vmatmul.bf16.gmra.mxu0 %v389
        %v802 = vpop.f32.mrf.mxu0
        %v803 = vadd.f32 0.0, %v802
        %v804 = vpop.f32.mrf.mxu0
        %v805 = vadd.f32 0.0, %v804
        %806 = vmatmul.bf16.gmra.mxu0 %v391
        %v807 = vpop.f32.mrf.mxu0
        %v808 = vadd.f32 0.0, %v807
        %v809 = vpop.f32.mrf.mxu0
        %v810 = vadd.f32 0.0, %v809
        %811 = vdwg.mxu0
        %812 = vmatpush.bf16.msra.mxu0 %v651
        %813 = vmatpush.bf16.msra.mxu0 %v647
        %814 = vmatpush.bf16.msra.mxu0 %v643
        %815 = vmatpush.bf16.msra.mxu0 %v639
        %816 = vmatpush.bf16.msra.mxu0 %v635
        %817 = vmatpush.bf16.msra.mxu0 %v631
        %818 = vmatpush.bf16.msra.mxu0 %v627
        %819 = vmatpush.bf16.msra.mxu0 %v623
        %820 = vmatmul.bf16.gmra.mxu0 %v390
        %v821 = vpop.f32.mrf.mxu0
        %v822 = vadd.f32 %v803, %v821
        %v823 = vpop.f32.mrf.mxu0
        %v824 = vadd.f32 %v805, %v823
        %825 = vmatmul.bf16.gmra.mxu0 %v392
        %v826 = vpop.f32.mrf.mxu0
        %v827 = vadd.f32 %v808, %v826
        %v828 = vpop.f32.mrf.mxu0
        %v829 = vadd.f32 %v810, %v828
        %830 = vdwg.mxu0
        %831 = vmatpush.bf16.msra.mxu0 %v620
        %832 = vmatpush.bf16.msra.mxu0 %v616
        %833 = vmatpush.bf16.msra.mxu0 %v612
        %834 = vmatpush.bf16.msra.mxu0 %v608
        %835 = vmatpush.bf16.msra.mxu0 %v604
        %836 = vmatpush.bf16.msra.mxu0 %v600
        %837 = vmatpush.bf16.msra.mxu0 %v596
        %838 = vmatpush.bf16.msra.mxu0 %v592
        %839 = vmatmul.bf16.gmra.mxu0 %v389
        %v840 = vpop.f32.mrf.mxu0
        %v841 = vadd.f32 0.0, %v840
        %v842 = vpop.f32.mrf.mxu0
        %v843 = vadd.f32 0.0, %v842
        %844 = vmatmul.bf16.gmra.mxu0 %v391
        %v845 = vpop.f32.mrf.mxu0
        %v846 = vadd.f32 0.0, %v845
        %v847 = vpop.f32.mrf.mxu0
        %v848 = vadd.f32 0.0, %v847
        %849 = vdwg.mxu0
        %850 = vmatpush.bf16.msra.mxu0 %v652
        %851 = vmatpush.bf16.msra.mxu0 %v648
        %852 = vmatpush.bf16.msra.mxu0 %v644
        %853 = vmatpush.bf16.msra.mxu0 %v640
        %854 = vmatpush.bf16.msra.mxu0 %v636
        %855 = vmatpush.bf16.msra.mxu0 %v632
        %856 = vmatpush.bf16.msra.mxu0 %v628
        %857 = vmatpush.bf16.msra.mxu0 %v624
        %858 = vmatmul.bf16.gmra.mxu0 %v390
        %v859 = vpop.f32.mrf.mxu0
        %v860 = vadd.f32 %v841, %v859
        %v861 = vpop.f32.mrf.mxu0
        %v862 = vadd.f32 %v843, %v861
        %863 = vmatmul.bf16.gmra.mxu0 %v392
        %v864 = vpop.f32.mrf.mxu0
        %v865 = vadd.f32 %v846, %v864
        %v866 = vpop.f32.mrf.mxu0
        %v867 = vadd.f32 %v848, %v866
        %868 = vdwg.mxu0
        %v869 = vld [vmem:[%s280] sm:$0xff]
        %v870 = vld [vmem:[%s280 + $0x8] sm:$0xff]
        %v871 = vld [vmem:[%s280 + $0x10] sm:$0xff]
        %v872 = vld [vmem:[%s280 + $0x18] sm:$0xff]
        %s873 = smul.u32 %s24, 512
        %v874 = vlaneseq
        %v875 = vand.u32 %v874, 127
        %v876 = vadd.s32 %v875, 128
        %v877 = vadd.s32 %v875, 256
        %v878 = vadd.s32 %v875, 384
        %v879 = vstv %s873
        %v880 = vadd.s32 %v879, %v875
        %v881 = vadd.s32 %v879, %v876
        %v882 = vadd.s32 %v879, %v877
        %v883 = vadd.s32 %v879, %v878
        %v884 = vld [vmem:[#allocation4] sm:$0xff]
        %v885 = vld [vmem:[#allocation4 + $0x8] sm:$0xff]
        %v886 = vld [vmem:[#allocation4 + $0x10] sm:$0xff]
        %v887 = vld [vmem:[#allocation4 + $0x18] sm:$0xff]
        %888 = vset.pattern.permute.xlu0 0
        %889 = vperm.xlu0 %888, %v869
        %v890 = vpop.permute.xlu0 %889
        %891 = vset.pattern.permute.xlu0 0
        %892 = vperm.xlu0 %891, %v870
        %v893 = vpop.permute.xlu0 %892
        %894 = vset.pattern.permute.xlu0 0
        %895 = vperm.xlu0 %894, %v871
        %v896 = vpop.permute.xlu0 %895
        %897 = vset.pattern.permute.xlu0 0
        %898 = vperm.xlu0 %897, %v872
        %v899 = vpop.permute.xlu0 %898
        %vm900 = vcmp.eq.s32.totalorder %v880, %v890
        %vm901 = vcmp.eq.s32.totalorder %v881, %v890
        %vm902 = vcmp.eq.s32.totalorder %v882, %v890
        %vm903 = vcmp.eq.s32.totalorder %v883, %v890
        %vm904 = vcmp.eq.s32.totalorder %v880, %v893
        %vm905 = vcmp.eq.s32.totalorder %v881, %v893
        %vm906 = vcmp.eq.s32.totalorder %v882, %v893
        %vm907 = vcmp.eq.s32.totalorder %v883, %v893
        %vm908 = vcmp.eq.s32.totalorder %v880, %v896
        %vm909 = vcmp.eq.s32.totalorder %v881, %v896
        %vm910 = vcmp.eq.s32.totalorder %v882, %v896
        %vm911 = vcmp.eq.s32.totalorder %v883, %v896
        %vm912 = vcmp.eq.s32.totalorder %v880, %v899
        %vm913 = vcmp.eq.s32.totalorder %v881, %v899
        %vm914 = vcmp.eq.s32.totalorder %v882, %v899
        %vm915 = vcmp.eq.s32.totalorder %v883, %v899
        %v916 = vsel %vm900, %v746, 0.0
        %v917 = vsel %vm901, %v784, 0.0
        %v918 = vsel %vm902, %v822, 0.0
        %v919 = vsel %vm903, %v860, 0.0
        %v920 = vsel %vm904, %v748, 0.0
        %v921 = vsel %vm905, %v786, 0.0
        %v922 = vsel %vm906, %v824, 0.0
        %v923 = vsel %vm907, %v862, 0.0
        %v924 = vsel %vm908, %v751, 0.0
        %v925 = vsel %vm909, %v789, 0.0
        %v926 = vsel %vm910, %v827, 0.0
        %v927 = vsel %vm911, %v865, 0.0
        %v928 = vsel %vm912, %v753, 0.0
        %v929 = vsel %vm913, %v791, 0.0
        %v930 = vsel %vm914, %v829, 0.0
        %v931 = vsel %vm915, %v867, 0.0
        %v932 = vadd.f32 %v916, %v917
        %v933 = vadd.f32 %v932, %v918
        %v934 = vadd.f32 %v933, %v919
        %935 = vadd.xlane.f32.xlu0 %v934
        %v936 = vpop.xlane.xlu0 %935
        %v937 = vadd.f32 %v920, %v921
        %v938 = vadd.f32 %v937, %v922
        %v939 = vadd.f32 %v938, %v923
        %940 = vadd.xlane.f32.xlu0 %v939
        %v941 = vpop.xlane.xlu0 %940
        %v942 = vadd.f32 %v924, %v925
        %v943 = vadd.f32 %v942, %v926
        %v944 = vadd.f32 %v943, %v927
        %945 = vadd.xlane.f32.xlu0 %v944
        %v946 = vpop.xlane.xlu0 %945
        %v947 = vadd.f32 %v928, %v929
        %v948 = vadd.f32 %v947, %v930
        %v949 = vadd.f32 %v948, %v931
        %950 = vadd.xlane.f32.xlu0 %v949
        %v951 = vpop.xlane.xlu0 %950
        %v952 = vadd.f32 %v884, %v936
        %v953 = vadd.f32 %v885, %v941
        %v954 = vadd.f32 %v886, %v946
        %v955 = vadd.f32 %v887, %v951
        %vm956 = vcmask 7168
        %957 = vst.msk [vmem:[#allocation4] sm:$0xff] %vm956, %v952
        %958 = vst.msk [vmem:[#allocation4 + $0x8] sm:$0xff] %vm956, %v953
        %959 = vst.msk [vmem:[#allocation4 + $0x10] sm:$0xff] %vm956, %v954
        %960 = vst.msk [vmem:[#allocation4 + $0x18] sm:$0xff] %vm956, %v955
        %v961 = vld [vmem:[#allocation2] sm:$0xff]
        %v962 = vld [vmem:[#allocation2 + $0x8] sm:$0xff]
        %v963 = vld [vmem:[#allocation2 + $0x10] sm:$0xff]
        %v964 = vld [vmem:[#allocation2 + $0x18] sm:$0xff]
        %v965 = vmax.f32 %v746, %v784
        %v966 = vmax.f32 %v965, %v822
        %v967 = vmax.f32 %v966, %v860
        %968 = vmax.xlane.f32.xlu0 %v967
        %v969 = vpop.xlane.xlu0 %968
        %v970 = vmax.f32 %v748, %v786
        %v971 = vmax.f32 %v970, %v824
        %v972 = vmax.f32 %v971, %v862
        %973 = vmax.xlane.f32.xlu0 %v972
        %v974 = vpop.xlane.xlu0 %973
        %v975 = vmax.f32 %v751, %v789
        %v976 = vmax.f32 %v975, %v827
        %v977 = vmax.f32 %v976, %v865
        %978 = vmax.xlane.f32.xlu0 %v977
        %v979 = vpop.xlane.xlu0 %978
        %v980 = vmax.f32 %v753, %v791
        %v981 = vmax.f32 %v980, %v829
        %v982 = vmax.f32 %v981, %v867
        %983 = vmax.xlane.f32.xlu0 %v982
        %v984 = vpop.xlane.xlu0 %983
        %v985 = vmax.f32 %v961, %v969
        %v986 = vmax.f32 %v962, %v974
        %v987 = vmax.f32 %v963, %v979
        %v988 = vmax.f32 %v964, %v984
        %v989 = vld [vmem:[#allocation3] sm:$0xff]
        %v990 = vld [vmem:[#allocation3 + $0x8] sm:$0xff]
        %v991 = vld [vmem:[#allocation3 + $0x10] sm:$0xff]
        %v992 = vld [vmem:[#allocation3 + $0x18] sm:$0xff]
        %v993 = vsub.f32 %v961, %v985
        %v994 = vsub.f32 %v962, %v986
        %v995 = vsub.f32 %v963, %v987
        %v996 = vsub.f32 %v964, %v988
        %v997 = vmul.f32 %v993, 1.442695
        %v998 = vpow.pop %v997
        %v999 = vmul.f32 %v994, 1.442695
        %v1000 = vpow.pop %v999
        %v1001 = vmul.f32 %v995, 1.442695
        %v1002 = vpow.pop %v1001
        %v1003 = vmul.f32 %v996, 1.442695
        %v1004 = vpow.pop %v1003
        %v1005 = vmul.f32 %v989, %v998
        %v1006 = vmul.f32 %v990, %v1000
        %v1007 = vmul.f32 %v991, %v1002
        %v1008 = vmul.f32 %v992, %v1004
        %1010 = vset.pattern.permute.xlu0 0
        %1011 = vperm.xlu0 %1010, %v985
        %v1012 = vpop.permute.xlu0 %1011
        %1015 = vset.pattern.permute.xlu0 0
        %1016 = vperm.xlu0 %1015, %v986
        %v1017 = vpop.permute.xlu0 %1016
        %1020 = vset.pattern.permute.xlu0 0
        %1021 = vperm.xlu0 %1020, %v987
        %v1022 = vpop.permute.xlu0 %1021
        %1025 = vset.pattern.permute.xlu0 0
        %1026 = vperm.xlu0 %1025, %v988
        %v1027 = vpop.permute.xlu0 %1026
        %v1029 = vsub.f32 %v746, %v1012
        %v1030 = vsub.f32 %v784, %v1012
        %v1031 = vsub.f32 %v822, %v1012
        %v1032 = vsub.f32 %v860, %v1012
        %v1033 = vsub.f32 %v748, %v1017
        %v1034 = vsub.f32 %v786, %v1017
        %v1035 = vsub.f32 %v824, %v1017
        %v1036 = vsub.f32 %v862, %v1017
        %v1037 = vsub.f32 %v751, %v1022
        %v1038 = vsub.f32 %v789, %v1022
        %v1039 = vsub.f32 %v827, %v1022
        %v1040 = vsub.f32 %v865, %v1022
        %v1041 = vsub.f32 %v753, %v1027
        %v1042 = vsub.f32 %v791, %v1027
        %v1043 = vsub.f32 %v829, %v1027
        %v1044 = vsub.f32 %v867, %v1027
        %v1045 = vmul.f32 %v1029, 1.442695
        %v1046 = vpow.pop %v1045
        %v1047 = vmul.f32 %v1030, 1.442695
        %v1048 = vpow.pop %v1047
        %v1049 = vmul.f32 %v1031, 1.442695
        %v1050 = vpow.pop %v1049
        %v1051 = vmul.f32 %v1032, 1.442695
        %v1052 = vpow.pop %v1051
        %v1053 = vmul.f32 %v1033, 1.442695
        %v1054 = vpow.pop %v1053
        %v1055 = vmul.f32 %v1034, 1.442695
        %v1056 = vpow.pop %v1055
        %v1057 = vmul.f32 %v1035, 1.442695
        %v1058 = vpow.pop %v1057
        %v1059 = vmul.f32 %v1036, 1.442695
        %v1060 = vpow.pop %v1059
        %v1061 = vmul.f32 %v1037, 1.442695
        %v1062 = vpow.pop %v1061
        %v1063 = vmul.f32 %v1038, 1.442695
        %v1064 = vpow.pop %v1063
        %v1065 = vmul.f32 %v1039, 1.442695
        %v1066 = vpow.pop %v1065
        %v1067 = vmul.f32 %v1040, 1.442695
        %v1068 = vpow.pop %v1067
        %v1069 = vmul.f32 %v1041, 1.442695
        %v1070 = vpow.pop %v1069
        %v1071 = vmul.f32 %v1042, 1.442695
        %v1072 = vpow.pop %v1071
        %v1073 = vmul.f32 %v1043, 1.442695
        %v1074 = vpow.pop %v1073
        %v1075 = vmul.f32 %v1044, 1.442695
        %v1076 = vpow.pop %v1075
        %v1077 = vadd.f32 %v1046, %v1048
        %v1078 = vadd.f32 %v1077, %v1050
        %v1079 = vadd.f32 %v1078, %v1052
        %1080 = vadd.xlane.f32.xlu0 %v1079
        %v1081 = vpop.xlane.xlu0 %1080
        %v1082 = vadd.f32 %v1054, %v1056
        %v1083 = vadd.f32 %v1082, %v1058
        %v1084 = vadd.f32 %v1083, %v1060
        %1085 = vadd.xlane.f32.xlu0 %v1084
        %v1086 = vpop.xlane.xlu0 %1085
        %v1087 = vadd.f32 %v1062, %v1064
        %v1088 = vadd.f32 %v1087, %v1066
        %v1089 = vadd.f32 %v1088, %v1068
        %1090 = vadd.xlane.f32.xlu0 %v1089
        %v1091 = vpop.xlane.xlu0 %1090
        %v1092 = vadd.f32 %v1070, %v1072
        %v1093 = vadd.f32 %v1092, %v1074
        %v1094 = vadd.f32 %v1093, %v1076
        %1095 = vadd.xlane.f32.xlu0 %v1094
        %v1096 = vpop.xlane.xlu0 %1095
        %v1097 = vadd.f32 %v1005, %v1081
        %v1098 = vadd.f32 %v1006, %v1086
        %v1099 = vadd.f32 %v1007, %v1091
        %v1100 = vadd.f32 %v1008, %v1096
        %1101 = vst.msk [vmem:[#allocation3] sm:$0xff] %vm956, %v1097
        %1102 = vst.msk [vmem:[#allocation3 + $0x8] sm:$0xff] %vm956, %v1098
        %1103 = vst.msk [vmem:[#allocation3 + $0x10] sm:$0xff] %vm956, %v1099
        %1104 = vst.msk [vmem:[#allocation3 + $0x18] sm:$0xff] %vm956, %v1100
        %1105 = vst.msk [vmem:[#allocation2] sm:$0xff] %vm956, %v985
        %1106 = vst.msk [vmem:[#allocation2 + $0x8] sm:$0xff] %vm956, %v986
        %1107 = vst.msk [vmem:[#allocation2 + $0x10] sm:$0xff] %vm956, %v987
        %1108 = vst.msk [vmem:[#allocation2 + $0x18] sm:$0xff] %vm956, %v988
        %p1109 = scmp.eq.s32.totalorder %s24, 3
        // Predicated region
        $region45: #{llava_likelihood_forward.5} parent=31 // pred_check
          %p1110 = pneg %p1109
        $region46: #{llava_likelihood_forward.5} parent=31 // pred_check_branch
          %1112 = sbr.rel (%p1110) target = $region48
        $region47: #{llava_likelihood_forward.5} parent=31 // pred_region
          %v1113 = vld [vmem:[%s280] sm:$0xff]
          %v1114 = vld [vmem:[%s280 + $0x8] sm:$0xff]
          %v1115 = vld [vmem:[%s280 + $0x10] sm:$0xff]
          %v1116 = vld [vmem:[%s280 + $0x18] sm:$0xff]
          %vm1117 = vcmp.ne.s32.totalorder %v1113, 4294967196
          %vm1118 = vcmp.ne.s32.totalorder %v1114, 4294967196
          %vm1119 = vcmp.ne.s32.totalorder %v1115, 4294967196
          %vm1120 = vcmp.ne.s32.totalorder %v1116, 4294967196
          %v1121 = vsel %vm1117, 1, 0
          %v1122 = vsel %vm1118, 1, 0
          %v1123 = vsel %vm1119, 1, 0
          %v1124 = vsel %vm1120, 1, 0
          %v1125 = vcvt.s32.f32 %v1121
          %v1126 = vcvt.s32.f32 %v1122
          %v1127 = vcvt.s32.f32 %v1123
          %v1128 = vcvt.s32.f32 %v1124
          %v1129 = vld [vmem:[#allocation2] sm:$0xff]
          %v1130 = vld [vmem:[#allocation2 + $0x8] sm:$0xff]
          %v1131 = vld [vmem:[#allocation2 + $0x10] sm:$0xff]
          %v1132 = vld [vmem:[#allocation2 + $0x18] sm:$0xff]
          %v1133 = vld [vmem:[#allocation3] sm:$0xff]
          %v1134 = vld [vmem:[#allocation3 + $0x8] sm:$0xff]
          %v1135 = vld [vmem:[#allocation3 + $0x10] sm:$0xff]
          %v1136 = vld [vmem:[#allocation3 + $0x18] sm:$0xff]
          %v1137 = vlog2.pop %v1133
          %v1138 = vmul.f32 %v1137, 0.6931472
          %v1139 = vlog2.pop %v1134
          %v1140 = vmul.f32 %v1139, 0.6931472
          %v1141 = vlog2.pop %v1135
          %v1142 = vmul.f32 %v1141, 0.6931472
          %v1143 = vlog2.pop %v1136
          %v1144 = vmul.f32 %v1143, 0.6931472
          %v1145 = vadd.f32 %v1129, %v1138
          %v1146 = vadd.f32 %v1130, %v1140
          %v1147 = vadd.f32 %v1131, %v1142
          %v1148 = vadd.f32 %v1132, %v1144
          %v1149 = vld [vmem:[#allocation4] sm:$0xff]
          %v1150 = vld [vmem:[#allocation4 + $0x8] sm:$0xff]
          %v1151 = vld [vmem:[#allocation4 + $0x10] sm:$0xff]
          %v1152 = vld [vmem:[#allocation4 + $0x18] sm:$0xff]
          %v1153 = vsub.f32 %v1145, %v1149
          %v1154 = vsub.f32 %v1146, %v1150
          %v1155 = vsub.f32 %v1147, %v1151
          %v1156 = vsub.f32 %v1148, %v1152
          %v1157 = vmul.f32 %v1153, %v1125
          %v1158 = vmul.f32 %v1154, %v1126
          %v1159 = vmul.f32 %v1155, %v1127
          %v1160 = vmul.f32 %v1156, %v1128
          %v1161 = vsel %vm956, %v1157, 0.0
          %v1162 = vsel %vm956, %v1158, 0.0
          %v1163 = vadd.f32 %v1161, %v1162
          %v1164 = vsel %vm956, %v1159, 0.0
          %v1165 = vadd.f32 %v1163, %v1164
          %v1166 = vsel %vm956, %v1160, 0.0
          %v1167 = vadd.f32 %v1165, %v1166
          %v1168 = vrot.slane %v1167, 4
          %v1169 = vadd.f32 %v1167, %v1168
          %v1170 = vrot.slane %v1169, 2
          %v1171 = vadd.f32 %v1169, %v1170
          %v1172 = vrot.slane %v1171, 1
          %v1173 = vadd.f32 %v1171, %v1172
          %v1174 = vld [vmem:[%s285] sm:$0xff]
          %1176 = vset.pattern.permute.xlu0 0
          %1177 = vperm.xlu0 %1176, %v1173
          %v1178 = vpop.permute.xlu0 %1177
          %v1180 = vadd.f32 %v1174, %v1178
          %1181 = vst [vmem:[%s285] sm:$0xff] %v1180
        $region48: #{llava_likelihood_forward.5} parent=31 // pred_fallthru
          _
        %p1182 = scmp.lt.s32.totalorder %s22, 3
        %s1183 = scalar_select %p1182, %s22, 3
        %s1184 = smul.addr %s1183, 8
        %s1185 = scalar_lea.vmem %s3, %s1184
        // Predicated region
        $region49: #{llava_likelihood_forward.5} parent=31 // pred_check
          %p1186 = pneg %p136
        $region50: #{llava_likelihood_forward.5} parent=31 // pred_check_branch
          %1188 = sbr.rel (%p1186) target = $region52
        $region51: #{llava_likelihood_forward.5} parent=31 // pred_region
          _
        $region52: #{llava_likelihood_forward.5} parent=31 // pred_fallthru
          _
      $region32: #{llava_likelihood_forward.5} parent=5 // pred_fallthru
        _
      %p1189 = scmp.le.s32.totalorder 2, %s12
      // Predicated region
      $region53: #{llava_likelihood_forward.5} parent=5 // pred_check
        %p1190 = pneg %p1189
      $region54: #{llava_likelihood_forward.5} parent=5 // pred_check_branch
        %1192 = sbr.rel (%p1190) target = $region56
      $region55: #{llava_likelihood_forward.5} parent=5 // pred_region
        %s1193 = ssub.s32 %s12, 2
        // Predicated region
        $region57: #{llava_likelihood_forward.5} parent=55 // pred_check
          %p1194 = pneg %p142
        $region58: #{llava_likelihood_forward.5} parent=55 // pred_check_branch
          %1196 = sbr.rel (%p1194) target = $region60
        $region59: #{llava_likelihood_forward.5} parent=55 // pred_region
          %p1197 = scmp.lt.s32.totalorder %s25, 3
          %s1198 = scalar_select %p1197, %s25, 3
          %s1199 = smul.addr %s1198, 8
          %s1200 = scalar_lea.vmem %s3, %s1199
        $region60: #{llava_likelihood_forward.5} parent=55 // pred_fallthru
          _
      $region56: #{llava_likelihood_forward.5} parent=5 // pred_fallthru
        _
    $region6: #{llava_likelihood_forward.5} parent=1 // loop_footer
      %s16 = sadd.s32 1, %s12
    $region7: #{llava_likelihood_forward.5} parent=1 // loop_footer_branch
      %11 = sbr.rel target = $region3
    $region8: #{llava_likelihood_forward.5} parent=1 // loop_exit
      _
    %1201 = vsyncpa [#allocation6], 1
    %s1202 = scalar_lea.sflag [#allocation6], 1
    %1203 = vsyncpa %s1202, 1

// kernel: llava_likelihood_forward.4
$region0: #{llava_likelihood_forward.4}
  #allocation0 [shape = 'u32[]', space=smem, size = 0x4, offset = 0x4, fixed_abs, tag = 'smem constant byte address 0x4 - core index']
  #allocation1 [shape = 'u32[72,128]{1,0:T(1,128)}', space=vmem, size = 0x9000, scoped, tag = 'internal scratch']
  #allocation2 [shape = 'f32[64,256]{1,0:T(8,128)}', space=vmem, size = 0x10000, scoped, tag = 'scratch operand']
  %s0 = inlined_call_operand.vmem [shape: bf16[128,256], index: 0, kind: input, shape index: {}]
  %s1 = inlined_call_operand.vmem [shape: bf16[256,1024], index: 1, kind: input, shape index: {}]
  %s2 = inlined_call_operand.hbm [shape: bf16[1024,256], index: 2, kind: input, shape index: {}]
  %s3 = inlined_call_operand.vmem [shape: bf16[128,256], index: 3, kind: output, shape index: {}]
  %s4 = sld [smem:[#allocation0]]
  $region80: #{llava_likelihood_forward.4} parent=0
    _
  %s6 = ssub.s32 1, %s4
  %s7 = scalar_select 0, %s6, %s4
  $region1: #{llava_likelihood_forward.4} parent=0
    #allocation3 [shape = 'u8[524288]{0}', space=vmem, size = 0x80000, scoped, tag = 'input window, operand 1']
    #allocation4 [shape = 'u8[524288]{0}', space=vmem, size = 0x80000, scoped, tag = 'input window, operand 2']
    #allocation5 [shape = 's32[2]{0}', space=sflag, size = 0x8, scoped, tag = 'scoped memory for llava_likelihood_forward.4']
    %8 = vsyncpa [#allocation5], 0
    %s9 = scalar_lea.sflag [#allocation5], 1
    %10 = vsyncpa %s9, 0
    loop: start=0, step=1, limit=6
    $region2: #{llava_likelihood_forward.4} parent=1 // loop_pre_header
      _
    $region3: #{llava_likelihood_forward.4} parent=1 // loop_header
      %s12 = sphi 0, %s16
      %p13 = scmp.ge.s32.totalorder %s12, 6
      %s19 = sphi 0, %s31
      %s20 = sphi 0, %s27
      %s21 = sphi 0, %s19
      %s22 = sphi 0, %s20
      %s23 = sphi 0, %s21
      %s24 = sphi 0, %s22
      %s34 = sphi 0, %s36
      %s37 = sphi 0, %s34
      %s38 = sphi 0, %s37
      %s54 = sphi 0, %s38
      %s60 = sphi 0, %s62
      %s63 = sphi 0, %s60
      %s64 = sphi 0, %s63
      %s80 = sphi 0, %s64
      %s86 = sphi 0, %s88
      %s89 = sphi 0, %s86
      %s90 = sphi 0, %s89
      %s106 = sphi 0, %s90
      %s112 = sphi 0, %s114
      %s115 = sphi 0, %s112
      %s116 = sphi 0, %s115
      %s132 = sphi 0, %s116
    $region4: #{llava_likelihood_forward.4} parent=1 // loop_header_branch
      %15 = sbr.rel (%p13) target = $region8
    $region5: #{llava_likelihood_forward.4} parent=1 // loop_body
      %s17 = ssub.s32 %s12, 1
      %s18 = ssub.s32 %s12, 2
      %s25 = sadd.s32 1, %s20
      %p26 = scmp.ge.s32.totalorder %s25, 2
      %s27 = scalar_select %p26, 0, %s25
      %s28 = sadd.s32 1, %s19
      %s29 = scalar_select %p26, %s28, %s19
      %p30 = scmp.ge.s32.totalorder %s29, 2
      %s31 = scalar_select %p30, 0, %s29
      %s32 = ssub.s32 %s19, %s31
      %p33 = scmp.eq.s32.totalorder %s32, 0
      %s35 = sadd.s32 %s34, 1
      %s36 = scalar_select %p33, %s34, %s35
      %p39 = pneg %p33
      %p40 = scmp.eq.s32.totalorder %s12, 3
      %p41 = por %p39, %p40
      %p42 = scmp.ne.s32.totalorder %s34, %s37
      %p43 = scmp.eq.s32.totalorder %s12, 0
      %p44 = por %p42, %p43
      %p45 = scmp.ne.s32.totalorder %s34, %s37
      %p46 = scmp.eq.s32.totalorder %s17, 3
      %p47 = por %p45, %p46
      %p48 = scmp.ne.s32.totalorder %s37, %s38
      %p49 = scmp.eq.s32.totalorder %s17, 0
      %p50 = por %p48, %p49
      %p51 = scmp.ne.s32.totalorder %s37, %s38
      %p52 = scmp.eq.s32.totalorder %s18, 3
      %p53 = por %p51, %p52
      %p55 = scmp.ne.s32.totalorder %s38, %s54
      %p56 = scmp.eq.s32.totalorder %s18, 0
      %p57 = por %p55, %p56
      %s58 = ssub.s32 %s20, %s27
      %p59 = scmp.eq.s32.totalorder %s58, 0
      %s61 = sadd.s32 %s60, 1
      %s62 = scalar_select %p59, %s60, %s61
      %p65 = pneg %p59
      %p66 = scmp.eq.s32.totalorder %s12, 3
      %p67 = por %p65, %p66
      %p68 = scmp.ne.s32.totalorder %s60, %s63
      %p69 = scmp.eq.s32.totalorder %s12, 0
      %p70 = por %p68, %p69
      %p71 = scmp.ne.s32.totalorder %s60, %s63
      %p72 = scmp.eq.s32.totalorder %s17, 3
      %p73 = por %p71, %p72
      %p74 = scmp.ne.s32.totalorder %s63, %s64
      %p75 = scmp.eq.s32.totalorder %s17, 0
      %p76 = por %p74, %p75
      %p77 = scmp.ne.s32.totalorder %s63, %s64
      %p78 = scmp.eq.s32.totalorder %s18, 3
      %p79 = por %p77, %p78
      %p81 = scmp.ne.s32.totalorder %s64, %s80
      %p82 = scmp.eq.s32.totalorder %s18, 0
      %p83 = por %p81, %p82
      %s84 = ssub.s32 %s20, %s27
      %p85 = scmp.eq.s32.totalorder %s84, 0
      %s87 = sadd.s32 %s86, 1
      %s88 = scalar_select %p85, %s86, %s87
      %p91 = pneg %p85
      %p92 = scmp.eq.s32.totalorder %s12, 3
      %p93 = por %p91, %p92
      %p94 = scmp.ne.s32.totalorder %s86, %s89
      %p95 = scmp.eq.s32.totalorder %s12, 0
      %p96 = por %p94, %p95
      %p97 = scmp.ne.s32.totalorder %s86, %s89
      %p98 = scmp.eq.s32.totalorder %s17, 3
      %p99 = por %p97, %p98
      %p100 = scmp.ne.s32.totalorder %s89, %s90
      %p101 = scmp.eq.s32.totalorder %s17, 0
      %p102 = por %p100, %p101
      %p103 = scmp.ne.s32.totalorder %s89, %s90
      %p104 = scmp.eq.s32.totalorder %s18, 3
      %p105 = por %p103, %p104
      %p107 = scmp.ne.s32.totalorder %s90, %s106
      %p108 = scmp.eq.s32.totalorder %s18, 0
      %p109 = por %p107, %p108
      %s110 = ssub.s32 %s19, %s31
      %p111 = scmp.eq.s32.totalorder %s110, 0
      %s113 = sadd.s32 %s112, 1
      %s114 = scalar_select %p111, %s112, %s113
      %p117 = pneg %p111
      %p118 = scmp.eq.s32.totalorder %s12, 3
      %p119 = por %p117, %p118
      %p120 = scmp.ne.s32.totalorder %s112, %s115
      %p121 = scmp.eq.s32.totalorder %s12, 0
      %p122 = por %p120, %p121
      %p123 = scmp.ne.s32.totalorder %s112, %s115
      %p124 = scmp.eq.s32.totalorder %s17, 3
      %p125 = por %p123, %p124
      %p126 = scmp.ne.s32.totalorder %s115, %s116
      %p127 = scmp.eq.s32.totalorder %s17, 0
      %p128 = por %p126, %p127
      %p129 = scmp.ne.s32.totalorder %s115, %s116
      %p130 = scmp.eq.s32.totalorder %s18, 3
      %p131 = por %p129, %p130
      %p133 = scmp.ne.s32.totalorder %s116, %s132
      %p134 = scmp.eq.s32.totalorder %s18, 0
      %p135 = por %p133, %p134
      %p136 = scmp.le.s32.totalorder 1, %s12
      %p137 = scmp.lt.s32.totalorder %s12, 5
      %p138 = pnand %p136, %p137
      %p139 = pneg %p138
      // Predicated region
      $region9: #{llava_likelihood_forward.4} parent=5 // pred_check
        _
      $region10: #{llava_likelihood_forward.4} parent=5 // pred_check_branch
        %141 = sbr.rel (%p138) target = $region12
      $region11: #{llava_likelihood_forward.4} parent=5 // pred_region
        %s142 = ssub.s32 %s12, 1
        // Predicated region
        $region13: #{llava_likelihood_forward.4} parent=11 // pred_check
          %p143 = pneg %p50
        $region14: #{llava_likelihood_forward.4} parent=11 // pred_check_branch
          %145 = sbr.rel (%p143) target = $region16
        $region15: #{llava_likelihood_forward.4} parent=11 // pred_region
          %s146 = smul.u32 8, %s21
          %p147 = scmp.lt.s32.totalorder %s146, 15
          %s148 = scalar_select %p147, %s146, 15
          %s149 = smul.addr %s148, 2
          %s150 = smul.addr %s149, 4
          %s151 = scalar_lea.vmem %s0, %s150
          %s152 = smul.u32 8, %s21
        $region16: #{llava_likelihood_forward.4} parent=11 // pred_fallthru
          _
      $region12: #{llava_likelihood_forward.4} parent=5 // pred_fallthru
        _
      %p153 = scmp.lt.s32.totalorder %s12, 4
      // Predicated region
      $region17: #{llava_likelihood_forward.4} parent=5 // pred_check
        %p154 = pneg %p153
      $region18: #{llava_likelihood_forward.4} parent=5 // pred_check_branch
        %156 = sbr.rel (%p154) target = $region20
      $region19: #{llava_likelihood_forward.4} parent=5 // pred_region
        // Predicated region
        $region21: #{llava_likelihood_forward.4} parent=19 // pred_check
          %p157 = pneg %p70
        $region22: #{llava_likelihood_forward.4} parent=19 // pred_check_branch
          %159 = sbr.rel (%p157) target = $region24
        $region23: #{llava_likelihood_forward.4} parent=19 // pred_region
          %s160 = sand.u32 %s60, 1
          %s161 = sand.u32 %s60, 1
          %s162 = smul.addr %s161, 512
          %s163 = scalar_lea.vmem [#allocation3], %s162
          %s164 = smul.u32 4, %s20
          %s165 = smul.addr %s164, 4
          %s166 = scalar_lea.vmem %s1, %s165
          // Predicated region
          $region25: #{llava_likelihood_forward.4} parent=23 // pred_check
            _
          $region26: #{llava_likelihood_forward.4} parent=23 // pred_check_branch
            %168 = sbr.rel (0) target = $region28
          $region27: #{llava_likelihood_forward.4} parent=23 // pred_region
            // Predicated region
            $region29: #{llava_likelihood_forward.4} parent=27 // pred_check
              _
            $region30: #{llava_likelihood_forward.4} parent=27 // pred_check_branch
              %170 = sbr.rel (0) target = $region32
            $region31: #{llava_likelihood_forward.4} parent=27 // pred_region
              loop: start=0, step=1, limit=1
              $region33: #{llava_likelihood_forward.4} parent=31 // loop_pre_header
                _
              $region34: #{llava_likelihood_forward.4} parent=31 // loop_header
                %s172 = sphi 0, %s176
                %p173 = scmp.ge.s32.totalorder %s172, 1
                %s177 = sphi %s166, %s166
                %s178 = sphi %s163, %s163
              $region35: #{llava_likelihood_forward.4} parent=31 // loop_header_branch
                %175 = sbr.rel (%p173) target = $region39
              $region36: #{llava_likelihood_forward.4} parent=31 // loop_body
                %v179 = vld [vmem:[%s177] sm:$0xff]
                %180 = vst [vmem:[%s178] sm:$0xff] %v179
                %v181 = vld [vmem:[%s177 + $0x8] sm:$0xff]
                %182 = vst [vmem:[%s178 + $0x8] sm:$0xff] %v181
                %v183 = vld [vmem:[%s177 + $0x20] sm:$0xff]
                %184 = vst [vmem:[%s178 + $0x10] sm:$0xff] %v183
                %v185 = vld [vmem:[%s177 + $0x28] sm:$0xff]
                %186 = vst [vmem:[%s178 + $0x18] sm:$0xff] %v185
                %v187 = vld [vmem:[%s177 + $0x40] sm:$0xff]
                %188 = vst [vmem:[%s178 + $0x20] sm:$0xff] %v187
                %v189 = vld [vmem:[%s177 + $0x48] sm:$0xff]
                %190 = vst [vmem:[%s178 + $0x28] sm:$0xff] %v189
                %v191 = vld [vmem:[%s177 + $0x60] sm:$0xff]
                %192 = vst [vmem:[%s178 + $0x30] sm:$0xff] %v191
                %v193 = vld [vmem:[%s177 + $0x68] sm:$0xff]
                %194 = vst [vmem:[%s178 + $0x38] sm:$0xff] %v193
                %v195 = vld [vmem:[%s177 + $0x80] sm:$0xff]
                %196 = vst [vmem:[%s178 + $0x40] sm:$0xff] %v195
                %v197 = vld [vmem:[%s177 + $0x88] sm:$0xff]
                %198 = vst [vmem:[%s178 + $0x48] sm:$0xff] %v197
                %v199 = vld [vmem:[%s177 + $0xa0] sm:$0xff]
                %200 = vst [vmem:[%s178 + $0x50] sm:$0xff] %v199
                %v201 = vld [vmem:[%s177 + $0xa8] sm:$0xff]
                %202 = vst [vmem:[%s178 + $0x58] sm:$0xff] %v201
                %v203 = vld [vmem:[%s177 + $0xc0] sm:$0xff]
                %204 = vst [vmem:[%s178 + $0x60] sm:$0xff] %v203
                %v205 = vld [vmem:[%s177 + $0xc8] sm:$0xff]
                %206 = vst [vmem:[%s178 + $0x68] sm:$0xff] %v205
                %v207 = vld [vmem:[%s177 + $0xe0] sm:$0xff]
                %208 = vst [vmem:[%s178 + $0x70] sm:$0xff] %v207
                %v209 = vld [vmem:[%s177 + $0xe8] sm:$0xff]
                %210 = vst [vmem:[%s178 + $0x78] sm:$0xff] %v209
                %v211 = vld [vmem:[%s177 + $0x100] sm:$0xff]
                %212 = vst [vmem:[%s178 + $0x80] sm:$0xff] %v211
                %v213 = vld [vmem:[%s177 + $0x108] sm:$0xff]
                %214 = vst [vmem:[%s178 + $0x88] sm:$0xff] %v213
                %v215 = vld [vmem:[%s177 + $0x120] sm:$0xff]
                %216 = vst [vmem:[%s178 + $0x90] sm:$0xff] %v215
                %v217 = vld [vmem:[%s177 + $0x128] sm:$0xff]
                %218 = vst [vmem:[%s178 + $0x98] sm:$0xff] %v217
                %v219 = vld [vmem:[%s177 + $0x140] sm:$0xff]
                %220 = vst [vmem:[%s178 + $0xa0] sm:$0xff] %v219
                %v221 = vld [vmem:[%s177 + $0x148] sm:$0xff]
                %222 = vst [vmem:[%s178 + $0xa8] sm:$0xff] %v221
                %v223 = vld [vmem:[%s177 + $0x160] sm:$0xff]
                %224 = vst [vmem:[%s178 + $0xb0] sm:$0xff] %v223
                %v225 = vld [vmem:[%s177 + $0x168] sm:$0xff]
                %226 = vst [vmem:[%s178 + $0xb8] sm:$0xff] %v225
                %v227 = vld [vmem:[%s177 + $0x180] sm:$0xff]
                %228 = vst [vmem:[%s178 + $0xc0] sm:$0xff] %v227
                %v229 = vld [vmem:[%s177 + $0x188] sm:$0xff]
                %230 = vst [vmem:[%s178 + $0xc8] sm:$0xff] %v229
                %v231 = vld [vmem:[%s177 + $0x1a0] sm:$0xff]
                %232 = vst [vmem:[%s178 + $0xd0] sm:$0xff] %v231
                %v233 = vld [vmem:[%s177 + $0x1a8] sm:$0xff]
                %234 = vst [vmem:[%s178 + $0xd8] sm:$0xff] %v233
                %v235 = vld [vmem:[%s177 + $0x1c0] sm:$0xff]
                %236 = vst [vmem:[%s178 + $0xe0] sm:$0xff] %v235
                %v237 = vld [vmem:[%s177 + $0x1c8] sm:$0xff]
                %238 = vst [vmem:[%s178 + $0xe8] sm:$0xff] %v237
                %v239 = vld [vmem:[%s177 + $0x1e0] sm:$0xff]
                %240 = vst [vmem:[%s178 + $0xf0] sm:$0xff] %v239
                %v241 = vld [vmem:[%s177 + $0x1e8] sm:$0xff]
                %242 = vst [vmem:[%s178 + $0xf8] sm:$0xff] %v241
                %v243 = vld [vmem:[%s177 + $0x200] sm:$0xff]
                %244 = vst [vmem:[%s178 + $0x100] sm:$0xff] %v243
                %v245 = vld [vmem:[%s177 + $0x208] sm:$0xff]
                %246 = vst [vmem:[%s178 + $0x108] sm:$0xff] %v245
                %v247 = vld [vmem:[%s177 + $0x220] sm:$0xff]
                %248 = vst [vmem:[%s178 + $0x110] sm:$0xff] %v247
                %v249 = vld [vmem:[%s177 + $0x228] sm:$0xff]
                %250 = vst [vmem:[%s178 + $0x118] sm:$0xff] %v249
                %v251 = vld [vmem:[%s177 + $0x240] sm:$0xff]
                %252 = vst [vmem:[%s178 + $0x120] sm:$0xff] %v251
                %v253 = vld [vmem:[%s177 + $0x248] sm:$0xff]
                %254 = vst [vmem:[%s178 + $0x128] sm:$0xff] %v253
                %v255 = vld [vmem:[%s177 + $0x260] sm:$0xff]
                %256 = vst [vmem:[%s178 + $0x130] sm:$0xff] %v255
                %v257 = vld [vmem:[%s177 + $0x268] sm:$0xff]
                %258 = vst [vmem:[%s178 + $0x138] sm:$0xff] %v257
                %v259 = vld [vmem:[%s177 + $0x280] sm:$0xff]
                %260 = vst [vmem:[%s178 + $0x140] sm:$0xff] %v259
                %v261 = vld [vmem:[%s177 + $0x288] sm:$0xff]
                %262 = vst [vmem:[%s178 + $0x148] sm:$0xff] %v261
                %v263 = vld [vmem:[%s177 + $0x2a0] sm:$0xff]
                %264 = vst [vmem:[%s178 + $0x150] sm:$0xff] %v263
                %v265 = vld [vmem:[%s177 + $0x2a8] sm:$0xff]
                %266 = vst [vmem:[%s178 + $0x158] sm:$0xff] %v265
                %v267 = vld [vmem:[%s177 + $0x2c0] sm:$0xff]
                %268 = vst [vmem:[%s178 + $0x160] sm:$0xff] %v267
                %v269 = vld [vmem:[%s177 + $0x2c8] sm:$0xff]
                %270 = vst [vmem:[%s178 + $0x168] sm:$0xff] %v269
                %v271 = vld [vmem:[%s177 + $0x2e0] sm:$0xff]
                %272 = vst [vmem:[%s178 + $0x170] sm:$0xff] %v271
                %v273 = vld [vmem:[%s177 + $0x2e8] sm:$0xff]
                %274 = vst [vmem:[%s178 + $0x178] sm:$0xff] %v273
                %v275 = vld [vmem:[%s177 + $0x300] sm:$0xff]
                %276 = vst [vmem:[%s178 + $0x180] sm:$0xff] %v275
                %v277 = vld [vmem:[%s177 + $0x308] sm:$0xff]
                %278 = vst [vmem:[%s178 + $0x188] sm:$0xff] %v277
                %v279 = vld [vmem:[%s177 + $0x320] sm:$0xff]
                %280 = vst [vmem:[%s178 + $0x190] sm:$0xff] %v279
                %v281 = vld [vmem:[%s177 + $0x328] sm:$0xff]
                %282 = vst [vmem:[%s178 + $0x198] sm:$0xff] %v281
                %v283 = vld [vmem:[%s177 + $0x340] sm:$0xff]
                %284 = vst [vmem:[%s178 + $0x1a0] sm:$0xff] %v283
                %v285 = vld [vmem:[%s177 + $0x348] sm:$0xff]
                %286 = vst [vmem:[%s178 + $0x1a8] sm:$0xff] %v285
                %v287 = vld [vmem:[%s177 + $0x360] sm:$0xff]
                %288 = vst [vmem:[%s178 + $0x1b0] sm:$0xff] %v287
                %v289 = vld [vmem:[%s177 + $0x368] sm:$0xff]
                %290 = vst [vmem:[%s178 + $0x1b8] sm:$0xff] %v289
                %v291 = vld [vmem:[%s177 + $0x380] sm:$0xff]
                %292 = vst [vmem:[%s178 + $0x1c0] sm:$0xff] %v291
                %v293 = vld [vmem:[%s177 + $0x388] sm:$0xff]
                %294 = vst [vmem:[%s178 + $0x1c8] sm:$0xff] %v293
                %v295 = vld [vmem:[%s177 + $0x3a0] sm:$0xff]
                %296 = vst [vmem:[%s178 + $0x1d0] sm:$0xff] %v295
                %v297 = vld [vmem:[%s177 + $0x3a8] sm:$0xff]
                %298 = vst [vmem:[%s178 + $0x1d8] sm:$0xff] %v297
                %v299 = vld [vmem:[%s177 + $0x3c0] sm:$0xff]
                %300 = vst [vmem:[%s178 + $0x1e0] sm:$0xff] %v299
                %v301 = vld [vmem:[%s177 + $0x3c8] sm:$0xff]
                %302 = vst [vmem:[%s178 + $0x1e8] sm:$0xff] %v301
                %v303 = vld [vmem:[%s177 + $0x3e0] sm:$0xff]
                %304 = vst [vmem:[%s178 + $0x1f0] sm:$0xff] %v303
                %v305 = vld [vmem:[%s177 + $0x3e8] sm:$0xff]
                %306 = vst [vmem:[%s178 + $0x1f8] sm:$0xff] %v305
              $region37: #{llava_likelihood_forward.4} parent=31 // loop_footer
                %s176 = sadd.s32 1, %s172
              $region38: #{llava_likelihood_forward.4} parent=31 // loop_footer_branch
                %171 = sbr.rel target = $region34
              $region39: #{llava_likelihood_forward.4} parent=31 // loop_exit
                _
            $region32: #{llava_likelihood_forward.4} parent=27 // pred_fallthru
              _
            // Predicated region
            $region40: #{llava_likelihood_forward.4} parent=27 // pred_check
              _
            $region41: #{llava_likelihood_forward.4} parent=27 // pred_check_branch
              %308 = sbr.rel target = $region43
            $region42: #{llava_likelihood_forward.4} parent=27 // pred_region
              _
            $region43: #{llava_likelihood_forward.4} parent=27 // pred_fallthru
              _
          $region28: #{llava_likelihood_forward.4} parent=23 // pred_fallthru
            _
          %309 = vnop
        $region24: #{llava_likelihood_forward.4} parent=19 // pred_fallthru
          _
        // Predicated region
        $region44: #{llava_likelihood_forward.4} parent=19 // pred_check
          %p310 = pneg %p96
        $region45: #{llava_likelihood_forward.4} parent=19 // pred_check_branch
          %312 = sbr.rel (%p310) target = $region47
        $region46: #{llava_likelihood_forward.4} parent=19 // pred_region
          %s313 = sand.u32 %s86, 1
          %s314 = scalar_lea.sflag [#allocation5], %s313
          %s315 = sand.u32 %s86, 1
          %s316 = smul.addr %s315, 512
          %s317 = scalar_lea.vmem [#allocation4], %s316
          %s318 = smul.u32 64, %s20
          %320 = vsyncadd %s314, 0
          %s321 = smul.addr %s318, 2
          %s322 = smul.addr %s321, 4
          %s323 = scalar_lea.hbm %s2, %s322
          %s324 = sshll.u32 %s323, 4
          %s325 = int_to_ptr.hbm [resolvable:$true] %s324
          %s326 = sshll.u32 %s317, 4
          %s327 = int_to_ptr.vmem [resolvable:$true] %s326
          %332 = dma.hbm_to_vmem [thread:$0]  %s325, 8192, %s327, %s314, 128, 128, 8
        $region47: #{llava_likelihood_forward.4} parent=19 // pred_fallthru
          _
      $region20: #{llava_likelihood_forward.4} parent=5 // pred_fallthru
        _
      %p333 = scmp.le.s32.totalorder 1, %s12
      %p334 = scmp.lt.s32.totalorder %s12, 5
      %p335 = pnand %p333, %p334
      %p336 = pneg %p335
      // Predicated region
      $region48: #{llava_likelihood_forward.4} parent=5 // pred_check
        _
      $region49: #{llava_likelihood_forward.4} parent=5 // pred_check_branch
        %338 = sbr.rel (%p335) target = $region51
      $region50: #{llava_likelihood_forward.4} parent=5 // pred_region
        %s339 = ssub.s32 %s12, 1
        %s340 = sand.u32 %s63, 1
        %s341 = sand.u32 %s63, 1
        %s342 = smul.addr %s341, 512
        %s343 = scalar_lea.vmem [#allocation3], %s342
        // Predicated region
        $region52: #{llava_likelihood_forward.4} parent=50 // pred_check
          %p344 = pneg %p76
        $region53: #{llava_likelihood_forward.4} parent=50 // pred_check_branch
          %346 = sbr.rel (%p344) target = $region55
        $region54: #{llava_likelihood_forward.4} parent=50 // pred_region
          _
        $region55: #{llava_likelihood_forward.4} parent=50 // pred_fallthru
          _
        %s347 = sand.u32 %s89, 1
        %s348 = scalar_lea.sflag [#allocation5], %s347
        %s349 = sand.u32 %s89, 1
        %s350 = smul.addr %s349, 512
        %s351 = scalar_lea.vmem [#allocation4], %s350
        // Predicated region
        $region56: #{llava_likelihood_forward.4} parent=50 // pred_check
          %p352 = pneg %p102
        $region57: #{llava_likelihood_forward.4} parent=50 // pred_check_branch
          %354 = sbr.rel (%p352) target = $region59
        $region58: #{llava_likelihood_forward.4} parent=50 // pred_region
          %356 = dma.done %s348, 8192
        $region59: #{llava_likelihood_forward.4} parent=50 // pred_fallthru
          _
        %s357 = smul.u32 8, %s21
        %p358 = scmp.lt.s32.totalorder %s357, 15
        %s359 = scalar_select %p358, %s357, 15
        %s360 = smul.addr %s359, 2
        %s361 = smul.addr %s360, 4
        %s362 = scalar_lea.vmem %s0, %s361
        %p363 = pneg %p50
        %p364 = pneg %p47
        %s365 = sand.u32 %s63, 1
        %s366 = sand.u32 %s63, 1
        %s367 = smul.addr %s366, 512
        %s368 = scalar_lea.vmem [#allocation3], %s367
        %p369 = pneg %p76
        %p370 = pneg %p73
        %s371 = sand.u32 %s89, 1
        %s372 = scalar_lea.sflag [#allocation5], %s371
        %s373 = sand.u32 %s89, 1
        %s374 = smul.addr %s373, 512
        %s375 = scalar_lea.vmem [#allocation4], %s374
        %p376 = pneg %p102
        %p377 = pneg %p99
        %p378 = pneg %p128
        %p379 = pneg %p125
        %s380 = smul.u32 8, %s21
        %p381 = scmp.lt.s32.totalorder %s380, 15
        %s382 = scalar_select %p381, %s380, 15
        %s383 = smul.addr %s382, 2
        %s384 = smul.addr %s383, 4
        %s385 = scalar_lea.vmem %s3, %s384
        %s386 = smul.u32 8, %s21
        %p387 = scmp.lt.s32.totalorder %s386, 15
        %s388 = scalar_select %p387, %s386, 15
        %s389 = smul.addr %s388, 2
        %s390 = smul.addr %s389, 4
        %s391 = scalar_lea.vmem %s0, %s390
        %s392 = smul.u32 8, %s21
        %s393 = smul.u32 4, %s22
        %s394 = smul.u32 64, %s22
        %s395 = smul.u32 8, %s21
        %p396 = scmp.lt.s32.totalorder %s395, 15
        %s397 = scalar_select %p396, %s395, 15
        %s398 = smul.addr %s397, 2
        %s399 = smul.addr %s398, 4
        %s400 = scalar_lea.vmem %s3, %s399
        %s401 = smul.u32 8, %s21
        %p402 = scmp.eq.s32.totalorder %s22, 0
        // Predicated region
        $region60: #{llava_likelihood_forward.4} parent=50 // pred_check
          %p403 = pneg %p402
        $region61: #{llava_likelihood_forward.4} parent=50 // pred_check_branch
          %405 = sbr.rel (%p403) target = $region63
        $region62: #{llava_likelihood_forward.4} parent=50 // pred_region
          %v406 = vld [vmem:[%s391] sm:$0xff]
          %v407 = vld [vmem:[%s391 + $0x8] sm:$0xff]
          %v408 = vld [vmem:[%s391 + $0x10] sm:$0xff]
          %v409 = vld [vmem:[%s391 + $0x18] sm:$0xff]
          %v410 = vld [vmem:[%s391 + $0x20] sm:$0xff]
          %v411 = vld [vmem:[%s391 + $0x28] sm:$0xff]
          %v412 = vld [vmem:[%s391 + $0x30] sm:$0xff]
          %v413 = vld [vmem:[%s391 + $0x38] sm:$0xff]
          %v414 = vunpack.c.l.bf16 %v406
          %v415 = vunpack.c.h.bf16 %v406
          %v416 = vunpack.c.l.bf16 %v407
          %v417 = vunpack.c.h.bf16 %v407
          %v418 = vunpack.c.l.bf16 %v408
          %v419 = vunpack.c.h.bf16 %v408
          %v420 = vunpack.c.l.bf16 %v409
          %v421 = vunpack.c.h.bf16 %v409
          %v422 = vunpack.c.l.bf16 %v410
          %v423 = vunpack.c.h.bf16 %v410
          %v424 = vunpack.c.l.bf16 %v411
          %v425 = vunpack.c.h.bf16 %v411
          %v426 = vunpack.c.l.bf16 %v412
          %v427 = vunpack.c.h.bf16 %v412
          %v428 = vunpack.c.l.bf16 %v413
          %v429 = vunpack.c.h.bf16 %v413
          %430 = vst [vmem:[#allocation2] sm:$0xff] %v414
          %431 = vst [vmem:[#allocation2 + $0x8] sm:$0xff] %v415
          %432 = vst [vmem:[#allocation2 + $0x10] sm:$0xff] %v416
          %433 = vst [vmem:[#allocation2 + $0x18] sm:$0xff] %v417
          %434 = vst [vmem:[#allocation2 + $0x20] sm:$0xff] %v418
          %435 = vst [vmem:[#allocation2 + $0x28] sm:$0xff] %v419
          %436 = vst [vmem:[#allocation2 + $0x30] sm:$0xff] %v420
          %437 = vst [vmem:[#allocation2 + $0x38] sm:$0xff] %v421
          %438 = vst [vmem:[#allocation2 + $0x40] sm:$0xff] %v422
          %439 = vst [vmem:[#allocation2 + $0x48] sm:$0xff] %v423
          %440 = vst [vmem:[#allocation2 + $0x50] sm:$0xff] %v424
          %441 = vst [vmem:[#allocation2 + $0x58] sm:$0xff] %v425
          %442 = vst [vmem:[#allocation2 + $0x60] sm:$0xff] %v426
          %443 = vst [vmem:[#allocation2 + $0x68] sm:$0xff] %v427
          %444 = vst [vmem:[#allocation2 + $0x70] sm:$0xff] %v428
          %445 = vst [vmem:[#allocation2 + $0x78] sm:$0xff] %v429
        $region63: #{llava_likelihood_forward.4} parent=50 // pred_fallthru
          _
        %v446 = vld [vmem:[%s391] sm:$0xff]
        %v447 = vld [vmem:[%s391 + $0x8] sm:$0xff]
        %v448 = vld [vmem:[%s391 + $0x10] sm:$0xff]
        %v449 = vld [vmem:[%s391 + $0x18] sm:$0xff]
        %v450 = vld [vmem:[%s391 + $0x20] sm:$0xff]
        %v451 = vld [vmem:[%s391 + $0x28] sm:$0xff]
        %v452 = vld [vmem:[%s391 + $0x30] sm:$0xff]
        %v453 = vld [vmem:[%s391 + $0x38] sm:$0xff]
        %v454 = vld [vmem:[%s343] sm:$0xff]
        %v455 = vld [vmem:[%s343 + $0x8] sm:$0xff]
        %v456 = vld [vmem:[%s343 + $0x10] sm:$0xff]
        %v457 = vld [vmem:[%s343 + $0x18] sm:$0xff]
        %v458 = vld [vmem:[%s343 + $0x20] sm:$0xff]
        %v459 = vld [vmem:[%s343 + $0x28] sm:$0xff]
        %v460 = vld [vmem:[%s343 + $0x30] sm:$0xff]
        %v461 = vld [vmem:[%s343 + $0x38] sm:$0xff]
        %v462 = vld [vmem:[%s343 + $0x40] sm:$0xff]
        %v463 = vld [vmem:[%s343 + $0x48] sm:$0xff]
        %v464 = vld [vmem:[%s343 + $0x50] sm:$0xff]
        %v465 = vld [vmem:[%s343 + $0x58] sm:$0xff]
        %v466 = vld [vmem:[%s343 + $0x60] sm:$0xff]
        %v467 = vld [vmem:[%s343 + $0x68] sm:$0xff]
        %v468 = vld [vmem:[%s343 + $0x70] sm:$0xff]
        %v469 = vld [vmem:[%s343 + $0x78] sm:$0xff]
        %v470 = vld [vmem:[%s343 + $0x80] sm:$0xff]
        %v471 = vld [vmem:[%s343 + $0x88] sm:$0xff]
        %v472 = vld [vmem:[%s343 + $0x90] sm:$0xff]
        %v473 = vld [vmem:[%s343 + $0x98] sm:$0xff]
        %v474 = vld [vmem:[%s343 + $0xa0] sm:$0xff]
        %v475 = vld [vmem:[%s343 + $0xa8] sm:$0xff]
        %v476 = vld [vmem:[%s343 + $0xb0] sm:$0xff]
        %v477 = vld [vmem:[%s343 + $0xb8] sm:$0xff]
        %v478 = vld [vmem:[%s343 + $0xc0] sm:$0xff]
        %v479 = vld [vmem:[%s343 + $0xc8] sm:$0xff]
        %v480 = vld [vmem:[%s343 + $0xd0] sm:$0xff]
        %v481 = vld [vmem:[%s343 + $0xd8] sm:$0xff]
        %v482 = vld [vmem:[%s343 + $0xe0] sm:$0xff]
        %v483 = vld [vmem:[%s343 + $0xe8] sm:$0xff]
        %v484 = vld [vmem:[%s343 + $0xf0] sm:$0xff]
        %v485 = vld [vmem:[%s343 + $0xf8] sm:$0xff]
        %v486 = vld [vmem:[%s343 + $0x100] sm:$0xff]
        %v487 = vld [vmem:[%s343 + $0x108] sm:$0xff]
        %v488 = vld [vmem:[%s343 + $0x110] sm:$0xff]
        %v489 = vld [vmem:[%s343 + $0x118] sm:$0xff]
        %v490 = vld [vmem:[%s343 + $0x120] sm:$0xff]
        %v491 = vld [vmem:[%s343 + $0x128] sm:$0xff]
        %v492 = vld [vmem:[%s343 + $0x130] sm:$0xff]
        %v493 = vld [vmem:[%s343 + $0x138] sm:$0xff]
        %v494 = vld [vmem:[%s343 + $0x140] sm:$0xff]
        %v495 = vld [vmem:[%s343 + $0x148] sm:$0xff]
        %v496 = vld [vmem:[%s343 + $0x150] sm:$0xff]
        %v497 = vld [vmem:[%s343 + $0x158] sm:$0xff]
        %v498 = vld [vmem:[%s343 + $0x160] sm:$0xff]
        %v499 = vld [vmem:[%s343 + $0x168] sm:$0xff]
        %v500 = vld [vmem:[%s343 + $0x170] sm:$0xff]
        %v501 = vld [vmem:[%s343 + $0x178] sm:$0xff]
        %v502 = vld [vmem:[%s343 + $0x180] sm:$0xff]
        %v503 = vld [vmem:[%s343 + $0x188] sm:$0xff]
        %v504 = vld [vmem:[%s343 + $0x190] sm:$0xff]
        %v505 = vld [vmem:[%s343 + $0x198] sm:$0xff]
        %v506 = vld [vmem:[%s343 + $0x1a0] sm:$0xff]
        %v507 = vld [vmem:[%s343 + $0x1a8] sm:$0xff]
        %v508 = vld [vmem:[%s343 + $0x1b0] sm:$0xff]
        %v509 = vld [vmem:[%s343 + $0x1b8] sm:$0xff]
        %v510 = vld [vmem:[%s343 + $0x1c0] sm:$0xff]
        %v511 = vld [vmem:[%s343 + $0x1c8] sm:$0xff]
        %v512 = vld [vmem:[%s343 + $0x1d0] sm:$0xff]
        %v513 = vld [vmem:[%s343 + $0x1d8] sm:$0xff]
        %v514 = vld [vmem:[%s343 + $0x1e0] sm:$0xff]
        %v515 = vld [vmem:[%s343 + $0x1e8] sm:$0xff]
        %v516 = vld [vmem:[%s343 + $0x1f0] sm:$0xff]
        %v517 = vld [vmem:[%s343 + $0x1f8] sm:$0xff]
        %v526 = vunpack.c.l.b16 %v446
        %v527 = vunpack.c.h.b16 %v446
        %v528 = vunpack.c.l.b16 %v447
        %v529 = vunpack.c.h.b16 %v447
        %v530 = vunpack.c.l.b16 %v448
        %v531 = vunpack.c.h.b16 %v448
        %v532 = vunpack.c.l.b16 %v449
        %v533 = vunpack.c.h.b16 %v449
        %v534 = vunpack.c.l.b16 %v450
        %v535 = vunpack.c.h.b16 %v450
        %v536 = vunpack.c.l.b16 %v451
        %v537 = vunpack.c.h.b16 %v451
        %v538 = vunpack.c.l.b16 %v452
        %v539 = vunpack.c.h.b16 %v452
        %v540 = vunpack.c.l.b16 %v453
        %v541 = vunpack.c.h.b16 %v453
        %v542 = vpack.c.b16 %v528, %v526
        %v543 = vpack.c.b16 %v529, %v527
        %v544 = vpack.c.b16 %v532, %v530
        %v545 = vpack.c.b16 %v533, %v531
        %v546 = vpack.c.b16 %v536, %v534
        %v547 = vpack.c.b16 %v537, %v535
        %v548 = vpack.c.b16 %v540, %v538
        %v549 = vpack.c.b16 %v541, %v539
        %v622 = vunpack.c.l.b16 %v454
        %v623 = vunpack.c.h.b16 %v454
        %v624 = vunpack.c.l.b16 %v455
        %v625 = vunpack.c.h.b16 %v455
        %v626 = vunpack.c.l.b16 %v456
        %v627 = vunpack.c.h.b16 %v456
        %v628 = vunpack.c.l.b16 %v457
        %v629 = vunpack.c.h.b16 %v457
        %v630 = vunpack.c.l.b16 %v458
        %v631 = vunpack.c.h.b16 %v458
        %v632 = vunpack.c.l.b16 %v459
        %v633 = vunpack.c.h.b16 %v459
        %v634 = vunpack.c.l.b16 %v460
        %v635 = vunpack.c.h.b16 %v460
        %v636 = vunpack.c.l.b16 %v461
        %v637 = vunpack.c.h.b16 %v461
        %v638 = vunpack.c.l.b16 %v462
        %v639 = vunpack.c.h.b16 %v462
        %v640 = vunpack.c.l.b16 %v463
        %v641 = vunpack.c.h.b16 %v463
        %v642 = vunpack.c.l.b16 %v464
        %v643 = vunpack.c.h.b16 %v464
        %v644 = vunpack.c.l.b16 %v465
        %v645 = vunpack.c.h.b16 %v465
        %v646 = vunpack.c.l.b16 %v466
        %v647 = vunpack.c.h.b16 %v466
        %v648 = vunpack.c.l.b16 %v467
        %v649 = vunpack.c.h.b16 %v467
        %v650 = vunpack.c.l.b16 %v468
        %v651 = vunpack.c.h.b16 %v468
        %v652 = vunpack.c.l.b16 %v469
        %v653 = vunpack.c.h.b16 %v469
        %v654 = vunpack.c.l.b16 %v470
        %v655 = vunpack.c.h.b16 %v470
        %v656 = vunpack.c.l.b16 %v471
        %v657 = vunpack.c.h.b16 %v471
        %v658 = vunpack.c.l.b16 %v472
        %v659 = vunpack.c.h.b16 %v472
        %v660 = vunpack.c.l.b16 %v473
        %v661 = vunpack.c.h.b16 %v473
        %v662 = vunpack.c.l.b16 %v474
        %v663 = vunpack.c.h.b16 %v474
        %v664 = vunpack.c.l.b16 %v475
        %v665 = vunpack.c.h.b16 %v475
        %v666 = vunpack.c.l.b16 %v476
        %v667 = vunpack.c.h.b16 %v476
        %v668 = vunpack.c.l.b16 %v477
        %v669 = vunpack.c.h.b16 %v477
        %v670 = vunpack.c.l.b16 %v478
        %v671 = vunpack.c.h.b16 %v478
        %v672 = vunpack.c.l.b16 %v479
        %v673 = vunpack.c.h.b16 %v479
        %v674 = vunpack.c.l.b16 %v480
        %v675 = vunpack.c.h.b16 %v480
        %v676 = vunpack.c.l.b16 %v481
        %v677 = vunpack.c.h.b16 %v481
        %v678 = vunpack.c.l.b16 %v482
        %v679 = vunpack.c.h.b16 %v482
        %v680 = vunpack.c.l.b16 %v483
        %v681 = vunpack.c.h.b16 %v483
        %v682 = vunpack.c.l.b16 %v484
        %v683 = vunpack.c.h.b16 %v484
        %v684 = vunpack.c.l.b16 %v485
        %v685 = vunpack.c.h.b16 %v485
        %v686 = vunpack.c.l.b16 %v486
        %v687 = vunpack.c.h.b16 %v486
        %v688 = vunpack.c.l.b16 %v487
        %v689 = vunpack.c.h.b16 %v487
        %v690 = vunpack.c.l.b16 %v488
        %v691 = vunpack.c.h.b16 %v488
        %v692 = vunpack.c.l.b16 %v489
        %v693 = vunpack.c.h.b16 %v489
        %v694 = vunpack.c.l.b16 %v490
        %v695 = vunpack.c.h.b16 %v490
        %v696 = vunpack.c.l.b16 %v491
        %v697 = vunpack.c.h.b16 %v491
        %v698 = vunpack.c.l.b16 %v492
        %v699 = vunpack.c.h.b16 %v492
        %v700 = vunpack.c.l.b16 %v493
        %v701 = vunpack.c.h.b16 %v493
        %v702 = vunpack.c.l.b16 %v494
        %v703 = vunpack.c.h.b16 %v494
        %v704 = vunpack.c.l.b16 %v495
        %v705 = vunpack.c.h.b16 %v495
        %v706 = vunpack.c.l.b16 %v496
        %v707 = vunpack.c.h.b16 %v496
        %v708 = vunpack.c.l.b16 %v497
        %v709 = vunpack.c.h.b16 %v497
        %v710 = vunpack.c.l.b16 %v498
        %v711 = vunpack.c.h.b16 %v498
        %v712 = vunpack.c.l.b16 %v499
        %v713 = vunpack.c.h.b16 %v499
        %v714 = vunpack.c.l.b16 %v500
        %v715 = vunpack.c.h.b16 %v500
        %v716 = vunpack.c.l.b16 %v501
        %v717 = vunpack.c.h.b16 %v501
        %v718 = vunpack.c.l.b16 %v502
        %v719 = vunpack.c.h.b16 %v502
        %v720 = vunpack.c.l.b16 %v503
        %v721 = vunpack.c.h.b16 %v503
        %v722 = vunpack.c.l.b16 %v504
        %v723 = vunpack.c.h.b16 %v504
        %v724 = vunpack.c.l.b16 %v505
        %v725 = vunpack.c.h.b16 %v505
        %v726 = vunpack.c.l.b16 %v506
        %v727 = vunpack.c.h.b16 %v506
        %v728 = vunpack.c.l.b16 %v507
        %v729 = vunpack.c.h.b16 %v507
        %v730 = vunpack.c.l.b16 %v508
        %v731 = vunpack.c.h.b16 %v508
        %v732 = vunpack.c.l.b16 %v509
        %v733 = vunpack.c.h.b16 %v509
        %v734 = vunpack.c.l.b16 %v510
        %v735 = vunpack.c.h.b16 %v510
        %v736 = vunpack.c.l.b16 %v511
        %v737 = vunpack.c.h.b16 %v511
        %v738 = vunpack.c.l.b16 %v512
        %v739 = vunpack.c.h.b16 %v512
        %v740 = vunpack.c.l.b16 %v513
        %v741 = vunpack.c.h.b16 %v513
        %v742 = vunpack.c.l.b16 %v514
        %v743 = vunpack.c.h.b16 %v514
        %v744 = vunpack.c.l.b16 %v515
        %v745 = vunpack.c.h.b16 %v515
        %v746 = vunpack.c.l.b16 %v516
        %v747 = vunpack.c.h.b16 %v516
        %v748 = vunpack.c.l.b16 %v517
        %v749 = vunpack.c.h.b16 %v517
        %v750 = vpack.c.b16 %v626, %v622
        %v751 = vpack.c.b16 %v627, %v623
        %v752 = vpack.c.b16 %v628, %v624
        %v753 = vpack.c.b16 %v629, %v625
        %v754 = vpack.c.b16 %v634, %v630
        %v755 = vpack.c.b16 %v635, %v631
        %v756 = vpack.c.b16 %v636, %v632
        %v757 = vpack.c.b16 %v637, %v633
        %v758 = vpack.c.b16 %v642, %v638
        %v759 = vpack.c.b16 %v643, %v639
        %v760 = vpack.c.b16 %v644, %v640
        %v761 = vpack.c.b16 %v645, %v641
        %v762 = vpack.c.b16 %v650, %v646
        %v763 = vpack.c.b16 %v651, %v647
        %v764 = vpack.c.b16 %v652, %v648
        %v765 = vpack.c.b16 %v653, %v649
        %v766 = vpack.c.b16 %v658, %v654
        %v767 = vpack.c.b16 %v659, %v655
        %v768 = vpack.c.b16 %v660, %v656
        %v769 = vpack.c.b16 %v661, %v657
        %v770 = vpack.c.b16 %v666, %v662
        %v771 = vpack.c.b16 %v667, %v663
        %v772 = vpack.c.b16 %v668, %v664
        %v773 = vpack.c.b16 %v669, %v665
        %v774 = vpack.c.b16 %v674, %v670
        %v775 = vpack.c.b16 %v675, %v671
        %v776 = vpack.c.b16 %v676, %v672
        %v777 = vpack.c.b16 %v677, %v673
        %v778 = vpack.c.b16 %v682, %v678
        %v779 = vpack.c.b16 %v683, %v679
        %v780 = vpack.c.b16 %v684, %v680
        %v781 = vpack.c.b16 %v685, %v681
        %v782 = vpack.c.b16 %v690, %v686
        %v783 = vpack.c.b16 %v691, %v687
        %v784 = vpack.c.b16 %v692, %v688
        %v785 = vpack.c.b16 %v693, %v689
        %v786 = vpack.c.b16 %v698, %v694
        %v787 = vpack.c.b16 %v699, %v695
        %v788 = vpack.c.b16 %v700, %v696
        %v789 = vpack.c.b16 %v701, %v697
        %v790 = vpack.c.b16 %v706, %v702
        %v791 = vpack.c.b16 %v707, %v703
        %v792 = vpack.c.b16 %v708, %v704
        %v793 = vpack.c.b16 %v709, %v705
        %v794 = vpack.c.b16 %v714, %v710
        %v795 = vpack.c.b16 %v715, %v711
        %v796 = vpack.c.b16 %v716, %v712
        %v797 = vpack.c.b16 %v717, %v713
        %v798 = vpack.c.b16 %v722, %v718
        %v799 = vpack.c.b16 %v723, %v719
        %v800 = vpack.c.b16 %v724, %v720
        %v801 = vpack.c.b16 %v725, %v721
        %v802 = vpack.c.b16 %v730, %v726
        %v803 = vpack.c.b16 %v731, %v727
        %v804 = vpack.c.b16 %v732, %v728
        %v805 = vpack.c.b16 %v733, %v729
        %v806 = vpack.c.b16 %v738, %v734
        %v807 = vpack.c.b16 %v739, %v735
        %v808 = vpack.c.b16 %v740, %v736
        %v809 = vpack.c.b16 %v741, %v737
        %v810 = vpack.c.b16 %v746, %v742
        %v811 = vpack.c.b16 %v747, %v743
        %v812 = vpack.c.b16 %v748, %v744
        %v813 = vpack.c.b16 %v749, %v745
        %878 = vmatpush.bf16.msra.mxu0 %v778
        %879 = vmatpush.bf16.msra.mxu0 %v774
        %880 = vmatpush.bf16.msra.mxu0 %v770
        %881 = vmatpush.bf16.msra.mxu0 %v766
        %882 = vmatpush.bf16.msra.mxu0 %v762
        %883 = vmatpush.bf16.msra.mxu0 %v758
        %884 = vmatpush.bf16.msra.mxu0 %v754
        %885 = vmatpush.bf16.msra.mxu0 %v750
        %886 = vmatmul.bf16.gmra.mxu0 %v542
        %v887 = vpop.f32.mrf.mxu0
        %v888 = vadd.f32 0.0, %v887
        %v889 = vpop.f32.mrf.mxu0
        %v890 = vadd.f32 0.0, %v889
        %891 = vmatmul.bf16.gmra.mxu0 %v544
        %v892 = vpop.f32.mrf.mxu0
        %v893 = vadd.f32 0.0, %v892
        %v894 = vpop.f32.mrf.mxu0
        %v895 = vadd.f32 0.0, %v894
        %896 = vmatmul.bf16.gmra.mxu0 %v546
        %v897 = vpop.f32.mrf.mxu0
        %v898 = vadd.f32 0.0, %v897
        %v899 = vpop.f32.mrf.mxu0
        %v900 = vadd.f32 0.0, %v899
        %901 = vmatmul.bf16.gmra.mxu0 %v548
        %v902 = vpop.f32.mrf.mxu0
        %v903 = vadd.f32 0.0, %v902
        %v904 = vpop.f32.mrf.mxu0
        %v905 = vadd.f32 0.0, %v904
        %906 = vdwg.mxu0
        %907 = vmatpush.bf16.msra.mxu0 %v810
        %908 = vmatpush.bf16.msra.mxu0 %v806
        %909 = vmatpush.bf16.msra.mxu0 %v802
        %910 = vmatpush.bf16.msra.mxu0 %v798
        %911 = vmatpush.bf16.msra.mxu0 %v794
        %912 = vmatpush.bf16.msra.mxu0 %v790
        %913 = vmatpush.bf16.msra.mxu0 %v786
        %914 = vmatpush.bf16.msra.mxu0 %v782
        %915 = vmatmul.bf16.gmra.mxu0 %v543
        %v916 = vpop.f32.mrf.mxu0
        %v917 = vadd.f32 %v888, %v916
        %v918 = vpop.f32.mrf.mxu0
        %v919 = vadd.f32 %v890, %v918
        %920 = vmatmul.bf16.gmra.mxu0 %v545
        %v921 = vpop.f32.mrf.mxu0
        %v922 = vadd.f32 %v893, %v921
        %v923 = vpop.f32.mrf.mxu0
        %v924 = vadd.f32 %v895, %v923
        %925 = vmatmul.bf16.gmra.mxu0 %v547
        %v926 = vpop.f32.mrf.mxu0
        %v927 = vadd.f32 %v898, %v926
        %v928 = vpop.f32.mrf.mxu0
        %v929 = vadd.f32 %v900, %v928
        %930 = vmatmul.bf16.gmra.mxu0 %v549
        %v931 = vpop.f32.mrf.mxu0
        %v932 = vadd.f32 %v903, %v931
        %v933 = vpop.f32.mrf.mxu0
        %v934 = vadd.f32 %v905, %v933
        %935 = vdwg.mxu0
        %936 = vmatpush.bf16.msra.mxu0 %v779
        %937 = vmatpush.bf16.msra.mxu0 %v775
        %938 = vmatpush.bf16.msra.mxu0 %v771
        %939 = vmatpush.bf16.msra.mxu0 %v767
        %940 = vmatpush.bf16.msra.mxu0 %v763
        %941 = vmatpush.bf16.msra.mxu0 %v759
        %942 = vmatpush.bf16.msra.mxu0 %v755
        %943 = vmatpush.bf16.msra.mxu0 %v751
        %944 = vmatmul.bf16.gmra.mxu0 %v542
        %v945 = vpop.f32.mrf.mxu0
        %v946 = vadd.f32 0.0, %v945
        %v947 = vpop.f32.mrf.mxu0
        %v948 = vadd.f32 0.0, %v947
        %949 = vmatmul.bf16.gmra.mxu0 %v544
        %v950 = vpop.f32.mrf.mxu0
        %v951 = vadd.f32 0.0, %v950
        %v952 = vpop.f32.mrf.mxu0
        %v953 = vadd.f32 0.0, %v952
        %954 = vmatmul.bf16.gmra.mxu0 %v546
        %v955 = vpop.f32.mrf.mxu0
        %v956 = vadd.f32 0.0, %v955
        %v957 = vpop.f32.mrf.mxu0
        %v958 = vadd.f32 0.0, %v957
        %959 = vmatmul.bf16.gmra.mxu0 %v548
        %v960 = vpop.f32.mrf.mxu0
        %v961 = vadd.f32 0.0, %v960
        %v962 = vpop.f32.mrf.mxu0
        %v963 = vadd.f32 0.0, %v962
        %964 = vdwg.mxu0
        %965 = vmatpush.bf16.msra.mxu0 %v811
        %966 = vmatpush.bf16.msra.mxu0 %v807
        %967 = vmatpush.bf16.msra.mxu0 %v803
        %968 = vmatpush.bf16.msra.mxu0 %v799
        %969 = vmatpush.bf16.msra.mxu0 %v795
        %970 = vmatpush.bf16.msra.mxu0 %v791
        %971 = vmatpush.bf16.msra.mxu0 %v787
        %972 = vmatpush.bf16.msra.mxu0 %v783
        %973 = vmatmul.bf16.gmra.mxu0 %v543
        %v974 = vpop.f32.mrf.mxu0
        %v975 = vadd.f32 %v946, %v974
        %v976 = vpop.f32.mrf.mxu0
        %v977 = vadd.f32 %v948, %v976
        %978 = vmatmul.bf16.gmra.mxu0 %v545
        %v979 = vpop.f32.mrf.mxu0
        %v980 = vadd.f32 %v951, %v979
        %v981 = vpop.f32.mrf.mxu0
        %v982 = vadd.f32 %v953, %v981
        %983 = vmatmul.bf16.gmra.mxu0 %v547
        %v984 = vpop.f32.mrf.mxu0
        %v985 = vadd.f32 %v956, %v984
        %v986 = vpop.f32.mrf.mxu0
        %v987 = vadd.f32 %v958, %v986
        %988 = vmatmul.bf16.gmra.mxu0 %v549
        %v989 = vpop.f32.mrf.mxu0
        %v990 = vadd.f32 %v961, %v989
        %v991 = vpop.f32.mrf.mxu0
        %v992 = vadd.f32 %v963, %v991
        %993 = vdwg.mxu0
        %994 = vmatpush.bf16.msra.mxu0 %v780
        %995 = vmatpush.bf16.msra.mxu0 %v776
        %996 = vmatpush.bf16.msra.mxu0 %v772
        %997 = vmatpush.bf16.msra.mxu0 %v768
        %998 = vmatpush.bf16.msra.mxu0 %v764
        %999 = vmatpush.bf16.msra.mxu0 %v760
        %1000 = vmatpush.bf16.msra.mxu0 %v756
        %1001 = vmatpush.bf16.msra.mxu0 %v752
        %1002 = vmatmul.bf16.gmra.mxu0 %v542
        %v1003 = vpop.f32.mrf.mxu0
        %v1004 = vadd.f32 0.0, %v1003
        %v1005 = vpop.f32.mrf.mxu0
        %v1006 = vadd.f32 0.0, %v1005
        %1007 = vmatmul.bf16.gmra.mxu0 %v544
        %v1008 = vpop.f32.mrf.mxu0
        %v1009 = vadd.f32 0.0, %v1008
        %v1010 = vpop.f32.mrf.mxu0
        %v1011 = vadd.f32 0.0, %v1010
        %1012 = vmatmul.bf16.gmra.mxu0 %v546
        %v1013 = vpop.f32.mrf.mxu0
        %v1014 = vadd.f32 0.0, %v1013
        %v1015 = vpop.f32.mrf.mxu0
        %v1016 = vadd.f32 0.0, %v1015
        %1017 = vmatmul.bf16.gmra.mxu0 %v548
        %v1018 = vpop.f32.mrf.mxu0
        %v1019 = vadd.f32 0.0, %v1018
        %v1020 = vpop.f32.mrf.mxu0
        %v1021 = vadd.f32 0.0, %v1020
        %1022 = vdwg.mxu0
        %1023 = vmatpush.bf16.msra.mxu0 %v812
        %1024 = vmatpush.bf16.msra.mxu0 %v808
        %1025 = vmatpush.bf16.msra.mxu0 %v804
        %1026 = vmatpush.bf16.msra.mxu0 %v800
        %1027 = vmatpush.bf16.msra.mxu0 %v796
        %1028 = vmatpush.bf16.msra.mxu0 %v792
        %1029 = vmatpush.bf16.msra.mxu0 %v788
        %1030 = vmatpush.bf16.msra.mxu0 %v784
        %1031 = vmatmul.bf16.gmra.mxu0 %v543
        %v1032 = vpop.f32.mrf.mxu0
        %v1033 = vadd.f32 %v1004, %v1032
        %v1034 = vpop.f32.mrf.mxu0
        %v1035 = vadd.f32 %v1006, %v1034
        %1036 = vmatmul.bf16.gmra.mxu0 %v545
        %v1037 = vpop.f32.mrf.mxu0
        %v1038 = vadd.f32 %v1009, %v1037
        %v1039 = vpop.f32.mrf.mxu0
        %v1040 = vadd.f32 %v1011, %v1039
        %1041 = vmatmul.bf16.gmra.mxu0 %v547
        %v1042 = vpop.f32.mrf.mxu0
        %v1043 = vadd.f32 %v1014, %v1042
        %v1044 = vpop.f32.mrf.mxu0
        %v1045 = vadd.f32 %v1016, %v1044
        %1046 = vmatmul.bf16.gmra.mxu0 %v549
        %v1047 = vpop.f32.mrf.mxu0
        %v1048 = vadd.f32 %v1019, %v1047
        %v1049 = vpop.f32.mrf.mxu0
        %v1050 = vadd.f32 %v1021, %v1049
        %1051 = vdwg.mxu0
        %1052 = vmatpush.bf16.msra.mxu0 %v781
        %1053 = vmatpush.bf16.msra.mxu0 %v777
        %1054 = vmatpush.bf16.msra.mxu0 %v773
        %1055 = vmatpush.bf16.msra.mxu0 %v769
        %1056 = vmatpush.bf16.msra.mxu0 %v765
        %1057 = vmatpush.bf16.msra.mxu0 %v761
        %1058 = vmatpush.bf16.msra.mxu0 %v757
        %1059 = vmatpush.bf16.msra.mxu0 %v753
        %1060 = vmatmul.bf16.gmra.mxu0 %v542
        %v1061 = vpop.f32.mrf.mxu0
        %v1062 = vadd.f32 0.0, %v1061
        %v1063 = vpop.f32.mrf.mxu0
        %v1064 = vadd.f32 0.0, %v1063
        %1065 = vmatmul.bf16.gmra.mxu0 %v544
        %v1066 = vpop.f32.mrf.mxu0
        %v1067 = vadd.f32 0.0, %v1066
        %v1068 = vpop.f32.mrf.mxu0
        %v1069 = vadd.f32 0.0, %v1068
        %1070 = vmatmul.bf16.gmra.mxu0 %v546
        %v1071 = vpop.f32.mrf.mxu0
        %v1072 = vadd.f32 0.0, %v1071
        %v1073 = vpop.f32.mrf.mxu0
        %v1074 = vadd.f32 0.0, %v1073
        %1075 = vmatmul.bf16.gmra.mxu0 %v548
        %v1076 = vpop.f32.mrf.mxu0
        %v1077 = vadd.f32 0.0, %v1076
        %v1078 = vpop.f32.mrf.mxu0
        %v1079 = vadd.f32 0.0, %v1078
        %1080 = vdwg.mxu0
        %1081 = vmatpush.bf16.msra.mxu0 %v813
        %1082 = vmatpush.bf16.msra.mxu0 %v809
        %1083 = vmatpush.bf16.msra.mxu0 %v805
        %1084 = vmatpush.bf16.msra.mxu0 %v801
        %1085 = vmatpush.bf16.msra.mxu0 %v797
        %1086 = vmatpush.bf16.msra.mxu0 %v793
        %1087 = vmatpush.bf16.msra.mxu0 %v789
        %1088 = vmatpush.bf16.msra.mxu0 %v785
        %1089 = vmatmul.bf16.gmra.mxu0 %v543
        %v1090 = vpop.f32.mrf.mxu0
        %v1091 = vadd.f32 %v1062, %v1090
        %v1092 = vpop.f32.mrf.mxu0
        %v1093 = vadd.f32 %v1064, %v1092
        %1094 = vmatmul.bf16.gmra.mxu0 %v545
        %v1095 = vpop.f32.mrf.mxu0
        %v1096 = vadd.f32 %v1067, %v1095
        %v1097 = vpop.f32.mrf.mxu0
        %v1098 = vadd.f32 %v1069, %v1097
        %1099 = vmatmul.bf16.gmra.mxu0 %v547
        %v1100 = vpop.f32.mrf.mxu0
        %v1101 = vadd.f32 %v1072, %v1100
        %v1102 = vpop.f32.mrf.mxu0
        %v1103 = vadd.f32 %v1074, %v1102
        %1104 = vmatmul.bf16.gmra.mxu0 %v549
        %v1105 = vpop.f32.mrf.mxu0
        %v1106 = vadd.f32 %v1077, %v1105
        %v1107 = vpop.f32.mrf.mxu0
        %v1108 = vadd.f32 %v1079, %v1107
        %1109 = vdwg.mxu0
        %v1110 = vmul.f32 %v917, %v917
        %v1111 = vmul.f32 %v975, %v975
        %v1112 = vmul.f32 %v1033, %v1033
        %v1113 = vmul.f32 %v1091, %v1091
        %v1114 = vmul.f32 %v919, %v919
        %v1115 = vmul.f32 %v977, %v977
        %v1116 = vmul.f32 %v1035, %v1035
        %v1117 = vmul.f32 %v1093, %v1093
        %v1118 = vmul.f32 %v922, %v922
        %v1119 = vmul.f32 %v980, %v980
        %v1120 = vmul.f32 %v1038, %v1038
        %v1121 = vmul.f32 %v1096, %v1096
        %v1122 = vmul.f32 %v924, %v924
        %v1123 = vmul.f32 %v982, %v982
        %v1124 = vmul.f32 %v1040, %v1040
        %v1125 = vmul.f32 %v1098, %v1098
        %v1126 = vmul.f32 %v927, %v927
        %v1127 = vmul.f32 %v985, %v985
        %v1128 = vmul.f32 %v1043, %v1043
        %v1129 = vmul.f32 %v1101, %v1101
        %v1130 = vmul.f32 %v929, %v929
        %v1131 = vmul.f32 %v987, %v987
        %v1132 = vmul.f32 %v1045, %v1045
        %v1133 = vmul.f32 %v1103, %v1103
        %v1134 = vmul.f32 %v932, %v932
        %v1135 = vmul.f32 %v990, %v990
        %v1136 = vmul.f32 %v1048, %v1048
        %v1137 = vmul.f32 %v1106, %v1106
        %v1138 = vmul.f32 %v934, %v934
        %v1139 = vmul.f32 %v992, %v992
        %v1140 = vmul.f32 %v1050, %v1050
        %v1141 = vmul.f32 %v1108, %v1108
        %v1142 = vmul.f32 %v917, %v1110
        %v1143 = vmul.f32 %v975, %v1111
        %v1144 = vmul.f32 %v1033, %v1112
        %v1145 = vmul.f32 %v1091, %v1113
        %v1146 = vmul.f32 %v919, %v1114
        %v1147 = vmul.f32 %v977, %v1115
        %v1148 = vmul.f32 %v1035, %v1116
        %v1149 = vmul.f32 %v1093, %v1117
        %v1150 = vmul.f32 %v922, %v1118
        %v1151 = vmul.f32 %v980, %v1119
        %v1152 = vmul.f32 %v1038, %v1120
        %v1153 = vmul.f32 %v1096, %v1121
        %v1154 = vmul.f32 %v924, %v1122
        %v1155 = vmul.f32 %v982, %v1123
        %v1156 = vmul.f32 %v1040, %v1124
        %v1157 = vmul.f32 %v1098, %v1125
        %v1158 = vmul.f32 %v927, %v1126
        %v1159 = vmul.f32 %v985, %v1127
        %v1160 = vmul.f32 %v1043, %v1128
        %v1161 = vmul.f32 %v1101, %v1129
        %v1162 = vmul.f32 %v929, %v1130
        %v1163 = vmul.f32 %v987, %v1131
        %v1164 = vmul.f32 %v1045, %v1132
        %v1165 = vmul.f32 %v1103, %v1133
        %v1166 = vmul.f32 %v932, %v1134
        %v1167 = vmul.f32 %v990, %v1135
        %v1168 = vmul.f32 %v1048, %v1136
        %v1169 = vmul.f32 %v1106, %v1137
        %v1170 = vmul.f32 %v934, %v1138
        %v1171 = vmul.f32 %v992, %v1139
        %v1172 = vmul.f32 %v1050, %v1140
        %v1173 = vmul.f32 %v1108, %v1141
        %v1174 = vmul.f32 %v1142, 0.044715
        %v1175 = vmul.f32 %v1143, 0.044715
        %v1176 = vmul.f32 %v1144, 0.044715
        %v1177 = vmul.f32 %v1145, 0.044715
        %v1178 = vmul.f32 %v1146, 0.044715
        %v1179 = vmul.f32 %v1147, 0.044715
        %v1180 = vmul.f32 %v1148, 0.044715
        %v1181 = vmul.f32 %v1149, 0.044715
        %v1182 = vmul.f32 %v1150, 0.044715
        %v1183 = vmul.f32 %v1151, 0.044715
        %v1184 = vmul.f32 %v1152, 0.044715
        %v1185 = vmul.f32 %v1153, 0.044715
        %v1186 = vmul.f32 %v1154, 0.044715
        %v1187 = vmul.f32 %v1155, 0.044715
        %v1188 = vmul.f32 %v1156, 0.044715
        %v1189 = vmul.f32 %v1157, 0.044715
        %v1190 = vmul.f32 %v1158, 0.044715
        %v1191 = vmul.f32 %v1159, 0.044715
        %v1192 = vmul.f32 %v1160, 0.044715
        %v1193 = vmul.f32 %v1161, 0.044715
        %v1194 = vmul.f32 %v1162, 0.044715
        %v1195 = vmul.f32 %v1163, 0.044715
        %v1196 = vmul.f32 %v1164, 0.044715
        %v1197 = vmul.f32 %v1165, 0.044715
        %v1198 = vmul.f32 %v1166, 0.044715
        %v1199 = vmul.f32 %v1167, 0.044715
        %v1200 = vmul.f32 %v1168, 0.044715
        %v1201 = vmul.f32 %v1169, 0.044715
        %v1202 = vmul.f32 %v1170, 0.044715
        %v1203 = vmul.f32 %v1171, 0.044715
        %v1204 = vmul.f32 %v1172, 0.044715
        %v1205 = vmul.f32 %v1173, 0.044715
        %v1206 = vadd.f32 %v917, %v1174
        %v1207 = vadd.f32 %v975, %v1175
        %v1208 = vadd.f32 %v1033, %v1176
        %v1209 = vadd.f32 %v1091, %v1177
        %v1210 = vadd.f32 %v919, %v1178
        %v1211 = vadd.f32 %v977, %v1179
        %v1212 = vadd.f32 %v1035, %v1180
        %v1213 = vadd.f32 %v1093, %v1181
        %v1214 = vadd.f32 %v922, %v1182
        %v1215 = vadd.f32 %v980, %v1183
        %v1216 = vadd.f32 %v1038, %v1184
        %v1217 = vadd.f32 %v1096, %v1185
        %v1218 = vadd.f32 %v924, %v1186
        %v1219 = vadd.f32 %v982, %v1187
        %v1220 = vadd.f32 %v1040, %v1188
        %v1221 = vadd.f32 %v1098, %v1189
        %v1222 = vadd.f32 %v927, %v1190
        %v1223 = vadd.f32 %v985, %v1191
        %v1224 = vadd.f32 %v1043, %v1192
        %v1225 = vadd.f32 %v1101, %v1193
        %v1226 = vadd.f32 %v929, %v1194
        %v1227 = vadd.f32 %v987, %v1195
        %v1228 = vadd.f32 %v1045, %v1196
        %v1229 = vadd.f32 %v1103, %v1197
        %v1230 = vadd.f32 %v932, %v1198
        %v1231 = vadd.f32 %v990, %v1199
        %v1232 = vadd.f32 %v1048, %v1200
        %v1233 = vadd.f32 %v1106, %v1201
        %v1234 = vadd.f32 %v934, %v1202
        %v1235 = vadd.f32 %v992, %v1203
        %v1236 = vadd.f32 %v1050, %v1204
        %v1237 = vadd.f32 %v1108, %v1205
        %v1238 = vmul.f32 %v1206, 0.7978846
        %v1239 = vmul.f32 %v1207, 0.7978846
        %v1240 = vmul.f32 %v1208, 0.7978846
        %v1241 = vmul.f32 %v1209, 0.7978846
        %v1242 = vmul.f32 %v1210, 0.7978846
        %v1243 = vmul.f32 %v1211, 0.7978846
        %v1244 = vmul.f32 %v1212, 0.7978846
        %v1245 = vmul.f32 %v1213, 0.7978846
        %v1246 = vmul.f32 %v1214, 0.7978846
        %v1247 = vmul.f32 %v1215, 0.7978846
        %v1248 = vmul.f32 %v1216, 0.7978846
        %v1249 = vmul.f32 %v1217, 0.7978846
        %v1250 = vmul.f32 %v1218, 0.7978846
        %v1251 = vmul.f32 %v1219, 0.7978846
        %v1252 = vmul.f32 %v1220, 0.7978846
        %v1253 = vmul.f32 %v1221, 0.7978846
        %v1254 = vmul.f32 %v1222, 0.7978846
        %v1255 = vmul.f32 %v1223, 0.7978846
        %v1256 = vmul.f32 %v1224, 0.7978846
        %v1257 = vmul.f32 %v1225, 0.7978846
        %v1258 = vmul.f32 %v1226, 0.7978846
        %v1259 = vmul.f32 %v1227, 0.7978846
        %v1260 = vmul.f32 %v1228, 0.7978846
        %v1261 = vmul.f32 %v1229, 0.7978846
        %v1262 = vmul.f32 %v1230, 0.7978846
        %v1263 = vmul.f32 %v1231, 0.7978846
        %v1264 = vmul.f32 %v1232, 0.7978846
        %v1265 = vmul.f32 %v1233, 0.7978846
        %v1266 = vmul.f32 %v1234, 0.7978846
        %v1267 = vmul.f32 %v1235, 0.7978846
        %v1268 = vmul.f32 %v1236, 0.7978846
        %v1269 = vmul.f32 %v1237, 0.7978846
        %v1270 = vtanh.pop %v1238
        %v1271 = vtanh.pop %v1239
        %v1272 = vtanh.pop %v1240
        %v1273 = vtanh.pop %v1241
        %v1274 = vtanh.pop %v1242
        %v1275 = vtanh.pop %v1243
        %v1276 = vtanh.pop %v1244
        %v1277 = vtanh.pop %v1245
        %v1278 = vtanh.pop %v1246
        %v1279 = vtanh.pop %v1247
        %v1280 = vtanh.pop %v1248
        %v1281 = vtanh.pop %v1249
        %v1282 = vtanh.pop %v1250
        %v1283 = vtanh.pop %v1251
        %v1284 = vtanh.pop %v1252
        %v1285 = vtanh.pop %v1253
        %v1286 = vtanh.pop %v1254
        %v1287 = vtanh.pop %v1255
        %v1288 = vtanh.pop %v1256
        %v1289 = vtanh.pop %v1257
        %v1290 = vtanh.pop %v1258
        %v1291 = vtanh.pop %v1259
        %v1292 = vtanh.pop %v1260
        %v1293 = vtanh.pop %v1261
        %v1294 = vtanh.pop %v1262
        %v1295 = vtanh.pop %v1263
        %v1296 = vtanh.pop %v1264
        %v1297 = vtanh.pop %v1265
        %v1298 = vtanh.pop %v1266
        %v1299 = vtanh.pop %v1267
        %v1300 = vtanh.pop %v1268
        %v1301 = vtanh.pop %v1269
        %v1302 = vadd.f32 %v1270, 1.0
        %v1303 = vadd.f32 %v1271, 1.0
        %v1304 = vadd.f32 %v1272, 1.0
        %v1305 = vadd.f32 %v1273, 1.0
        %v1306 = vadd.f32 %v1274, 1.0
        %v1307 = vadd.f32 %v1275, 1.0
        %v1308 = vadd.f32 %v1276, 1.0
        %v1309 = vadd.f32 %v1277, 1.0
        %v1310 = vadd.f32 %v1278, 1.0
        %v1311 = vadd.f32 %v1279, 1.0
        %v1312 = vadd.f32 %v1280, 1.0
        %v1313 = vadd.f32 %v1281, 1.0
        %v1314 = vadd.f32 %v1282, 1.0
        %v1315 = vadd.f32 %v1283, 1.0
        %v1316 = vadd.f32 %v1284, 1.0
        %v1317 = vadd.f32 %v1285, 1.0
        %v1318 = vadd.f32 %v1286, 1.0
        %v1319 = vadd.f32 %v1287, 1.0
        %v1320 = vadd.f32 %v1288, 1.0
        %v1321 = vadd.f32 %v1289, 1.0
        %v1322 = vadd.f32 %v1290, 1.0
        %v1323 = vadd.f32 %v1291, 1.0
        %v1324 = vadd.f32 %v1292, 1.0
        %v1325 = vadd.f32 %v1293, 1.0
        %v1326 = vadd.f32 %v1294, 1.0
        %v1327 = vadd.f32 %v1295, 1.0
        %v1328 = vadd.f32 %v1296, 1.0
        %v1329 = vadd.f32 %v1297, 1.0
        %v1330 = vadd.f32 %v1298, 1.0
        %v1331 = vadd.f32 %v1299, 1.0
        %v1332 = vadd.f32 %v1300, 1.0
        %v1333 = vadd.f32 %v1301, 1.0
        %v1334 = vmul.f32 %v1302, 0.5
        %v1335 = vmul.f32 %v1303, 0.5
        %v1336 = vmul.f32 %v1304, 0.5
        %v1337 = vmul.f32 %v1305, 0.5
        %v1338 = vmul.f32 %v1306, 0.5
        %v1339 = vmul.f32 %v1307, 0.5
        %v1340 = vmul.f32 %v1308, 0.5
        %v1341 = vmul.f32 %v1309, 0.5
        %v1342 = vmul.f32 %v1310, 0.5
        %v1343 = vmul.f32 %v1311, 0.5
        %v1344 = vmul.f32 %v1312, 0.5
        %v1345 = vmul.f32 %v1313, 0.5
        %v1346 = vmul.f32 %v1314, 0.5
        %v1347 = vmul.f32 %v1315, 0.5
        %v1348 = vmul.f32 %v1316, 0.5
        %v1349 = vmul.f32 %v1317, 0.5
        %v1350 = vmul.f32 %v1318, 0.5
        %v1351 = vmul.f32 %v1319, 0.5
        %v1352 = vmul.f32 %v1320, 0.5
        %v1353 = vmul.f32 %v1321, 0.5
        %v1354 = vmul.f32 %v1322, 0.5
        %v1355 = vmul.f32 %v1323, 0.5
        %v1356 = vmul.f32 %v1324, 0.5
        %v1357 = vmul.f32 %v1325, 0.5
        %v1358 = vmul.f32 %v1326, 0.5
        %v1359 = vmul.f32 %v1327, 0.5
        %v1360 = vmul.f32 %v1328, 0.5
        %v1361 = vmul.f32 %v1329, 0.5
        %v1362 = vmul.f32 %v1330, 0.5
        %v1363 = vmul.f32 %v1331, 0.5
        %v1364 = vmul.f32 %v1332, 0.5
        %v1365 = vmul.f32 %v1333, 0.5
        %v1366 = vmul.f32 %v917, %v1334
        %v1367 = vmul.f32 %v975, %v1335
        %v1368 = vmul.f32 %v1033, %v1336
        %v1369 = vmul.f32 %v1091, %v1337
        %v1370 = vmul.f32 %v919, %v1338
        %v1371 = vmul.f32 %v977, %v1339
        %v1372 = vmul.f32 %v1035, %v1340
        %v1373 = vmul.f32 %v1093, %v1341
        %v1374 = vmul.f32 %v922, %v1342
        %v1375 = vmul.f32 %v980, %v1343
        %v1376 = vmul.f32 %v1038, %v1344
        %v1377 = vmul.f32 %v1096, %v1345
        %v1378 = vmul.f32 %v924, %v1346
        %v1379 = vmul.f32 %v982, %v1347
        %v1380 = vmul.f32 %v1040, %v1348
        %v1381 = vmul.f32 %v1098, %v1349
        %v1382 = vmul.f32 %v927, %v1350
        %v1383 = vmul.f32 %v985, %v1351
        %v1384 = vmul.f32 %v1043, %v1352
        %v1385 = vmul.f32 %v1101, %v1353
        %v1386 = vmul.f32 %v929, %v1354
        %v1387 = vmul.f32 %v987, %v1355
        %v1388 = vmul.f32 %v1045, %v1356
        %v1389 = vmul.f32 %v1103, %v1357
        %v1390 = vmul.f32 %v932, %v1358
        %v1391 = vmul.f32 %v990, %v1359
        %v1392 = vmul.f32 %v1048, %v1360
        %v1393 = vmul.f32 %v1106, %v1361
        %v1394 = vmul.f32 %v934, %v1362
        %v1395 = vmul.f32 %v992, %v1363
        %v1396 = vmul.f32 %v1050, %v1364
        %v1397 = vmul.f32 %v1108, %v1365
        %v1398 = vld [vmem:[#allocation2] sm:$0xff]
        %v1399 = vld [vmem:[#allocation2 + $0x8] sm:$0xff]
        %v1400 = vld [vmem:[#allocation2 + $0x10] sm:$0xff]
        %v1401 = vld [vmem:[#allocation2 + $0x18] sm:$0xff]
        %v1402 = vld [vmem:[#allocation2 + $0x20] sm:$0xff]
        %v1403 = vld [vmem:[#allocation2 + $0x28] sm:$0xff]
        %v1404 = vld [vmem:[#allocation2 + $0x30] sm:$0xff]
        %v1405 = vld [vmem:[#allocation2 + $0x38] sm:$0xff]
        %v1406 = vld [vmem:[#allocation2 + $0x40] sm:$0xff]
        %v1407 = vld [vmem:[#allocation2 + $0x48] sm:$0xff]
        %v1408 = vld [vmem:[#allocation2 + $0x50] sm:$0xff]
        %v1409 = vld [vmem:[#allocation2 + $0x58] sm:$0xff]
        %v1410 = vld [vmem:[#allocation2 + $0x60] sm:$0xff]
        %v1411 = vld [vmem:[#allocation2 + $0x68] sm:$0xff]
        %v1412 = vld [vmem:[#allocation2 + $0x70] sm:$0xff]
        %v1413 = vld [vmem:[#allocation2 + $0x78] sm:$0xff]
        %v1414 = vpack.c.bf16 %v1370, %v1366
        %v1415 = vpack.c.bf16 %v1371, %v1367
        %v1416 = vpack.c.bf16 %v1372, %v1368
        %v1417 = vpack.c.bf16 %v1373, %v1369
        %v1418 = vpack.c.bf16 %v1378, %v1374
        %v1419 = vpack.c.bf16 %v1379, %v1375
        %v1420 = vpack.c.bf16 %v1380, %v1376
        %v1421 = vpack.c.bf16 %v1381, %v1377
        %v1422 = vpack.c.bf16 %v1386, %v1382
        %v1423 = vpack.c.bf16 %v1387, %v1383
        %v1424 = vpack.c.bf16 %v1388, %v1384
        %v1425 = vpack.c.bf16 %v1389, %v1385
        %v1426 = vpack.c.bf16 %v1394, %v1390
        %v1427 = vpack.c.bf16 %v1395, %v1391
        %v1428 = vpack.c.bf16 %v1396, %v1392
        %v1429 = vpack.c.bf16 %v1397, %v1393
        %v1430 = vld [vmem:[%s351] sm:$0xff]
        %v1431 = vld [vmem:[%s351 + $0x8] sm:$0xff]
        %v1432 = vld [vmem:[%s351 + $0x10] sm:$0xff]
        %v1433 = vld [vmem:[%s351 + $0x18] sm:$0xff]
        %v1434 = vld [vmem:[%s351 + $0x20] sm:$0xff]
        %v1435 = vld [vmem:[%s351 + $0x28] sm:$0xff]
        %v1436 = vld [vmem:[%s351 + $0x30] sm:$0xff]
        %v1437 = vld [vmem:[%s351 + $0x38] sm:$0xff]
        %v1438 = vld [vmem:[%s351 + $0x40] sm:$0xff]
        %v1439 = vld [vmem:[%s351 + $0x48] sm:$0xff]
        %v1440 = vld [vmem:[%s351 + $0x50] sm:$0xff]
        %v1441 = vld [vmem:[%s351 + $0x58] sm:$0xff]
        %v1442 = vld [vmem:[%s351 + $0x60] sm:$0xff]
        %v1443 = vld [vmem:[%s351 + $0x68] sm:$0xff]
        %v1444 = vld [vmem:[%s351 + $0x70] sm:$0xff]
        %v1445 = vld [vmem:[%s351 + $0x78] sm:$0xff]
        %v1446 = vld [vmem:[%s351 + $0x80] sm:$0xff]
        %v1447 = vld [vmem:[%s351 + $0x88] sm:$0xff]
        %v1448 = vld [vmem:[%s351 + $0x90] sm:$0xff]
        %v1449 = vld [vmem:[%s351 + $0x98] sm:$0xff]
        %v1450 = vld [vmem:[%s351 + $0xa0] sm:$0xff]
        %v1451 = vld [vmem:[%s351 + $0xa8] sm:$0xff]
        %v1452 = vld [vmem:[%s351 + $0xb0] sm:$0xff]
        %v1453 = vld [vmem:[%s351 + $0xb8] sm:$0xff]
        %v1454 = vld [vmem:[%s351 + $0xc0] sm:$0xff]
        %v1455 = vld [vmem:[%s351 + $0xc8] sm:$0xff]
        %v1456 = vld [vmem:[%s351 + $0xd0] sm:$0xff]
        %v1457 = vld [vmem:[%s351 + $0xd8] sm:$0xff]
        %v1458 = vld [vmem:[%s351 + $0xe0] sm:$0xff]
        %v1459 = vld [vmem:[%s351 + $0xe8] sm:$0xff]
        %v1460 = vld [vmem:[%s351 + $0xf0] sm:$0xff]
        %v1461 = vld [vmem:[%s351 + $0xf8] sm:$0xff]
        %v1462 = vld [vmem:[%s351 + $0x100] sm:$0xff]
        %v1463 = vld [vmem:[%s351 + $0x108] sm:$0xff]
        %v1464 = vld [vmem:[%s351 + $0x110] sm:$0xff]
        %v1465 = vld [vmem:[%s351 + $0x118] sm:$0xff]
        %v1466 = vld [vmem:[%s351 + $0x120] sm:$0xff]
        %v1467 = vld [vmem:[%s351 + $0x128] sm:$0xff]
        %v1468 = vld [vmem:[%s351 + $0x130] sm:$0xff]
        %v1469 = vld [vmem:[%s351 + $0x138] sm:$0xff]
        %v1470 = vld [vmem:[%s351 + $0x140] sm:$0xff]
        %v1471 = vld [vmem:[%s351 + $0x148] sm:$0xff]
        %v1472 = vld [vmem:[%s351 + $0x150] sm:$0xff]
        %v1473 = vld [vmem:[%s351 + $0x158] sm:$0xff]
        %v1474 = vld [vmem:[%s351 + $0x160] sm:$0xff]
        %v1475 = vld [vmem:[%s351 + $0x168] sm:$0xff]
        %v1476 = vld [vmem:[%s351 + $0x170] sm:$0xff]
        %v1477 = vld [vmem:[%s351 + $0x178] sm:$0xff]
        %v1478 = vld [vmem:[%s351 + $0x180] sm:$0xff]
        %v1479 = vld [vmem:[%s351 + $0x188] sm:$0xff]
        %v1480 = vld [vmem:[%s351 + $0x190] sm:$0xff]
        %v1481 = vld [vmem:[%s351 + $0x198] sm:$0xff]
        %v1482 = vld [vmem:[%s351 + $0x1a0] sm:$0xff]
        %v1483 = vld [vmem:[%s351 + $0x1a8] sm:$0xff]
        %v1484 = vld [vmem:[%s351 + $0x1b0] sm:$0xff]
        %v1485 = vld [vmem:[%s351 + $0x1b8] sm:$0xff]
        %v1486 = vld [vmem:[%s351 + $0x1c0] sm:$0xff]
        %v1487 = vld [vmem:[%s351 + $0x1c8] sm:$0xff]
        %v1488 = vld [vmem:[%s351 + $0x1d0] sm:$0xff]
        %v1489 = vld [vmem:[%s351 + $0x1d8] sm:$0xff]
        %v1490 = vld [vmem:[%s351 + $0x1e0] sm:$0xff]
        %v1491 = vld [vmem:[%s351 + $0x1e8] sm:$0xff]
        %v1492 = vld [vmem:[%s351 + $0x1f0] sm:$0xff]
        %v1493 = vld [vmem:[%s351 + $0x1f8] sm:$0xff]
        %v1558 = vunpack.c.l.b16 %v1430
        %v1559 = vunpack.c.h.b16 %v1430
        %v1560 = vunpack.c.l.b16 %v1431
        %v1561 = vunpack.c.h.b16 %v1431
        %v1562 = vunpack.c.l.b16 %v1432
        %v1563 = vunpack.c.h.b16 %v1432
        %v1564 = vunpack.c.l.b16 %v1433
        %v1565 = vunpack.c.h.b16 %v1433
        %v1566 = vunpack.c.l.b16 %v1434
        %v1567 = vunpack.c.h.b16 %v1434
        %v1568 = vunpack.c.l.b16 %v1435
        %v1569 = vunpack.c.h.b16 %v1435
        %v1570 = vunpack.c.l.b16 %v1436
        %v1571 = vunpack.c.h.b16 %v1436
        %v1572 = vunpack.c.l.b16 %v1437
        %v1573 = vunpack.c.h.b16 %v1437
        %v1574 = vunpack.c.l.b16 %v1438
        %v1575 = vunpack.c.h.b16 %v1438
        %v1576 = vunpack.c.l.b16 %v1439
        %v1577 = vunpack.c.h.b16 %v1439
        %v1578 = vunpack.c.l.b16 %v1440
        %v1579 = vunpack.c.h.b16 %v1440
        %v1580 = vunpack.c.l.b16 %v1441
        %v1581 = vunpack.c.h.b16 %v1441
        %v1582 = vunpack.c.l.b16 %v1442
        %v1583 = vunpack.c.h.b16 %v1442
        %v1584 = vunpack.c.l.b16 %v1443
        %v1585 = vunpack.c.h.b16 %v1443
        %v1586 = vunpack.c.l.b16 %v1444
        %v1587 = vunpack.c.h.b16 %v1444
        %v1588 = vunpack.c.l.b16 %v1445
        %v1589 = vunpack.c.h.b16 %v1445
        %v1590 = vunpack.c.l.b16 %v1446
        %v1591 = vunpack.c.h.b16 %v1446
        %v1592 = vunpack.c.l.b16 %v1447
        %v1593 = vunpack.c.h.b16 %v1447
        %v1594 = vunpack.c.l.b16 %v1448
        %v1595 = vunpack.c.h.b16 %v1448
        %v1596 = vunpack.c.l.b16 %v1449
        %v1597 = vunpack.c.h.b16 %v1449
        %v1598 = vunpack.c.l.b16 %v1450
        %v1599 = vunpack.c.h.b16 %v1450
        %v1600 = vunpack.c.l.b16 %v1451
        %v1601 = vunpack.c.h.b16 %v1451
        %v1602 = vunpack.c.l.b16 %v1452
        %v1603 = vunpack.c.h.b16 %v1452
        %v1604 = vunpack.c.l.b16 %v1453
        %v1605 = vunpack.c.h.b16 %v1453
        %v1606 = vunpack.c.l.b16 %v1454
        %v1607 = vunpack.c.h.b16 %v1454
        %v1608 = vunpack.c.l.b16 %v1455
        %v1609 = vunpack.c.h.b16 %v1455
        %v1610 = vunpack.c.l.b16 %v1456
        %v1611 = vunpack.c.h.b16 %v1456
        %v1612 = vunpack.c.l.b16 %v1457
        %v1613 = vunpack.c.h.b16 %v1457
        %v1614 = vunpack.c.l.b16 %v1458
        %v1615 = vunpack.c.h.b16 %v1458
        %v1616 = vunpack.c.l.b16 %v1459
        %v1617 = vunpack.c.h.b16 %v1459
        %v1618 = vunpack.c.l.b16 %v1460
        %v1619 = vunpack.c.h.b16 %v1460
        %v1620 = vunpack.c.l.b16 %v1461
        %v1621 = vunpack.c.h.b16 %v1461
        %v1622 = vunpack.c.l.b16 %v1462
        %v1623 = vunpack.c.h.b16 %v1462
        %v1624 = vunpack.c.l.b16 %v1463
        %v1625 = vunpack.c.h.b16 %v1463
        %v1626 = vunpack.c.l.b16 %v1464
        %v1627 = vunpack.c.h.b16 %v1464
        %v1628 = vunpack.c.l.b16 %v1465
        %v1629 = vunpack.c.h.b16 %v1465
        %v1630 = vunpack.c.l.b16 %v1466
        %v1631 = vunpack.c.h.b16 %v1466
        %v1632 = vunpack.c.l.b16 %v1467
        %v1633 = vunpack.c.h.b16 %v1467
        %v1634 = vunpack.c.l.b16 %v1468
        %v1635 = vunpack.c.h.b16 %v1468
        %v1636 = vunpack.c.l.b16 %v1469
        %v1637 = vunpack.c.h.b16 %v1469
        %v1638 = vunpack.c.l.b16 %v1470
        %v1639 = vunpack.c.h.b16 %v1470
        %v1640 = vunpack.c.l.b16 %v1471
        %v1641 = vunpack.c.h.b16 %v1471
        %v1642 = vunpack.c.l.b16 %v1472
        %v1643 = vunpack.c.h.b16 %v1472
        %v1644 = vunpack.c.l.b16 %v1473
        %v1645 = vunpack.c.h.b16 %v1473
        %v1646 = vunpack.c.l.b16 %v1474
        %v1647 = vunpack.c.h.b16 %v1474
        %v1648 = vunpack.c.l.b16 %v1475
        %v1649 = vunpack.c.h.b16 %v1475
        %v1650 = vunpack.c.l.b16 %v1476
        %v1651 = vunpack.c.h.b16 %v1476
        %v1652 = vunpack.c.l.b16 %v1477
        %v1653 = vunpack.c.h.b16 %v1477
        %v1654 = vunpack.c.l.b16 %v1478
        %v1655 = vunpack.c.h.b16 %v1478
        %v1656 = vunpack.c.l.b16 %v1479
        %v1657 = vunpack.c.h.b16 %v1479
        %v1658 = vunpack.c.l.b16 %v1480
        %v1659 = vunpack.c.h.b16 %v1480
        %v1660 = vunpack.c.l.b16 %v1481
        %v1661 = vunpack.c.h.b16 %v1481
        %v1662 = vunpack.c.l.b16 %v1482
        %v1663 = vunpack.c.h.b16 %v1482
        %v1664 = vunpack.c.l.b16 %v1483
        %v1665 = vunpack.c.h.b16 %v1483
        %v1666 = vunpack.c.l.b16 %v1484
        %v1667 = vunpack.c.h.b16 %v1484
        %v1668 = vunpack.c.l.b16 %v1485
        %v1669 = vunpack.c.h.b16 %v1485
        %v1670 = vunpack.c.l.b16 %v1486
        %v1671 = vunpack.c.h.b16 %v1486
        %v1672 = vunpack.c.l.b16 %v1487
        %v1673 = vunpack.c.h.b16 %v1487
        %v1674 = vunpack.c.l.b16 %v1488
        %v1675 = vunpack.c.h.b16 %v1488
        %v1676 = vunpack.c.l.b16 %v1489
        %v1677 = vunpack.c.h.b16 %v1489
        %v1678 = vunpack.c.l.b16 %v1490
        %v1679 = vunpack.c.h.b16 %v1490
        %v1680 = vunpack.c.l.b16 %v1491
        %v1681 = vunpack.c.h.b16 %v1491
        %v1682 = vunpack.c.l.b16 %v1492
        %v1683 = vunpack.c.h.b16 %v1492
        %v1684 = vunpack.c.l.b16 %v1493
        %v1685 = vunpack.c.h.b16 %v1493
        %v1686 = vpack.c.b16 %v1560, %v1558
        %v1687 = vpack.c.b16 %v1561, %v1559
        %v1688 = vpack.c.b16 %v1564, %v1562
        %v1689 = vpack.c.b16 %v1565, %v1563
        %v1690 = vpack.c.b16 %v1568, %v1566
        %v1691 = vpack.c.b16 %v1569, %v1567
        %v1692 = vpack.c.b16 %v1572, %v1570
        %v1693 = vpack.c.b16 %v1573, %v1571
        %v1694 = vpack.c.b16 %v1576, %v1574
        %v1695 = vpack.c.b16 %v1577, %v1575
        %v1696 = vpack.c.b16 %v1580, %v1578
        %v1697 = vpack.c.b16 %v1581, %v1579
        %v1698 = vpack.c.b16 %v1584, %v1582
        %v1699 = vpack.c.b16 %v1585, %v1583
        %v1700 = vpack.c.b16 %v1588, %v1586
        %v1701 = vpack.c.b16 %v1589, %v1587
        %v1702 = vpack.c.b16 %v1592, %v1590
        %v1703 = vpack.c.b16 %v1593, %v1591
        %v1704 = vpack.c.b16 %v1596, %v1594
        %v1705 = vpack.c.b16 %v1597, %v1595
        %v1706 = vpack.c.b16 %v1600, %v1598
        %v1707 = vpack.c.b16 %v1601, %v1599
        %v1708 = vpack.c.b16 %v1604, %v1602
        %v1709 = vpack.c.b16 %v1605, %v1603
        %v1710 = vpack.c.b16 %v1608, %v1606
        %v1711 = vpack.c.b16 %v1609, %v1607
        %v1712 = vpack.c.b16 %v1612, %v1610
        %v1713 = vpack.c.b16 %v1613, %v1611
        %v1714 = vpack.c.b16 %v1616, %v1614
        %v1715 = vpack.c.b16 %v1617, %v1615
        %v1716 = vpack.c.b16 %v1620, %v1618
        %v1717 = vpack.c.b16 %v1621, %v1619
        %v1718 = vpack.c.b16 %v1624, %v1622
        %v1719 = vpack.c.b16 %v1625, %v1623
        %v1720 = vpack.c.b16 %v1628, %v1626
        %v1721 = vpack.c.b16 %v1629, %v1627
        %v1722 = vpack.c.b16 %v1632, %v1630
        %v1723 = vpack.c.b16 %v1633, %v1631
        %v1724 = vpack.c.b16 %v1636, %v1634
        %v1725 = vpack.c.b16 %v1637, %v1635
        %v1726 = vpack.c.b16 %v1640, %v1638
        %v1727 = vpack.c.b16 %v1641, %v1639
        %v1728 = vpack.c.b16 %v1644, %v1642
        %v1729 = vpack.c.b16 %v1645, %v1643
        %v1730 = vpack.c.b16 %v1648, %v1646
        %v1731 = vpack.c.b16 %v1649, %v1647
        %v1732 = vpack.c.b16 %v1652, %v1650
        %v1733 = vpack.c.b16 %v1653, %v1651
        %v1734 = vpack.c.b16 %v1656, %v1654
        %v1735 = vpack.c.b16 %v1657, %v1655
        %v1736 = vpack.c.b16 %v1660, %v1658
        %v1737 = vpack.c.b16 %v1661, %v1659
        %v1738 = vpack.c.b16 %v1664, %v1662
        %v1739 = vpack.c.b16 %v1665, %v1663
        %v1740 = vpack.c.b16 %v1668, %v1666
        %v1741 = vpack.c.b16 %v1669, %v1667
        %v1742 = vpack.c.b16 %v1672, %v1670
        %v1743 = vpack.c.b16 %v1673, %v1671
        %v1744 = vpack.c.b16 %v1676, %v1674
        %v1745 = vpack.c.b16 %v1677, %v1675
        %v1746 = vpack.c.b16 %v1680, %v1678
        %v1747 = vpack.c.b16 %v1681, %v1679
        %v1748 = vpack.c.b16 %v1684, %v1682
        %v1749 = vpack.c.b16 %v1685, %v1683
        %1814 = vmatpush.bf16.msra.mxu0 %v1700
        %1815 = vmatpush.bf16.msra.mxu0 %v1698
        %1816 = vmatpush.bf16.msra.mxu0 %v1696
        %1817 = vmatpush.bf16.msra.mxu0 %v1694
        %1818 = vmatpush.bf16.msra.mxu0 %v1692
        %1819 = vmatpush.bf16.msra.mxu0 %v1690
        %1820 = vmatpush.bf16.msra.mxu0 %v1688
        %1821 = vmatpush.bf16.msra.mxu0 %v1686
        %1822 = vmatmul.bf16.gmra.mxu0 %v1414
        %v1823 = vpop.f32.mrf.mxu0
        %v1824 = vadd.f32 0.0, %v1823
        %v1825 = vpop.f32.mrf.mxu0
        %v1826 = vadd.f32 0.0, %v1825
        %1827 = vmatmul.bf16.gmra.mxu0 %v1418
        %v1828 = vpop.f32.mrf.mxu0
        %v1829 = vadd.f32 0.0, %v1828
        %v1830 = vpop.f32.mrf.mxu0
        %v1831 = vadd.f32 0.0, %v1830
        %1832 = vmatmul.bf16.gmra.mxu0 %v1422
        %v1833 = vpop.f32.mrf.mxu0
        %v1834 = vadd.f32 0.0, %v1833
        %v1835 = vpop.f32.mrf.mxu0
        %v1836 = vadd.f32 0.0, %v1835
        %1837 = vmatmul.bf16.gmra.mxu0 %v1426
        %v1838 = vpop.f32.mrf.mxu0
        %v1839 = vadd.f32 0.0, %v1838
        %v1840 = vpop.f32.mrf.mxu0
        %v1841 = vadd.f32 0.0, %v1840
        %1842 = vdwg.mxu0
        %1843 = vmatpush.bf16.msra.mxu0 %v1716
        %1844 = vmatpush.bf16.msra.mxu0 %v1714
        %1845 = vmatpush.bf16.msra.mxu0 %v1712
        %1846 = vmatpush.bf16.msra.mxu0 %v1710
        %1847 = vmatpush.bf16.msra.mxu0 %v1708
        %1848 = vmatpush.bf16.msra.mxu0 %v1706
        %1849 = vmatpush.bf16.msra.mxu0 %v1704
        %1850 = vmatpush.bf16.msra.mxu0 %v1702
        %1851 = vmatmul.bf16.gmra.mxu0 %v1415
        %v1852 = vpop.f32.mrf.mxu0
        %v1853 = vadd.f32 %v1824, %v1852
        %v1854 = vpop.f32.mrf.mxu0
        %v1855 = vadd.f32 %v1826, %v1854
        %1856 = vmatmul.bf16.gmra.mxu0 %v1419
        %v1857 = vpop.f32.mrf.mxu0
        %v1858 = vadd.f32 %v1829, %v1857
        %v1859 = vpop.f32.mrf.mxu0
        %v1860 = vadd.f32 %v1831, %v1859
        %1861 = vmatmul.bf16.gmra.mxu0 %v1423
        %v1862 = vpop.f32.mrf.mxu0
        %v1863 = vadd.f32 %v1834, %v1862
        %v1864 = vpop.f32.mrf.mxu0
        %v1865 = vadd.f32 %v1836, %v1864
        %1866 = vmatmul.bf16.gmra.mxu0 %v1427
        %v1867 = vpop.f32.mrf.mxu0
        %v1868 = vadd.f32 %v1839, %v1867
        %v1869 = vpop.f32.mrf.mxu0
        %v1870 = vadd.f32 %v1841, %v1869
        %1871 = vdwg.mxu0
        %1872 = vmatpush.bf16.msra.mxu0 %v1732
        %1873 = vmatpush.bf16.msra.mxu0 %v1730
        %1874 = vmatpush.bf16.msra.mxu0 %v1728
        %1875 = vmatpush.bf16.msra.mxu0 %v1726
        %1876 = vmatpush.bf16.msra.mxu0 %v1724
        %1877 = vmatpush.bf16.msra.mxu0 %v1722
        %1878 = vmatpush.bf16.msra.mxu0 %v1720
        %1879 = vmatpush.bf16.msra.mxu0 %v1718
        %1880 = vmatmul.bf16.gmra.mxu0 %v1416
        %v1881 = vpop.f32.mrf.mxu0
        %v1882 = vadd.f32 %v1853, %v1881
        %v1883 = vpop.f32.mrf.mxu0
        %v1884 = vadd.f32 %v1855, %v1883
        %1885 = vmatmul.bf16.gmra.mxu0 %v1420
        %v1886 = vpop.f32.mrf.mxu0
        %v1887 = vadd.f32 %v1858, %v1886
        %v1888 = vpop.f32.mrf.mxu0
        %v1889 = vadd.f32 %v1860, %v1888
        %1890 = vmatmul.bf16.gmra.mxu0 %v1424
        %v1891 = vpop.f32.mrf.mxu0
        %v1892 = vadd.f32 %v1863, %v1891
        %v1893 = vpop.f32.mrf.mxu0
        %v1894 = vadd.f32 %v1865, %v1893
        %1895 = vmatmul.bf16.gmra.mxu0 %v1428
        %v1896 = vpop.f32.mrf.mxu0
        %v1897 = vadd.f32 %v1868, %v1896
        %v1898 = vpop.f32.mrf.mxu0
        %v1899 = vadd.f32 %v1870, %v1898
        %1900 = vdwg.mxu0
        %1901 = vmatpush.bf16.msra.mxu0 %v1748
        %1902 = vmatpush.bf16.msra.mxu0 %v1746
        %1903 = vmatpush.bf16.msra.mxu0 %v1744
        %1904 = vmatpush.bf16.msra.mxu0 %v1742
        %1905 = vmatpush.bf16.msra.mxu0 %v1740
        %1906 = vmatpush.bf16.msra.mxu0 %v1738
        %1907 = vmatpush.bf16.msra.mxu0 %v1736
        %1908 = vmatpush.bf16.msra.mxu0 %v1734
        %1909 = vmatmul.bf16.gmra.mxu0 %v1417
        %v1910 = vpop.f32.mrf.mxu0
        %v1911 = vadd.f32 %v1882, %v1910
        %v1912 = vpop.f32.mrf.mxu0
        %v1913 = vadd.f32 %v1884, %v1912
        %1914 = vmatmul.bf16.gmra.mxu0 %v1421
        %v1915 = vpop.f32.mrf.mxu0
        %v1916 = vadd.f32 %v1887, %v1915
        %v1917 = vpop.f32.mrf.mxu0
        %v1918 = vadd.f32 %v1889, %v1917
        %1919 = vmatmul.bf16.gmra.mxu0 %v1425
        %v1920 = vpop.f32.mrf.mxu0
        %v1921 = vadd.f32 %v1892, %v1920
        %v1922 = vpop.f32.mrf.mxu0
        %v1923 = vadd.f32 %v1894, %v1922
        %1924 = vmatmul.bf16.gmra.mxu0 %v1429
        %v1925 = vpop.f32.mrf.mxu0
        %v1926 = vadd.f32 %v1897, %v1925
        %v1927 = vpop.f32.mrf.mxu0
        %v1928 = vadd.f32 %v1899, %v1927
        %1929 = vdwg.mxu0
        %1930 = vmatpush.bf16.msra.mxu0 %v1701
        %1931 = vmatpush.bf16.msra.mxu0 %v1699
        %1932 = vmatpush.bf16.msra.mxu0 %v1697
        %1933 = vmatpush.bf16.msra.mxu0 %v1695
        %1934 = vmatpush.bf16.msra.mxu0 %v1693
        %1935 = vmatpush.bf16.msra.mxu0 %v1691
        %1936 = vmatpush.bf16.msra.mxu0 %v1689
        %1937 = vmatpush.bf16.msra.mxu0 %v1687
        %1938 = vmatmul.bf16.gmra.mxu0 %v1414
        %v1939 = vpop.f32.mrf.mxu0
        %v1940 = vadd.f32 0.0, %v1939
        %v1941 = vpop.f32.mrf.mxu0
        %v1942 = vadd.f32 0.0, %v1941
        %1943 = vmatmul.bf16.gmra.mxu0 %v1418
        %v1944 = vpop.f32.mrf.mxu0
        %v1945 = vadd.f32 0.0, %v1944
        %v1946 = vpop.f32.mrf.mxu0
        %v1947 = vadd.f32 0.0, %v1946
        %1948 = vmatmul.bf16.gmra.mxu0 %v1422
        %v1949 = vpop.f32.mrf.mxu0
        %v1950 = vadd.f32 0.0, %v1949
        %v1951 = vpop.f32.mrf.mxu0
        %v1952 = vadd.f32 0.0, %v1951
        %1953 = vmatmul.bf16.gmra.mxu0 %v1426
        %v1954 = vpop.f32.mrf.mxu0
        %v1955 = vadd.f32 0.0, %v1954
        %v1956 = vpop.f32.mrf.mxu0
        %v1957 = vadd.f32 0.0, %v1956
        %1958 = vdwg.mxu0
        %1959 = vmatpush.bf16.msra.mxu0 %v1717
        %1960 = vmatpush.bf16.msra.mxu0 %v1715
        %1961 = vmatpush.bf16.msra.mxu0 %v1713
        %1962 = vmatpush.bf16.msra.mxu0 %v1711
        %1963 = vmatpush.bf16.msra.mxu0 %v1709
        %1964 = vmatpush.bf16.msra.mxu0 %v1707
        %1965 = vmatpush.bf16.msra.mxu0 %v1705
        %1966 = vmatpush.bf16.msra.mxu0 %v1703
        %1967 = vmatmul.bf16.gmra.mxu0 %v1415
        %v1968 = vpop.f32.mrf.mxu0
        %v1969 = vadd.f32 %v1940, %v1968
        %v1970 = vpop.f32.mrf.mxu0
        %v1971 = vadd.f32 %v1942, %v1970
        %1972 = vmatmul.bf16.gmra.mxu0 %v1419
        %v1973 = vpop.f32.mrf.mxu0
        %v1974 = vadd.f32 %v1945, %v1973
        %v1975 = vpop.f32.mrf.mxu0
        %v1976 = vadd.f32 %v1947, %v1975
        %1977 = vmatmul.bf16.gmra.mxu0 %v1423
        %v1978 = vpop.f32.mrf.mxu0
        %v1979 = vadd.f32 %v1950, %v1978
        %v1980 = vpop.f32.mrf.mxu0
        %v1981 = vadd.f32 %v1952, %v1980
        %1982 = vmatmul.bf16.gmra.mxu0 %v1427
        %v1983 = vpop.f32.mrf.mxu0
        %v1984 = vadd.f32 %v1955, %v1983
        %v1985 = vpop.f32.mrf.mxu0
        %v1986 = vadd.f32 %v1957, %v1985
        %1987 = vdwg.mxu0
        %1988 = vmatpush.bf16.msra.mxu0 %v1733
        %1989 = vmatpush.bf16.msra.mxu0 %v1731
        %1990 = vmatpush.bf16.msra.mxu0 %v1729
        %1991 = vmatpush.bf16.msra.mxu0 %v1727
        %1992 = vmatpush.bf16.msra.mxu0 %v1725
        %1993 = vmatpush.bf16.msra.mxu0 %v1723
        %1994 = vmatpush.bf16.msra.mxu0 %v1721
        %1995 = vmatpush.bf16.msra.mxu0 %v1719
        %1996 = vmatmul.bf16.gmra.mxu0 %v1416
        %v1997 = vpop.f32.mrf.mxu0
        %v1998 = vadd.f32 %v1969, %v1997
        %v1999 = vpop.f32.mrf.mxu0
        %v2000 = vadd.f32 %v1971, %v1999
        %2001 = vmatmul.bf16.gmra.mxu0 %v1420
        %v2002 = vpop.f32.mrf.mxu0
        %v2003 = vadd.f32 %v1974, %v2002
        %v2004 = vpop.f32.mrf.mxu0
        %v2005 = vadd.f32 %v1976, %v2004
        %2006 = vmatmul.bf16.gmra.mxu0 %v1424
        %v2007 = vpop.f32.mrf.mxu0
        %v2008 = vadd.f32 %v1979, %v2007
        %v2009 = vpop.f32.mrf.mxu0
        %v2010 = vadd.f32 %v1981, %v2009
        %2011 = vmatmul.bf16.gmra.mxu0 %v1428
        %v2012 = vpop.f32.mrf.mxu0
        %v2013 = vadd.f32 %v1984, %v2012
        %v2014 = vpop.f32.mrf.mxu0
        %v2015 = vadd.f32 %v1986, %v2014
        %2016 = vdwg.mxu0
        %2017 = vmatpush.bf16.msra.mxu0 %v1749
        %2018 = vmatpush.bf16.msra.mxu0 %v1747
        %2019 = vmatpush.bf16.msra.mxu0 %v1745
        %2020 = vmatpush.bf16.msra.mxu0 %v1743
        %2021 = vmatpush.bf16.msra.mxu0 %v1741
        %2022 = vmatpush.bf16.msra.mxu0 %v1739
        %2023 = vmatpush.bf16.msra.mxu0 %v1737
        %2024 = vmatpush.bf16.msra.mxu0 %v1735
        %2025 = vmatmul.bf16.gmra.mxu0 %v1417
        %v2026 = vpop.f32.mrf.mxu0
        %v2027 = vadd.f32 %v1998, %v2026
        %v2028 = vpop.f32.mrf.mxu0
        %v2029 = vadd.f32 %v2000, %v2028
        %2030 = vmatmul.bf16.gmra.mxu0 %v1421
        %v2031 = vpop.f32.mrf.mxu0
        %v2032 = vadd.f32 %v2003, %v2031
        %v2033 = vpop.f32.mrf.mxu0
        %v2034 = vadd.f32 %v2005, %v2033
        %2035 = vmatmul.bf16.gmra.mxu0 %v1425
        %v2036 = vpop.f32.mrf.mxu0
        %v2037 = vadd.f32 %v2008, %v2036
        %v2038 = vpop.f32.mrf.mxu0
        %v2039 = vadd.f32 %v2010, %v2038
        %2040 = vmatmul.bf16.gmra.mxu0 %v1429
        %v2041 = vpop.f32.mrf.mxu0
        %v2042 = vadd.f32 %v2013, %v2041
        %v2043 = vpop.f32.mrf.mxu0
        %v2044 = vadd.f32 %v2015, %v2043
        %2045 = vdwg.mxu0
        %v2046 = vadd.f32 %v1398, %v1911
        %v2047 = vadd.f32 %v1399, %v2027
        %v2048 = vadd.f32 %v1400, %v1913
        %v2049 = vadd.f32 %v1401, %v2029
        %v2050 = vadd.f32 %v1402, %v1916
        %v2051 = vadd.f32 %v1403, %v2032
        %v2052 = vadd.f32 %v1404, %v1918
        %v2053 = vadd.f32 %v1405, %v2034
        %v2054 = vadd.f32 %v1406, %v1921
        %v2055 = vadd.f32 %v1407, %v2037
        %v2056 = vadd.f32 %v1408, %v1923
        %v2057 = vadd.f32 %v1409, %v2039
        %v2058 = vadd.f32 %v1410, %v1926
        %v2059 = vadd.f32 %v1411, %v2042
        %v2060 = vadd.f32 %v1412, %v1928
        %v2061 = vadd.f32 %v1413, %v2044
        %2062 = vst [vmem:[#allocation2] sm:$0xff] %v2046
        %2063 = vst [vmem:[#allocation2 + $0x8] sm:$0xff] %v2047
        %2064 = vst [vmem:[#allocation2 + $0x10] sm:$0xff] %v2048
        %2065 = vst [vmem:[#allocation2 + $0x18] sm:$0xff] %v2049
        %2066 = vst [vmem:[#allocation2 + $0x20] sm:$0xff] %v2050
        %2067 = vst [vmem:[#allocation2 + $0x28] sm:$0xff] %v2051
        %2068 = vst [vmem:[#allocation2 + $0x30] sm:$0xff] %v2052
        %2069 = vst [vmem:[#allocation2 + $0x38] sm:$0xff] %v2053
        %2070 = vst [vmem:[#allocation2 + $0x40] sm:$0xff] %v2054
        %2071 = vst [vmem:[#allocation2 + $0x48] sm:$0xff] %v2055
        %2072 = vst [vmem:[#allocation2 + $0x50] sm:$0xff] %v2056
        %2073 = vst [vmem:[#allocation2 + $0x58] sm:$0xff] %v2057
        %2074 = vst [vmem:[#allocation2 + $0x60] sm:$0xff] %v2058
        %2075 = vst [vmem:[#allocation2 + $0x68] sm:$0xff] %v2059
        %2076 = vst [vmem:[#allocation2 + $0x70] sm:$0xff] %v2060
        %2077 = vst [vmem:[#allocation2 + $0x78] sm:$0xff] %v2061
        %p2078 = scmp.eq.s32.totalorder %s22, 1
        // Predicated region
        $region64: #{llava_likelihood_forward.4} parent=50 // pred_check
          %p2079 = pneg %p2078
        $region65: #{llava_likelihood_forward.4} parent=50 // pred_check_branch
          %2081 = sbr.rel (%p2079) target = $region67
        $region66: #{llava_likelihood_forward.4} parent=50 // pred_region
          %v2082 = vld [vmem:[#allocation2] sm:$0xff]
          %v2083 = vld [vmem:[#allocation2 + $0x8] sm:$0xff]
          %v2084 = vld [vmem:[#allocation2 + $0x10] sm:$0xff]
          %v2085 = vld [vmem:[#allocation2 + $0x18] sm:$0xff]
          %v2086 = vld [vmem:[#allocation2 + $0x20] sm:$0xff]
          %v2087 = vld [vmem:[#allocation2 + $0x28] sm:$0xff]
          %v2088 = vld [vmem:[#allocation2 + $0x30] sm:$0xff]
          %v2089 = vld [vmem:[#allocation2 + $0x38] sm:$0xff]
          %v2090 = vld [vmem:[#allocation2 + $0x40] sm:$0xff]
          %v2091 = vld [vmem:[#allocation2 + $0x48] sm:$0xff]
          %v2092 = vld [vmem:[#allocation2 + $0x50] sm:$0xff]
          %v2093 = vld [vmem:[#allocation2 + $0x58] sm:$0xff]
          %v2094 = vld [vmem:[#allocation2 + $0x60] sm:$0xff]
          %v2095 = vld [vmem:[#allocation2 + $0x68] sm:$0xff]
          %v2096 = vld [vmem:[#allocation2 + $0x70] sm:$0xff]
          %v2097 = vld [vmem:[#allocation2 + $0x78] sm:$0xff]
          %v2098 = vpack.c.bf16 %v2083, %v2082
          %v2099 = vpack.c.bf16 %v2085, %v2084
          %v2100 = vpack.c.bf16 %v2087, %v2086
          %v2101 = vpack.c.bf16 %v2089, %v2088
          %v2102 = vpack.c.bf16 %v2091, %v2090
          %v2103 = vpack.c.bf16 %v2093, %v2092
          %v2104 = vpack.c.bf16 %v2095, %v2094
          %v2105 = vpack.c.bf16 %v2097, %v2096
          %2106 = vst [vmem:[%s400] sm:$0xff] %v2098
          %2107 = vst [vmem:[%s400 + $0x8] sm:$0xff] %v2099
          %2108 = vst [vmem:[%s400 + $0x10] sm:$0xff] %v2100
          %2109 = vst [vmem:[%s400 + $0x18] sm:$0xff] %v2101
          %2110 = vst [vmem:[%s400 + $0x20] sm:$0xff] %v2102
          %2111 = vst [vmem:[%s400 + $0x28] sm:$0xff] %v2103
          %2112 = vst [vmem:[%s400 + $0x30] sm:$0xff] %v2104
          %2113 = vst [vmem:[%s400 + $0x38] sm:$0xff] %v2105
        $region67: #{llava_likelihood_forward.4} parent=50 // pred_fallthru
          _
        %s2114 = smul.u32 8, %s21
        %p2115 = scmp.lt.s32.totalorder %s2114, 15
        %s2116 = scalar_select %p2115, %s2114, 15
        %s2117 = smul.addr %s2116, 2
        %s2118 = smul.addr %s2117, 4
        %s2119 = scalar_lea.vmem %s3, %s2118
        // Predicated region
        $region68: #{llava_likelihood_forward.4} parent=50 // pred_check
          %p2120 = pneg %p125
        $region69: #{llava_likelihood_forward.4} parent=50 // pred_check_branch
          %2122 = sbr.rel (%p2120) target = $region71
        $region70: #{llava_likelihood_forward.4} parent=50 // pred_region
          %s2123 = smul.u32 8, %s21
        $region71: #{llava_likelihood_forward.4} parent=50 // pred_fallthru
          _
      $region51: #{llava_likelihood_forward.4} parent=5 // pred_fallthru
        _
      %p2124 = scmp.le.s32.totalorder 2, %s12
      // Predicated region
      $region72: #{llava_likelihood_forward.4} parent=5 // pred_check
        %p2125 = pneg %p2124
      $region73: #{llava_likelihood_forward.4} parent=5 // pred_check_branch
        %2127 = sbr.rel (%p2125) target = $region75
      $region74: #{llava_likelihood_forward.4} parent=5 // pred_region
        %s2128 = ssub.s32 %s12, 2
        // Predicated region
        $region76: #{llava_likelihood_forward.4} parent=74 // pred_check
          %p2129 = pneg %p131
        $region77: #{llava_likelihood_forward.4} parent=74 // pred_check_branch
          %2131 = sbr.rel (%p2129) target = $region79
        $region78: #{llava_likelihood_forward.4} parent=74 // pred_region
          %s2132 = smul.u32 8, %s23
          %p2133 = scmp.lt.s32.totalorder %s2132, 15
          %s2134 = scalar_select %p2133, %s2132, 15
          %s2135 = smul.addr %s2134, 2
          %s2136 = smul.addr %s2135, 4
          %s2137 = scalar_lea.vmem %s3, %s2136
        $region79: #{llava_likelihood_forward.4} parent=74 // pred_fallthru
          _
      $region75: #{llava_likelihood_forward.4} parent=5 // pred_fallthru
        _
    $region6: #{llava_likelihood_forward.4} parent=1 // loop_footer
      %s16 = sadd.s32 1, %s12
    $region7: #{llava_likelihood_forward.4} parent=1 // loop_footer_branch
      %11 = sbr.rel target = $region3
    $region8: #{llava_likelihood_forward.4} parent=1 // loop_exit
      _
    %2138 = vsyncpa [#allocation5], 1
    %s2139 = scalar_lea.sflag [#allocation5], 1
    %2140 = vsyncpa %s2139, 1

</llo_original>
